<compile_context>
chip_gen: v6e
topology: v6e:2x2x1
jax: 0.10.0
libtpu: 0.0.40
codegen_flags: <defaults>
</compile_context>

<pallas_src>
import math
from functools import partial

import jax
import jax.numpy as jnp
from jax import lax
from jax.experimental import pallas as pl
from jax.experimental.pallas import tpu as pltpu


# ----------------------------------------------------------------------------
# RoPE frequency table (equivalent of precomputed_theta_pos_frequencies)
# ----------------------------------------------------------------------------
def precomputed_theta_pos_frequencies(head_dim: int, max_len: int, theta: float = 10000.0):
    inv = 1.0 / (theta ** (jnp.arange(0, head_dim, 2, dtype=jnp.float32) / head_dim))
    pos = jnp.arange(max_len, dtype=jnp.float32)
    return jnp.outer(pos, inv)  # (max_len, head_dim // 2) — angles


def rope_tables(angles, heads, dim):
    """Full-width (n, dim) cos table + two signed sin tables for the roll trick.

    Interleaved RoPE:
        out[2i]   = x[2i]  *cos - x[2i+1]*sin      (partner = +1 neighbor, coeff -sin)
        out[2i+1] = x[2i+1]*cos + x[2i]  *sin      (partner = -1 neighbor, coeff +sin)
    so  out = x*cos + roll_up(x)*sin_a + roll_down(x)*sin_b  with
        sin_a nonzero (= -sin) only at even lanes, sin_b nonzero (= +sin) only at odd.
    """
    cos_h = jnp.repeat(jnp.cos(angles), 2, axis=-1)        # (n, head_dim)
    sin_h = jnp.repeat(jnp.sin(angles), 2, axis=-1)        # (n, head_dim)
    cos = jnp.tile(cos_h, (1, heads))                       # (n, dim)
    sin = jnp.tile(sin_h, (1, heads))                       # (n, dim)
    even = (jnp.arange(dim) % 2 == 0)[None, :]
    sin_a = jnp.where(even, -sin, 0.0)                      # pairs with x[j+1]
    sin_b = jnp.where(even, 0.0, sin)                       # pairs with x[j-1]
    return (cos.astype(jnp.float32), sin_a.astype(jnp.float32),
            sin_b.astype(jnp.float32))


# order of per-layer parameters (matches init_params tuples)
PARAM_NAMES = (
    "g1",
    "sWq", "sWk", "sWv", "sWo", "sbq", "sbk", "sbv", "sbo",
    "g2",
    "cWq", "cWk", "cWv", "cWo", "cbq", "cbk", "cbv", "cbo",
    "g3",
    "w1", "b1", "w2", "b2",
)

WEIGHT_MATS = ("sWq", "sWk", "sWv", "sWo", "cWq", "cWk", "cWv", "cWo", "w1", "w2")


def stack_layer_params(params, heads):
    """Stack per-layer params along a leading L axis; fold q scale; bf16 weights."""
    D = params[0][1].shape[0]
    hd = D // heads
    scale = 1.0 / math.sqrt(hd)

    stacked = {n: jnp.stack([lp[i] for lp in params], axis=0)
               for i, n in enumerate(PARAM_NAMES)}
    # fold the 1/sqrt(head_dim) softmax scale into the q projections (RoPE is linear)
    for n in ("sWq", "sbq", "cWq", "cbq"):
        stacked[n] = stacked[n] * scale
    # bf16 weight matrices for the MXU; accumulation & biases stay f32 in-kernel
    for n in WEIGHT_MATS:
        stacked[n] = stacked[n].astype(jnp.bfloat16)
    return stacked


# ----------------------------------------------------------------------------
# Fused decoder stack kernel: grid iterates over layers, activation stays in VMEM
# ----------------------------------------------------------------------------
def t5_decoder_pallas(dx_flat, ex_flat, dpb, epb,
                      cos_d, sin_a_d, sin_b_d, cos_e, sin_a_e, sin_b_e,
                      stacked, heads):
    BT, D = dx_flat.shape
    T = cos_d.shape[0]
    S = cos_e.shape[0]
    B = BT // T
    L = stacked["g1"].shape[0]
    hd = D // heads

    def kernel(dx_ref, ex_ref, dpb_ref, epb_ref,
               cd_ref, sad_ref, sbd_ref, ce_ref, sae_ref, sbe_ref,
               g1_ref, sWq, sWk, sWv, sWo, sbq, sbk, sbv, sbo,
               g2_ref, cWq, cWk, cWv, cWo, cbq, cbk, cbv, cbo,
               g3_ref, w1_ref, b1_ref, w2_ref, b2_ref,
               out_ref):
        f32 = jnp.float32
        bf16 = jnp.bfloat16
        l = pl.program_id(0)

        # Layer 0: seed the carried activation (out block is layer-invariant,
        # so it stays resident in VMEM across grid iterations).
        @pl.when(l == 0)
        def _():
            out_ref[...] = dx_ref[...]

        x = out_ref[...]                       # (B*T, D) f32, carried activation
        ex_bf = ex_ref[...]                    # (B*S, D) bf16 (raw encoder output)
        dpb_b = dpb_ref[...]                   # (heads*B, 1, T) key-padding bias
        epb_b = epb_ref[...]                   # (heads*B, 1, S) key-padding bias
        cd, sad, sbd = cd_ref[...], sad_ref[...], sbd_ref[...]   # (T, D)
        ce, sae, sbe = ce_ref[...], sae_ref[...], sbe_ref[...]   # (S, D)

        # causal bias built in-kernel (a few VPU ops; no O(B*T^2) HBM traffic)
        row = lax.broadcasted_iota(jnp.int32, (T, T), 0)
        col = lax.broadcasted_iota(jnp.int32, (T, T), 1)
        causal = jnp.where(col > row, -1e9, 0.0).astype(f32)     # (T, T)

        def rmsnorm(v, g_ref):
            ms = jnp.mean(v * v, axis=-1, keepdims=True)
            return v * lax.rsqrt(ms + 1e-6) * g_ref[0]

        def wdot(a_bf, w_ref, b_ref):
            # bf16 operands on the MXU, f32 accumulation, f32 bias
            return jnp.dot(a_bf, w_ref[0], preferred_element_type=f32) + b_ref[0]

        def rope(t_flat, cos, sin_a, sin_b):
            # interleaved-pair rotation via two XLU rolls; signs folded into sin_a/b
            n = cos.shape[0]
            up = pltpu.roll(t_flat, shift=D - 1, axis=1)   # x[j+1]
            dn = pltpu.roll(t_flat, shift=1, axis=1)       # x[j-1]
            return (t_flat.reshape(B, n, D) * cos[None]
                    + up.reshape(B, n, D) * sin_a[None]
                    + dn.reshape(B, n, D) * sin_b[None])   # (B, n, D) f32

        def split_heads(t3):
            # (B, n, D) f32 -> (heads*B, n, hd) bf16, head-major along leading dim
            return jnp.concatenate(
                [t3[:, :, h * hd:(h + 1) * hd] for h in range(heads)],
                axis=0).astype(bf16)

        def merge_heads(c, n):
            # (heads*B, n, hd) f32 -> (B*n, D) f32 (feature = head-major concat)
            return jnp.concatenate(
                [c[h * B:(h + 1) * B] for h in range(heads)],
                axis=-1).reshape(B * n, D)

        def attention(q3, k3, v3, pad_bias, causal_bias, n_q, n_k):
            # single batched bf16 matmul with heads folded into the batch dim
            qh = split_heads(q3)                             # (heads*B, n_q, hd) bf16
            kh = split_heads(k3)                             # (heads*B, n_k, hd) bf16
            vh = split_heads(v3)                             # (heads*B, n_k, hd) bf16
            s = jnp.einsum('bqd,bkd->bqk', qh, kh,
                           preferred_element_type=f32)       # (heads*B, n_q, n_k) f32
            s = s + pad_bias
            if causal_bias is not None:
                s = s + causal_bias[None]
            s = s - jnp.max(s, axis=-1, keepdims=True)
            p = jnp.exp(s)
            p = p * pl.reciprocal(jnp.sum(p, axis=-1, keepdims=True), approx=True)
            ctx = jnp.einsum('bqk,bkd->bqd', p.astype(bf16), vh,
                             preferred_element_type=f32)     # (heads*B, n_q, hd) f32
            return merge_heads(ctx, n_q)                     # (B*n_q, D) f32

        # ---- self attention (causal; 1/sqrt(hd) already folded into Wq/bq) ----
        n1b = rmsnorm(x, g1_ref).astype(bf16)                # hoisted bf16 cast
        q = rope(wdot(n1b, sWq, sbq), cd, sad, sbd)
        k = rope(wdot(n1b, sWk, sbk), cd, sad, sbd)
        v = wdot(n1b, sWv, sbv).reshape(B, T, D)
        ctx = attention(q, k, v, dpb_b, causal, T, T)
        h = x + wdot(ctx.astype(bf16), sWo, sbo)

        # ---- cross attention (K/V from raw encoder output, encoder RoPE on K) ----
        n2b = rmsnorm(h, g2_ref).astype(bf16)
        q = rope(wdot(n2b, cWq, cbq), cd, sad, sbd)
        k = rope(wdot(ex_bf, cWk, cbk), ce, sae, sbe)
        v = wdot(ex_bf, cWv, cbv).reshape(B, S, D)
        ctx = attention(q, k, v, epb_b, None, T, S)
        z = h + wdot(ctx.astype(bf16), cWo, cbo)

        # ---- feed forward ----
        # TODO(synk): PyTorch nn.GELU default is exact erf; tanh approx kept here
        #             (FFW internals are assumed anyway).
        n3b = rmsnorm(z, g3_ref).astype(bf16)
        h1 = jax.nn.gelu(wdot(n3b, w1_ref, b1_ref), approximate=True)
        out_ref[...] = z + wdot(h1.astype(bf16), w2_ref, b2_ref)

    # --- block specs ---
    def inv_spec(shape):                       # layer-invariant input (resident)
        nd = len(shape)
        return pl.BlockSpec(shape, lambda l, _nd=nd: (0,) * _nd,
                            pipeline_mode=pl.Buffered(1))    # no double buffering

    def layer_spec(shape):                     # per-layer weight slice (double-buffered)
        nd = len(shape)
        return pl.BlockSpec((1,) + shape[1:],
                            lambda l, _nd=nd: (l,) + (0,) * (_nd - 1))

    consts = [dx_flat, ex_flat, dpb, epb,
              cos_d, sin_a_d, sin_b_d, cos_e, sin_a_e, sin_b_e]
    weights = [stacked[n] for n in PARAM_NAMES]

    in_specs = ([inv_spec(a.shape) for a in consts]
                + [layer_spec(w.shape) for w in weights])
    out_spec = pl.BlockSpec((BT, D), lambda l: (0, 0))

    # explicit scoped-VMEM budget: 2x per-layer weights (double buffer) +
    # single-buffered invariants + resident output + activation/score headroom
    nbytes = lambda a: int(a.size) * a.dtype.itemsize
    per_layer_w = sum(nbytes(stacked[n]) for n in PARAM_NAMES) // L
    invariant_b = sum(nbytes(a) for a in consts)
    vmem_limit = 2 * per_layer_w + invariant_b + 2 * nbytes(dx_flat) + (8 << 20)
    vmem_limit = int(min(max(vmem_limit, 32 << 20), 64 << 20))  # <= v7x physical VMEM

    return pl.pallas_call(
        kernel,
        out_shape=jax.ShapeDtypeStruct((BT, D), jnp.float32),
        grid_spec=pltpu.PrefetchScalarGridSpec(
            num_scalar_prefetch=0,
            grid=(L,),
            in_specs=in_specs,
            out_specs=out_spec,
        ),
        compiler_params=pltpu.CompilerParams(
            dimension_semantics=("arbitrary",),     # layers are sequential
            vmem_limit_bytes=vmem_limit),
    )(*consts, *weights)


# ----------------------------------------------------------------------------
# Full T5Decoder forward (wrapper: RoPE tables, padding biases, stacked params)
# ----------------------------------------------------------------------------
def t5_decoder_forward(params, freq, d_x, e_x, d_mask, e_mask, heads):
    B, T, D = d_x.shape
    S = e_x.shape[1]

    # compact (T,D)/(S,D) RoPE tables (NOT tiled over batch)
    cos_d, sin_a_d, sin_b_d = rope_tables(freq[:T], heads, D)
    cos_e, sin_a_e, sin_b_e = rope_tables(freq[:S], heads, D)

    # key-padding biases only (causal mask is generated in-kernel); head-major tile
    dpb = jnp.tile(jnp.where(d_mask > 0.5, -1e9, 0.0).astype(jnp.float32),
                   (heads, 1))[:, None, :]                    # (heads*B, 1, T)
    epb = jnp.tile(jnp.where(e_mask > 0.5, -1e9, 0.0).astype(jnp.float32),
                   (heads, 1))[:, None, :]                    # (heads*B, 1, S)

    stacked = stack_layer_params(params, heads)

    dx_flat = d_x.reshape(B * T, D).astype(jnp.float32)
    ex_flat = e_x.reshape(B * S, D).astype(jnp.bfloat16)      # only consumed by bf16 matmuls

    out = t5_decoder_pallas(dx_flat, ex_flat, dpb, epb,
                            cos_d, sin_a_d, sin_b_d, cos_e, sin_a_e, sin_b_e,
                            stacked, heads)
    return out.reshape(B, T, D).astype(d_x.dtype)


# ----------------------------------------------------------------------------
# Deterministic parameter init (shapes implied by the module __init__)
# ----------------------------------------------------------------------------
def init_params(key, dim, num_layers, ffn_mult=4):
    hidden = ffn_mult * dim
    layers = []
    for _ in range(num_layers):
        key, *ks = jax.random.split(key, 11)
        w = lambda k, shape: jax.random.normal(k, shape, jnp.float32) * 0.05
        zeros = lambda shape: jnp.zeros(shape, jnp.float32)
        ones = lambda shape: jnp.ones(shape, jnp.float32)
        lp = (
            ones((1, dim)),                                   # g1 (pre_self_attn_norm)
            w(ks[0], (dim, dim)), w(ks[1], (dim, dim)),       # self: Wq, Wk
            w(ks[2], (dim, dim)), w(ks[3], (dim, dim)),       # self: Wv, Wo
            zeros((1, dim)), zeros((1, dim)),                 # self: bq, bk
            zeros((1, dim)), zeros((1, dim)),                 # self: bv, bo
            ones((1, dim)),                                   # g2 (pre_cross_attn_norm)
            w(ks[4], (dim, dim)), w(ks[5], (dim, dim)),       # cross: Wq, Wk
            w(ks[6], (dim, dim)), w(ks[7], (dim, dim)),       # cross: Wv, Wo
            zeros((1, dim)), zeros((1, dim)),                 # cross: bq, bk
            zeros((1, dim)), zeros((1, dim)),                 # cross: bv, bo
            ones((1, dim)),                                   # g3 (pre_ffw_norm)
            w(ks[8], (dim, hidden)), zeros((1, hidden)),      # ffw: W1, b1
            w(ks[9], (hidden, dim)), zeros((1, dim)),         # ffw: W2, b2
        )
        layers.append(lp)
    return layers


# ----------------------------------------------------------------------------
if __name__ == "__main__":
    # lane-friendly toy shapes: dim = 128 (one full lane tile), head_dim = 32
    B, T, S = 2, 8, 12
    dim, heads, num_layers = 128, 4, 2
    head_dim = dim // heads
    max_len = 64

    key = jax.random.PRNGKey(0)
    k_dx, k_ex, k_par = jax.random.split(key, 3)

    d_x = jax.random.normal(k_dx, (B, T, dim), jnp.float32)
    e_x = jax.random.normal(k_ex, (B, S, dim), jnp.float32)

    # key padding masks (1.0 == padded position)
    d_mask = jnp.zeros((B, T), jnp.float32).at[1, -2:].set(1.0)
    e_mask = jnp.zeros((B, S), jnp.float32).at[0, -3:].set(1.0)

    params = init_params(k_par, dim, num_layers)
    freq = precomputed_theta_pos_frequencies(head_dim, max_len)

    fwd = jax.jit(partial(t5_decoder_forward, heads=heads))
    out = fwd(params, freq, d_x, e_x, d_mask, e_mask)
    out = jax.block_until_ready(out)

    assert out.shape == (B, T, dim), out.shape
    assert jnp.all(jnp.isfinite(out))
    print("KERNEL_OK")
</pallas_src>

<mosaic_0001>
module attributes {stable_mosaic.version = 11 : i64} {
  func.func @kernel(%arg0: i32, %arg1: memref<16x128xf32, #tpu.memory_space<vmem>>, %arg2: memref<24x128xbf16, #tpu.memory_space<vmem>>, %arg3: memref<8x1x8xf32, #tpu.memory_space<vmem>>, %arg4: memref<8x1x12xf32, #tpu.memory_space<vmem>>, %arg5: memref<8x128xf32, #tpu.memory_space<vmem>>, %arg6: memref<8x128xf32, #tpu.memory_space<vmem>>, %arg7: memref<8x128xf32, #tpu.memory_space<vmem>>, %arg8: memref<12x128xf32, #tpu.memory_space<vmem>>, %arg9: memref<12x128xf32, #tpu.memory_space<vmem>>, %arg10: memref<12x128xf32, #tpu.memory_space<vmem>>, %arg11: memref<1x1x128xf32, #tpu.memory_space<vmem>>, %arg12: memref<1x128x128xbf16, #tpu.memory_space<vmem>>, %arg13: memref<1x128x128xbf16, #tpu.memory_space<vmem>>, %arg14: memref<1x128x128xbf16, #tpu.memory_space<vmem>>, %arg15: memref<1x128x128xbf16, #tpu.memory_space<vmem>>, %arg16: memref<1x1x128xf32, #tpu.memory_space<vmem>>, %arg17: memref<1x1x128xf32, #tpu.memory_space<vmem>>, %arg18: memref<1x1x128xf32, #tpu.memory_space<vmem>>, %arg19: memref<1x1x128xf32, #tpu.memory_space<vmem>>, %arg20: memref<1x1x128xf32, #tpu.memory_space<vmem>>, %arg21: memref<1x128x128xbf16, #tpu.memory_space<vmem>>, %arg22: memref<1x128x128xbf16, #tpu.memory_space<vmem>>, %arg23: memref<1x128x128xbf16, #tpu.memory_space<vmem>>, %arg24: memref<1x128x128xbf16, #tpu.memory_space<vmem>>, %arg25: memref<1x1x128xf32, #tpu.memory_space<vmem>>, %arg26: memref<1x1x128xf32, #tpu.memory_space<vmem>>, %arg27: memref<1x1x128xf32, #tpu.memory_space<vmem>>, %arg28: memref<1x1x128xf32, #tpu.memory_space<vmem>>, %arg29: memref<1x1x128xf32, #tpu.memory_space<vmem>>, %arg30: memref<1x128x512xbf16, #tpu.memory_space<vmem>>, %arg31: memref<1x1x512xf32, #tpu.memory_space<vmem>>, %arg32: memref<1x512x128xbf16, #tpu.memory_space<vmem>>, %arg33: memref<1x1x128xf32, #tpu.memory_space<vmem>>, %arg34: memref<16x128xf32, #tpu.memory_space<vmem>>) attributes {dimension_semantics = [#tpu.dimension_semantics<arbitrary>], iteration_bounds = array<i64: 2>, scalar_prefetch = 0 : i64, scratch_operands = 0 : i64, tpu.core_type = #tpu.core_type<tc>, window_params = [{pipeline_mode = #tpu.pipeline_mode<synchronous>, transform_indices = @transform_0, window_bounds = array<i64: 16, 128>}, {pipeline_mode = #tpu.pipeline_mode<synchronous>, transform_indices = @transform_1, window_bounds = array<i64: 24, 128>}, {pipeline_mode = #tpu.pipeline_mode<synchronous>, transform_indices = @transform_2, window_bounds = array<i64: 8, 1, 8>}, {pipeline_mode = #tpu.pipeline_mode<synchronous>, transform_indices = @transform_3, window_bounds = array<i64: 8, 1, 12>}, {pipeline_mode = #tpu.pipeline_mode<synchronous>, transform_indices = @transform_4, window_bounds = array<i64: 8, 128>}, {pipeline_mode = #tpu.pipeline_mode<synchronous>, transform_indices = @transform_5, window_bounds = array<i64: 8, 128>}, {pipeline_mode = #tpu.pipeline_mode<synchronous>, transform_indices = @transform_6, window_bounds = array<i64: 8, 128>}, {pipeline_mode = #tpu.pipeline_mode<synchronous>, transform_indices = @transform_7, window_bounds = array<i64: 12, 128>}, {pipeline_mode = #tpu.pipeline_mode<synchronous>, transform_indices = @transform_8, window_bounds = array<i64: 12, 128>}, {pipeline_mode = #tpu.pipeline_mode<synchronous>, transform_indices = @transform_9, window_bounds = array<i64: 12, 128>}, {transform_indices = @transform_10, window_bounds = array<i64: 1, 1, 128>}, {transform_indices = @transform_11, window_bounds = array<i64: 1, 128, 128>}, {transform_indices = @transform_12, window_bounds = array<i64: 1, 128, 128>}, {transform_indices = @transform_13, window_bounds = array<i64: 1, 128, 128>}, {transform_indices = @transform_14, window_bounds = array<i64: 1, 128, 128>}, {transform_indices = @transform_15, window_bounds = array<i64: 1, 1, 128>}, {transform_indices = @transform_16, window_bounds = array<i64: 1, 1, 128>}, {transform_indices = @transform_17, window_bounds = array<i64: 1, 1, 128>}, {transform_indices = @transform_18, window_bounds = array<i64: 1, 1, 128>}, {transform_indices = @transform_19, window_bounds = array<i64: 1, 1, 128>}, {transform_indices = @transform_20, window_bounds = array<i64: 1, 128, 128>}, {transform_indices = @transform_21, window_bounds = array<i64: 1, 128, 128>}, {transform_indices = @transform_22, window_bounds = array<i64: 1, 128, 128>}, {transform_indices = @transform_23, window_bounds = array<i64: 1, 128, 128>}, {transform_indices = @transform_24, window_bounds = array<i64: 1, 1, 128>}, {transform_indices = @transform_25, window_bounds = array<i64: 1, 1, 128>}, {transform_indices = @transform_26, window_bounds = array<i64: 1, 1, 128>}, {transform_indices = @transform_27, window_bounds = array<i64: 1, 1, 128>}, {transform_indices = @transform_28, window_bounds = array<i64: 1, 1, 128>}, {transform_indices = @transform_29, window_bounds = array<i64: 1, 128, 512>}, {transform_indices = @transform_30, window_bounds = array<i64: 1, 1, 512>}, {transform_indices = @transform_31, window_bounds = array<i64: 1, 512, 128>}, {transform_indices = @transform_32, window_bounds = array<i64: 1, 1, 128>}, {pipeline_mode = #tpu.pipeline_mode<synchronous>, transform_indices = @transform_33, window_bounds = array<i64: 16, 128>}]} {
    %c0_i32 = arith.constant 0 : i32
    %0 = arith.cmpi eq, %arg0, %c0_i32 : i32
    %1 = arith.extui %0 : i1 to i32
    %c0_i32_0 = arith.constant 0 : i32
    %2 = arith.cmpi ne, %1, %c0_i32_0 : i32
    scf.if %2 {
      %c0_131 = arith.constant 0 : index
      %c0_132 = arith.constant 0 : index
      %301 = vector.load %arg1[%c0_131, %c0_132] : memref<16x128xf32, #tpu.memory_space<vmem>>, vector<16x128xf32>
      %c0_133 = arith.constant 0 : index
      %c0_134 = arith.constant 0 : index
      %302 = vector.load %arg34[%c0_133, %c0_134] : memref<16x128xf32, #tpu.memory_space<vmem>>, vector<16x128xf32>
      tpu.vector_store %arg34[%c0_133, %c0_134], %301 {strides = array<i32>} : memref<16x128xf32, #tpu.memory_space<vmem>>, vector<16x128xf32>,
    } else {
    }
    %c0 = arith.constant 0 : index
    %c0_1 = arith.constant 0 : index
    %3 = vector.load %arg34[%c0, %c0_1] : memref<16x128xf32, #tpu.memory_space<vmem>>, vector<16x128xf32>
    %c0_2 = arith.constant 0 : index
    %c0_3 = arith.constant 0 : index
    %4 = vector.load %arg2[%c0_2, %c0_3] : memref<24x128xbf16, #tpu.memory_space<vmem>>, vector<24x128xbf16>
    %c0_4 = arith.constant 0 : index
    %c0_5 = arith.constant 0 : index
    %c0_6 = arith.constant 0 : index
    %5 = vector.load %arg3[%c0_4, %c0_5, %c0_6] : memref<8x1x8xf32, #tpu.memory_space<vmem>>, vector<8x1x8xf32>
    %c0_7 = arith.constant 0 : index
    %c0_8 = arith.constant 0 : index
    %c0_9 = arith.constant 0 : index
    %6 = vector.load %arg4[%c0_7, %c0_8, %c0_9] : memref<8x1x12xf32, #tpu.memory_space<vmem>>, vector<8x1x12xf32>
    %c0_10 = arith.constant 0 : index
    %c0_11 = arith.constant 0 : index
    %7 = vector.load %arg5[%c0_10, %c0_11] : memref<8x128xf32, #tpu.memory_space<vmem>>, vector<8x128xf32>
    %c0_12 = arith.constant 0 : index
    %c0_13 = arith.constant 0 : index
    %8 = vector.load %arg6[%c0_12, %c0_13] : memref<8x128xf32, #tpu.memory_space<vmem>>, vector<8x128xf32>
    %c0_14 = arith.constant 0 : index
    %c0_15 = arith.constant 0 : index
    %9 = vector.load %arg7[%c0_14, %c0_15] : memref<8x128xf32, #tpu.memory_space<vmem>>, vector<8x128xf32>
    %c0_16 = arith.constant 0 : index
    %c0_17 = arith.constant 0 : index
    %10 = vector.load %arg8[%c0_16, %c0_17] : memref<12x128xf32, #tpu.memory_space<vmem>>, vector<12x128xf32>
    %c0_18 = arith.constant 0 : index
    %c0_19 = arith.constant 0 : index
    %11 = vector.load %arg9[%c0_18, %c0_19] : memref<12x128xf32, #tpu.memory_space<vmem>>, vector<12x128xf32>
    %c0_20 = arith.constant 0 : index
    %c0_21 = arith.constant 0 : index
    %12 = vector.load %arg10[%c0_20, %c0_21] : memref<12x128xf32, #tpu.memory_space<vmem>>, vector<12x128xf32>
    %13 = tpu.iota {dimensions = array<i32: 0>} : vector<8x8xi32>
    %14 = tpu.iota {dimensions = array<i32: 1>} : vector<8x8xi32>
    %15 = arith.cmpi sgt, %14, %13 : vector<8x8xi32>
    %cst = arith.constant -1.000000e+09 : f32
    %cst_22 = arith.constant 0.000000e+00 : f32
    %16 = vector.broadcast %cst : f32 to vector<8x8xf32>
    %17 = vector.broadcast %cst_22 : f32 to vector<8x8xf32>
    %18 = arith.select %15, %16, %17 : vector<8x8xi1>, vector<8x8xf32>
    %19 = arith.mulf %3, %3 : vector<16x128xf32>
    %cst_23 = arith.constant dense<0.000000e+00> : vector<16xf32>
    %20 = vector.multi_reduction <add>, %19, %cst_23 [1] : vector<16x128xf32> to vector<16xf32>
    %21 = vector.shape_cast %20 : vector<16xf32> to vector<16x1xf32>
    %cst_24 = arith.constant 1.280000e+02 : f32
    %22 = vector.broadcast %cst_24 : f32 to vector<16x1xf32>
    %23 = arith.divf %21, %22 : vector<16x1xf32>
    %cst_25 = arith.constant 9.99999997E-7 : f32
    %24 = vector.broadcast %cst_25 : f32 to vector<16x1xf32>
    %25 = arith.addf %23, %24 : vector<16x1xf32>
    %26 = math.rsqrt %25 : vector<16x1xf32>
    %27 = vector.broadcast %26 : vector<16x1xf32> to vector<16x128xf32>
    %28 = arith.mulf %3, %27 : vector<16x128xf32>
    %c0_26 = arith.constant 0 : index
    %c0_27 = arith.constant 0 : index
    %c0_28 = arith.constant 0 : index
    %29 = vector.load %arg11[%c0_26, %c0_27, %c0_28] : memref<1x1x128xf32, #tpu.memory_space<vmem>>, vector<1x1x128xf32>
    %30 = vector.shape_cast %29 : vector<1x1x128xf32> to vector<1x128xf32>
    %31 = vector.broadcast %30 : vector<1x128xf32> to vector<16x128xf32>
    %32 = arith.mulf %28, %31 : vector<16x128xf32>
    %33 = arith.truncf %32 : vector<16x128xf32> to vector<16x128xbf16>
    %c0_29 = arith.constant 0 : index
    %c0_30 = arith.constant 0 : index
    %c0_31 = arith.constant 0 : index
    %34 = vector.load %arg12[%c0_29, %c0_30, %c0_31] : memref<1x128x128xbf16, #tpu.memory_space<vmem>>, vector<1x128x128xbf16>
    %35 = vector.shape_cast %34 : vector<1x128x128xbf16> to vector<128x128xbf16>
    %cst_32 = arith.constant dense<0.000000e+00> : vector<16x128xf32>
    %36 = tpu.matmul %33, %35, %cst_32 {dimension_numbers = #tpu.dot_dimension_numbers<[1], [0], [0], [1], [0, 0, 1, 1], [], []>} : vector<16x128xbf16>, vector<128x128xbf16>, vector<16x128xf32> -> vector<16x128xf32>
    %c0_33 = arith.constant 0 : index
    %c0_34 = arith.constant 0 : index
    %c0_35 = arith.constant 0 : index
    %37 = vector.load %arg16[%c0_33, %c0_34, %c0_35] : memref<1x1x128xf32, #tpu.memory_space<vmem>>, vector<1x1x128xf32>
    %38 = vector.shape_cast %37 : vector<1x1x128xf32> to vector<1x128xf32>
    %39 = vector.broadcast %38 : vector<1x128xf32> to vector<16x128xf32>
    %40 = arith.addf %36, %39 : vector<16x128xf32>
    %c127_i32 = arith.constant 127 : i32
    %41 = tpu.dynamic_rotate %40 by %c127_i32 dim 1 : vector<16x128xf32>, i32 -> vector<16x128xf32>
    %c1_i32 = arith.constant 1 : i32
    %42 = tpu.dynamic_rotate %40 by %c1_i32 dim 1 : vector<16x128xf32>, i32 -> vector<16x128xf32>
    %43 = vector.shape_cast %40 : vector<16x128xf32> to vector<2x8x128xf32>
    %44 = vector.shape_cast %7 : vector<8x128xf32> to vector<1x8x128xf32>
    %45 = vector.broadcast %44 : vector<1x8x128xf32> to vector<2x8x128xf32>
    %46 = arith.mulf %43, %45 : vector<2x8x128xf32>
    %47 = vector.shape_cast %41 : vector<16x128xf32> to vector<2x8x128xf32>
    %48 = vector.shape_cast %8 : vector<8x128xf32> to vector<1x8x128xf32>
    %49 = vector.broadcast %48 : vector<1x8x128xf32> to vector<2x8x128xf32>
    %50 = arith.mulf %47, %49 : vector<2x8x128xf32>
    %51 = arith.addf %46, %50 : vector<2x8x128xf32>
    %52 = vector.shape_cast %42 : vector<16x128xf32> to vector<2x8x128xf32>
    %53 = vector.shape_cast %9 : vector<8x128xf32> to vector<1x8x128xf32>
    %54 = vector.broadcast %53 : vector<1x8x128xf32> to vector<2x8x128xf32>
    %55 = arith.mulf %52, %54 : vector<2x8x128xf32>
    %56 = arith.addf %51, %55 : vector<2x8x128xf32>
    %c0_36 = arith.constant 0 : index
    %c0_37 = arith.constant 0 : index
    %c0_38 = arith.constant 0 : index
    %57 = vector.load %arg13[%c0_36, %c0_37, %c0_38] : memref<1x128x128xbf16, #tpu.memory_space<vmem>>, vector<1x128x128xbf16>
    %58 = vector.shape_cast %57 : vector<1x128x128xbf16> to vector<128x128xbf16>
    %cst_39 = arith.constant dense<0.000000e+00> : vector<16x128xf32>
    %59 = tpu.matmul %33, %58, %cst_39 {dimension_numbers = #tpu.dot_dimension_numbers<[1], [0], [0], [1], [0, 0, 1, 1], [], []>} : vector<16x128xbf16>, vector<128x128xbf16>, vector<16x128xf32> -> vector<16x128xf32>
    %c0_40 = arith.constant 0 : index
    %c0_41 = arith.constant 0 : index
    %c0_42 = arith.constant 0 : index
    %60 = vector.load %arg17[%c0_40, %c0_41, %c0_42] : memref<1x1x128xf32, #tpu.memory_space<vmem>>, vector<1x1x128xf32>
    %61 = vector.shape_cast %60 : vector<1x1x128xf32> to vector<1x128xf32>
    %62 = vector.broadcast %61 : vector<1x128xf32> to vector<16x128xf32>
    %63 = arith.addf %59, %62 : vector<16x128xf32>
    %c127_i32_43 = arith.constant 127 : i32
    %64 = tpu.dynamic_rotate %63 by %c127_i32_43 dim 1 : vector<16x128xf32>, i32 -> vector<16x128xf32>
    %c1_i32_44 = arith.constant 1 : i32
    %65 = tpu.dynamic_rotate %63 by %c1_i32_44 dim 1 : vector<16x128xf32>, i32 -> vector<16x128xf32>
    %66 = vector.shape_cast %63 : vector<16x128xf32> to vector<2x8x128xf32>
    %67 = vector.shape_cast %7 : vector<8x128xf32> to vector<1x8x128xf32>
    %68 = vector.broadcast %67 : vector<1x8x128xf32> to vector<2x8x128xf32>
    %69 = arith.mulf %66, %68 : vector<2x8x128xf32>
    %70 = vector.shape_cast %64 : vector<16x128xf32> to vector<2x8x128xf32>
    %71 = vector.shape_cast %8 : vector<8x128xf32> to vector<1x8x128xf32>
    %72 = vector.broadcast %71 : vector<1x8x128xf32> to vector<2x8x128xf32>
    %73 = arith.mulf %70, %72 : vector<2x8x128xf32>
    %74 = arith.addf %69, %73 : vector<2x8x128xf32>
    %75 = vector.shape_cast %65 : vector<16x128xf32> to vector<2x8x128xf32>
    %76 = vector.shape_cast %9 : vector<8x128xf32> to vector<1x8x128xf32>
    %77 = vector.broadcast %76 : vector<1x8x128xf32> to vector<2x8x128xf32>
    %78 = arith.mulf %75, %77 : vector<2x8x128xf32>
    %79 = arith.addf %74, %78 : vector<2x8x128xf32>
    %c0_45 = arith.constant 0 : index
    %c0_46 = arith.constant 0 : index
    %c0_47 = arith.constant 0 : index
    %80 = vector.load %arg14[%c0_45, %c0_46, %c0_47] : memref<1x128x128xbf16, #tpu.memory_space<vmem>>, vector<1x128x128xbf16>
    %81 = vector.shape_cast %80 : vector<1x128x128xbf16> to vector<128x128xbf16>
    %cst_48 = arith.constant dense<0.000000e+00> : vector<16x128xf32>
    %82 = tpu.matmul %33, %81, %cst_48 {dimension_numbers = #tpu.dot_dimension_numbers<[1], [0], [0], [1], [0, 0, 1, 1], [], []>} : vector<16x128xbf16>, vector<128x128xbf16>, vector<16x128xf32> -> vector<16x128xf32>
    %c0_49 = arith.constant 0 : index
    %c0_50 = arith.constant 0 : index
    %c0_51 = arith.constant 0 : index
    %83 = vector.load %arg18[%c0_49, %c0_50, %c0_51] : memref<1x1x128xf32, #tpu.memory_space<vmem>>, vector<1x1x128xf32>
    %84 = vector.shape_cast %83 : vector<1x1x128xf32> to vector<1x128xf32>
    %85 = vector.broadcast %84 : vector<1x128xf32> to vector<16x128xf32>
    %86 = arith.addf %82, %85 : vector<16x128xf32>
    %87 = vector.shape_cast %86 : vector<16x128xf32> to vector<2x8x128xf32>
    %88 = vector.extract_strided_slice %56 {offsets = [0, 0, 0], sizes = [2, 8, 32], strides = [1, 1, 1]} : vector<2x8x128xf32> to vector<2x8x32xf32>
    %89 = vector.extract_strided_slice %56 {offsets = [0, 0, 32], sizes = [2, 8, 32], strides = [1, 1, 1]} : vector<2x8x128xf32> to vector<2x8x32xf32>
    %90 = vector.extract_strided_slice %56 {offsets = [0, 0, 64], sizes = [2, 8, 32], strides = [1, 1, 1]} : vector<2x8x128xf32> to vector<2x8x32xf32>
    %91 = vector.extract_strided_slice %56 {offsets = [0, 0, 96], sizes = [2, 8, 32], strides = [1, 1, 1]} : vector<2x8x128xf32> to vector<2x8x32xf32>
    %92 = tpu.concatenate %88, %89, %90, %91 in 0 : vector<2x8x32xf32>, vector<2x8x32xf32>, vector<2x8x32xf32>, vector<2x8x32xf32> -> vector<8x8x32xf32>
    %93 = arith.truncf %92 : vector<8x8x32xf32> to vector<8x8x32xbf16>
    %94 = vector.extract_strided_slice %79 {offsets = [0, 0, 0], sizes = [2, 8, 32], strides = [1, 1, 1]} : vector<2x8x128xf32> to vector<2x8x32xf32>
    %95 = vector.extract_strided_slice %79 {offsets = [0, 0, 32], sizes = [2, 8, 32], strides = [1, 1, 1]} : vector<2x8x128xf32> to vector<2x8x32xf32>
    %96 = vector.extract_strided_slice %79 {offsets = [0, 0, 64], sizes = [2, 8, 32], strides = [1, 1, 1]} : vector<2x8x128xf32> to vector<2x8x32xf32>
    %97 = vector.extract_strided_slice %79 {offsets = [0, 0, 96], sizes = [2, 8, 32], strides = [1, 1, 1]} : vector<2x8x128xf32> to vector<2x8x32xf32>
    %98 = tpu.concatenate %94, %95, %96, %97 in 0 : vector<2x8x32xf32>, vector<2x8x32xf32>, vector<2x8x32xf32>, vector<2x8x32xf32> -> vector<8x8x32xf32>
    %99 = arith.truncf %98 : vector<8x8x32xf32> to vector<8x8x32xbf16>
    %100 = vector.extract_strided_slice %87 {offsets = [0, 0, 0], sizes = [2, 8, 32], strides = [1, 1, 1]} : vector<2x8x128xf32> to vector<2x8x32xf32>
    %101 = vector.extract_strided_slice %87 {offsets = [0, 0, 32], sizes = [2, 8, 32], strides = [1, 1, 1]} : vector<2x8x128xf32> to vector<2x8x32xf32>
    %102 = vector.extract_strided_slice %87 {offsets = [0, 0, 64], sizes = [2, 8, 32], strides = [1, 1, 1]} : vector<2x8x128xf32> to vector<2x8x32xf32>
    %103 = vector.extract_strided_slice %87 {offsets = [0, 0, 96], sizes = [2, 8, 32], strides = [1, 1, 1]} : vector<2x8x128xf32> to vector<2x8x32xf32>
    %104 = tpu.concatenate %100, %101, %102, %103 in 0 : vector<2x8x32xf32>, vector<2x8x32xf32>, vector<2x8x32xf32>, vector<2x8x32xf32> -> vector<8x8x32xf32>
    %105 = arith.truncf %104 : vector<8x8x32xf32> to vector<8x8x32xbf16>
    "tpu.trace_start"() <{level = 10 : i32, message = "bqd,bkd->bqk"}> : () -> ()
    %cst_52 = arith.constant dense<0.000000e+00> : vector<8x8x8xf32>
    %106 = tpu.matmul %93, %99, %cst_52 {dimension_numbers = #tpu.dot_dimension_numbers<[2], [2], [1], [1], [0, 0, 0, 1, 1, 1], [0], [0]>} : vector<8x8x32xbf16>, vector<8x8x32xbf16>, vector<8x8x8xf32> -> vector<8x8x8xf32>
    "tpu.trace_stop"() : () -> ()
    %107 = vector.broadcast %5 : vector<8x1x8xf32> to vector<8x8x8xf32>
    %108 = arith.addf %106, %107 : vector<8x8x8xf32>
    %109 = vector.shape_cast %18 : vector<8x8xf32> to vector<1x8x8xf32>
    %110 = vector.broadcast %109 : vector<1x8x8xf32> to vector<8x8x8xf32>
    %111 = arith.addf %108, %110 : vector<8x8x8xf32>
    %cst_53 = arith.constant dense<0xFF800000> : vector<8x8xf32>
    %112 = vector.multi_reduction <maximumf>, %111, %cst_53 [2] : vector<8x8x8xf32> to vector<8x8xf32>
    %113 = vector.shape_cast %112 : vector<8x8xf32> to vector<8x8x1xf32>
    %114 = vector.broadcast %113 : vector<8x8x1xf32> to vector<8x8x8xf32>
    %115 = arith.subf %111, %114 : vector<8x8x8xf32>
    %116 = math.exp %115 : vector<8x8x8xf32>
    %cst_54 = arith.constant dense<0.000000e+00> : vector<8x8xf32>
    %117 = vector.multi_reduction <add>, %116, %cst_54 [2] : vector<8x8x8xf32> to vector<8x8xf32>
    %118 = vector.shape_cast %117 : vector<8x8xf32> to vector<8x8x1xf32>
    %119 = tpu.reciprocal %118 {approx = true} : vector<8x8x1xf32> -> vector<8x8x1xf32>
    %120 = vector.broadcast %119 : vector<8x8x1xf32> to vector<8x8x8xf32>
    %121 = arith.mulf %116, %120 : vector<8x8x8xf32>
    %122 = arith.truncf %121 : vector<8x8x8xf32> to vector<8x8x8xbf16>
    "tpu.trace_start"() <{level = 10 : i32, message = "bqk,bkd->bqd"}> : () -> ()
    %cst_55 = arith.constant dense<0.000000e+00> : vector<8x8x32xf32>
    %123 = tpu.matmul %122, %105, %cst_55 {dimension_numbers = #tpu.dot_dimension_numbers<[2], [1], [1], [2], [0, 0, 0, 1, 1, 2], [0], [0]>} : vector<8x8x8xbf16>, vector<8x8x32xbf16>, vector<8x8x32xf32> -> vector<8x8x32xf32>
    "tpu.trace_stop"() : () -> ()
    %124 = vector.extract_strided_slice %123 {offsets = [0, 0, 0], sizes = [2, 8, 32], strides = [1, 1, 1]} : vector<8x8x32xf32> to vector<2x8x32xf32>
    %125 = vector.extract_strided_slice %123 {offsets = [2, 0, 0], sizes = [2, 8, 32], strides = [1, 1, 1]} : vector<8x8x32xf32> to vector<2x8x32xf32>
    %126 = vector.extract_strided_slice %123 {offsets = [4, 0, 0], sizes = [2, 8, 32], strides = [1, 1, 1]} : vector<8x8x32xf32> to vector<2x8x32xf32>
    %127 = vector.extract_strided_slice %123 {offsets = [6, 0, 0], sizes = [2, 8, 32], strides = [1, 1, 1]} : vector<8x8x32xf32> to vector<2x8x32xf32>
    %128 = tpu.concatenate %124, %125, %126, %127 in 2 : vector<2x8x32xf32>, vector<2x8x32xf32>, vector<2x8x32xf32>, vector<2x8x32xf32> -> vector<2x8x128xf32>
    %129 = vector.shape_cast %128 : vector<2x8x128xf32> to vector<16x128xf32>
    %130 = arith.truncf %129 : vector<16x128xf32> to vector<16x128xbf16>
    %c0_56 = arith.constant 0 : index
    %c0_57 = arith.constant 0 : index
    %c0_58 = arith.constant 0 : index
    %131 = vector.load %arg15[%c0_56, %c0_57, %c0_58] : memref<1x128x128xbf16, #tpu.memory_space<vmem>>, vector<1x128x128xbf16>
    %132 = vector.shape_cast %131 : vector<1x128x128xbf16> to vector<128x128xbf16>
    %cst_59 = arith.constant dense<0.000000e+00> : vector<16x128xf32>
    %133 = tpu.matmul %130, %132, %cst_59 {dimension_numbers = #tpu.dot_dimension_numbers<[1], [0], [0], [1], [0, 0, 1, 1], [], []>} : vector<16x128xbf16>, vector<128x128xbf16>, vector<16x128xf32> -> vector<16x128xf32>
    %c0_60 = arith.constant 0 : index
    %c0_61 = arith.constant 0 : index
    %c0_62 = arith.constant 0 : index
    %134 = vector.load %arg19[%c0_60, %c0_61, %c0_62] : memref<1x1x128xf32, #tpu.memory_space<vmem>>, vector<1x1x128xf32>
    %135 = vector.shape_cast %134 : vector<1x1x128xf32> to vector<1x128xf32>
    %136 = vector.broadcast %135 : vector<1x128xf32> to vector<16x128xf32>
    %137 = arith.addf %133, %136 : vector<16x128xf32>
    %138 = arith.addf %3, %137 : vector<16x128xf32>
    %139 = arith.mulf %138, %138 : vector<16x128xf32>
    %cst_63 = arith.constant dense<0.000000e+00> : vector<16xf32>
    %140 = vector.multi_reduction <add>, %139, %cst_63 [1] : vector<16x128xf32> to vector<16xf32>
    %141 = vector.shape_cast %140 : vector<16xf32> to vector<16x1xf32>
    %cst_64 = arith.constant 1.280000e+02 : f32
    %142 = vector.broadcast %cst_64 : f32 to vector<16x1xf32>
    %143 = arith.divf %141, %142 : vector<16x1xf32>
    %cst_65 = arith.constant 9.99999997E-7 : f32
    %144 = vector.broadcast %cst_65 : f32 to vector<16x1xf32>
    %145 = arith.addf %143, %144 : vector<16x1xf32>
    %146 = math.rsqrt %145 : vector<16x1xf32>
    %147 = vector.broadcast %146 : vector<16x1xf32> to vector<16x128xf32>
    %148 = arith.mulf %138, %147 : vector<16x128xf32>
    %c0_66 = arith.constant 0 : index
    %c0_67 = arith.constant 0 : index
    %c0_68 = arith.constant 0 : index
    %149 = vector.load %arg20[%c0_66, %c0_67, %c0_68] : memref<1x1x128xf32, #tpu.memory_space<vmem>>, vector<1x1x128xf32>
    %150 = vector.shape_cast %149 : vector<1x1x128xf32> to vector<1x128xf32>
    %151 = vector.broadcast %150 : vector<1x128xf32> to vector<16x128xf32>
    %152 = arith.mulf %148, %151 : vector<16x128xf32>
    %153 = arith.truncf %152 : vector<16x128xf32> to vector<16x128xbf16>
    %c0_69 = arith.constant 0 : index
    %c0_70 = arith.constant 0 : index
    %c0_71 = arith.constant 0 : index
    %154 = vector.load %arg21[%c0_69, %c0_70, %c0_71] : memref<1x128x128xbf16, #tpu.memory_space<vmem>>, vector<1x128x128xbf16>
    %155 = vector.shape_cast %154 : vector<1x128x128xbf16> to vector<128x128xbf16>
    %cst_72 = arith.constant dense<0.000000e+00> : vector<16x128xf32>
    %156 = tpu.matmul %153, %155, %cst_72 {dimension_numbers = #tpu.dot_dimension_numbers<[1], [0], [0], [1], [0, 0, 1, 1], [], []>} : vector<16x128xbf16>, vector<128x128xbf16>, vector<16x128xf32> -> vector<16x128xf32>
    %c0_73 = arith.constant 0 : index
    %c0_74 = arith.constant 0 : index
    %c0_75 = arith.constant 0 : index
    %157 = vector.load %arg25[%c0_73, %c0_74, %c0_75] : memref<1x1x128xf32, #tpu.memory_space<vmem>>, vector<1x1x128xf32>
    %158 = vector.shape_cast %157 : vector<1x1x128xf32> to vector<1x128xf32>
    %159 = vector.broadcast %158 : vector<1x128xf32> to vector<16x128xf32>
    %160 = arith.addf %156, %159 : vector<16x128xf32>
    %c127_i32_76 = arith.constant 127 : i32
    %161 = tpu.dynamic_rotate %160 by %c127_i32_76 dim 1 : vector<16x128xf32>, i32 -> vector<16x128xf32>
    %c1_i32_77 = arith.constant 1 : i32
    %162 = tpu.dynamic_rotate %160 by %c1_i32_77 dim 1 : vector<16x128xf32>, i32 -> vector<16x128xf32>
    %163 = vector.shape_cast %160 : vector<16x128xf32> to vector<2x8x128xf32>
    %164 = vector.shape_cast %7 : vector<8x128xf32> to vector<1x8x128xf32>
    %165 = vector.broadcast %164 : vector<1x8x128xf32> to vector<2x8x128xf32>
    %166 = arith.mulf %163, %165 : vector<2x8x128xf32>
    %167 = vector.shape_cast %161 : vector<16x128xf32> to vector<2x8x128xf32>
    %168 = vector.shape_cast %8 : vector<8x128xf32> to vector<1x8x128xf32>
    %169 = vector.broadcast %168 : vector<1x8x128xf32> to vector<2x8x128xf32>
    %170 = arith.mulf %167, %169 : vector<2x8x128xf32>
    %171 = arith.addf %166, %170 : vector<2x8x128xf32>
    %172 = vector.shape_cast %162 : vector<16x128xf32> to vector<2x8x128xf32>
    %173 = vector.shape_cast %9 : vector<8x128xf32> to vector<1x8x128xf32>
    %174 = vector.broadcast %173 : vector<1x8x128xf32> to vector<2x8x128xf32>
    %175 = arith.mulf %172, %174 : vector<2x8x128xf32>
    %176 = arith.addf %171, %175 : vector<2x8x128xf32>
    %c0_78 = arith.constant 0 : index
    %c0_79 = arith.constant 0 : index
    %c0_80 = arith.constant 0 : index
    %177 = vector.load %arg22[%c0_78, %c0_79, %c0_80] : memref<1x128x128xbf16, #tpu.memory_space<vmem>>, vector<1x128x128xbf16>
    %178 = vector.shape_cast %177 : vector<1x128x128xbf16> to vector<128x128xbf16>
    %cst_81 = arith.constant dense<0.000000e+00> : vector<24x128xf32>
    %179 = tpu.matmul %4, %178, %cst_81 {dimension_numbers = #tpu.dot_dimension_numbers<[1], [0], [0], [1], [0, 0, 1, 1], [], []>} : vector<24x128xbf16>, vector<128x128xbf16>, vector<24x128xf32> -> vector<24x128xf32>
    %c0_82 = arith.constant 0 : index
    %c0_83 = arith.constant 0 : index
    %c0_84 = arith.constant 0 : index
    %180 = vector.load %arg26[%c0_82, %c0_83, %c0_84] : memref<1x1x128xf32, #tpu.memory_space<vmem>>, vector<1x1x128xf32>
    %181 = vector.shape_cast %180 : vector<1x1x128xf32> to vector<1x128xf32>
    %182 = vector.broadcast %181 : vector<1x128xf32> to vector<24x128xf32>
    %183 = arith.addf %179, %182 : vector<24x128xf32>
    %c127_i32_85 = arith.constant 127 : i32
    %184 = tpu.dynamic_rotate %183 by %c127_i32_85 dim 1 : vector<24x128xf32>, i32 -> vector<24x128xf32>
    %c1_i32_86 = arith.constant 1 : i32
    %185 = tpu.dynamic_rotate %183 by %c1_i32_86 dim 1 : vector<24x128xf32>, i32 -> vector<24x128xf32>
    %186 = vector.shape_cast %183 : vector<24x128xf32> to vector<2x12x128xf32>
    %187 = vector.shape_cast %10 : vector<12x128xf32> to vector<1x12x128xf32>
    %188 = vector.broadcast %187 : vector<1x12x128xf32> to vector<2x12x128xf32>
    %189 = arith.mulf %186, %188 : vector<2x12x128xf32>
    %190 = vector.shape_cast %184 : vector<24x128xf32> to vector<2x12x128xf32>
    %191 = vector.shape_cast %11 : vector<12x128xf32> to vector<1x12x128xf32>
    %192 = vector.broadcast %191 : vector<1x12x128xf32> to vector<2x12x128xf32>
    %193 = arith.mulf %190, %192 : vector<2x12x128xf32>
    %194 = arith.addf %189, %193 : vector<2x12x128xf32>
    %195 = vector.shape_cast %185 : vector<24x128xf32> to vector<2x12x128xf32>
    %196 = vector.shape_cast %12 : vector<12x128xf32> to vector<1x12x128xf32>
    %197 = vector.broadcast %196 : vector<1x12x128xf32> to vector<2x12x128xf32>
    %198 = arith.mulf %195, %197 : vector<2x12x128xf32>
    %199 = arith.addf %194, %198 : vector<2x12x128xf32>
    %c0_87 = arith.constant 0 : index
    %c0_88 = arith.constant 0 : index
    %c0_89 = arith.constant 0 : index
    %200 = vector.load %arg23[%c0_87, %c0_88, %c0_89] : memref<1x128x128xbf16, #tpu.memory_space<vmem>>, vector<1x128x128xbf16>
    %201 = vector.shape_cast %200 : vector<1x128x128xbf16> to vector<128x128xbf16>
    %cst_90 = arith.constant dense<0.000000e+00> : vector<24x128xf32>
    %202 = tpu.matmul %4, %201, %cst_90 {dimension_numbers = #tpu.dot_dimension_numbers<[1], [0], [0], [1], [0, 0, 1, 1], [], []>} : vector<24x128xbf16>, vector<128x128xbf16>, vector<24x128xf32> -> vector<24x128xf32>
    %c0_91 = arith.constant 0 : index
    %c0_92 = arith.constant 0 : index
    %c0_93 = arith.constant 0 : index
    %203 = vector.load %arg27[%c0_91, %c0_92, %c0_93] : memref<1x1x128xf32, #tpu.memory_space<vmem>>, vector<1x1x128xf32>
    %204 = vector.shape_cast %203 : vector<1x1x128xf32> to vector<1x128xf32>
    %205 = vector.broadcast %204 : vector<1x128xf32> to vector<24x128xf32>
    %206 = arith.addf %202, %205 : vector<24x128xf32>
    %207 = vector.shape_cast %206 : vector<24x128xf32> to vector<2x12x128xf32>
    %208 = vector.extract_strided_slice %176 {offsets = [0, 0, 0], sizes = [2, 8, 32], strides = [1, 1, 1]} : vector<2x8x128xf32> to vector<2x8x32xf32>
    %209 = vector.extract_strided_slice %176 {offsets = [0, 0, 32], sizes = [2, 8, 32], strides = [1, 1, 1]} : vector<2x8x128xf32> to vector<2x8x32xf32>
    %210 = vector.extract_strided_slice %176 {offsets = [0, 0, 64], sizes = [2, 8, 32], strides = [1, 1, 1]} : vector<2x8x128xf32> to vector<2x8x32xf32>
    %211 = vector.extract_strided_slice %176 {offsets = [0, 0, 96], sizes = [2, 8, 32], strides = [1, 1, 1]} : vector<2x8x128xf32> to vector<2x8x32xf32>
    %212 = tpu.concatenate %208, %209, %210, %211 in 0 : vector<2x8x32xf32>, vector<2x8x32xf32>, vector<2x8x32xf32>, vector<2x8x32xf32> -> vector<8x8x32xf32>
    %213 = arith.truncf %212 : vector<8x8x32xf32> to vector<8x8x32xbf16>
    %214 = vector.extract_strided_slice %199 {offsets = [0, 0, 0], sizes = [2, 12, 32], strides = [1, 1, 1]} : vector<2x12x128xf32> to vector<2x12x32xf32>
    %215 = vector.extract_strided_slice %199 {offsets = [0, 0, 32], sizes = [2, 12, 32], strides = [1, 1, 1]} : vector<2x12x128xf32> to vector<2x12x32xf32>
    %216 = vector.extract_strided_slice %199 {offsets = [0, 0, 64], sizes = [2, 12, 32], strides = [1, 1, 1]} : vector<2x12x128xf32> to vector<2x12x32xf32>
    %217 = vector.extract_strided_slice %199 {offsets = [0, 0, 96], sizes = [2, 12, 32], strides = [1, 1, 1]} : vector<2x12x128xf32> to vector<2x12x32xf32>
    %218 = tpu.concatenate %214, %215, %216, %217 in 0 : vector<2x12x32xf32>, vector<2x12x32xf32>, vector<2x12x32xf32>, vector<2x12x32xf32> -> vector<8x12x32xf32>
    %219 = arith.truncf %218 : vector<8x12x32xf32> to vector<8x12x32xbf16>
    %220 = vector.extract_strided_slice %207 {offsets = [0, 0, 0], sizes = [2, 12, 32], strides = [1, 1, 1]} : vector<2x12x128xf32> to vector<2x12x32xf32>
    %221 = vector.extract_strided_slice %207 {offsets = [0, 0, 32], sizes = [2, 12, 32], strides = [1, 1, 1]} : vector<2x12x128xf32> to vector<2x12x32xf32>
    %222 = vector.extract_strided_slice %207 {offsets = [0, 0, 64], sizes = [2, 12, 32], strides = [1, 1, 1]} : vector<2x12x128xf32> to vector<2x12x32xf32>
    %223 = vector.extract_strided_slice %207 {offsets = [0, 0, 96], sizes = [2, 12, 32], strides = [1, 1, 1]} : vector<2x12x128xf32> to vector<2x12x32xf32>
    %224 = tpu.concatenate %220, %221, %222, %223 in 0 : vector<2x12x32xf32>, vector<2x12x32xf32>, vector<2x12x32xf32>, vector<2x12x32xf32> -> vector<8x12x32xf32>
    %225 = arith.truncf %224 : vector<8x12x32xf32> to vector<8x12x32xbf16>
    "tpu.trace_start"() <{level = 10 : i32, message = "bqd,bkd->bqk"}> : () -> ()
    %cst_94 = arith.constant dense<0.000000e+00> : vector<8x8x12xf32>
    %226 = tpu.matmul %213, %219, %cst_94 {dimension_numbers = #tpu.dot_dimension_numbers<[2], [2], [1], [1], [0, 0, 0, 1, 1, 1], [0], [0]>} : vector<8x8x32xbf16>, vector<8x12x32xbf16>, vector<8x8x12xf32> -> vector<8x8x12xf32>
    "tpu.trace_stop"() : () -> ()
    %227 = vector.broadcast %6 : vector<8x1x12xf32> to vector<8x8x12xf32>
    %228 = arith.addf %226, %227 : vector<8x8x12xf32>
    %cst_95 = arith.constant dense<0xFF800000> : vector<8x8xf32>
    %229 = vector.multi_reduction <maximumf>, %228, %cst_95 [2] : vector<8x8x12xf32> to vector<8x8xf32>
    %230 = vector.shape_cast %229 : vector<8x8xf32> to vector<8x8x1xf32>
    %231 = vector.broadcast %230 : vector<8x8x1xf32> to vector<8x8x12xf32>
    %232 = arith.subf %228, %231 : vector<8x8x12xf32>
    %233 = math.exp %232 : vector<8x8x12xf32>
    %cst_96 = arith.constant dense<0.000000e+00> : vector<8x8xf32>
    %234 = vector.multi_reduction <add>, %233, %cst_96 [2] : vector<8x8x12xf32> to vector<8x8xf32>
    %235 = vector.shape_cast %234 : vector<8x8xf32> to vector<8x8x1xf32>
    %236 = tpu.reciprocal %235 {approx = true} : vector<8x8x1xf32> -> vector<8x8x1xf32>
    %237 = vector.broadcast %236 : vector<8x8x1xf32> to vector<8x8x12xf32>
    %238 = arith.mulf %233, %237 : vector<8x8x12xf32>
    %239 = arith.truncf %238 : vector<8x8x12xf32> to vector<8x8x12xbf16>
    "tpu.trace_start"() <{level = 10 : i32, message = "bqk,bkd->bqd"}> : () -> ()
    %cst_97 = arith.constant dense<0.000000e+00> : vector<8x8x32xf32>
    %240 = tpu.matmul %239, %225, %cst_97 {dimension_numbers = #tpu.dot_dimension_numbers<[2], [1], [1], [2], [0, 0, 0, 1, 1, 2], [0], [0]>} : vector<8x8x12xbf16>, vector<8x12x32xbf16>, vector<8x8x32xf32> -> vector<8x8x32xf32>
    "tpu.trace_stop"() : () -> ()
    %241 = vector.extract_strided_slice %240 {offsets = [0, 0, 0], sizes = [2, 8, 32], strides = [1, 1, 1]} : vector<8x8x32xf32> to vector<2x8x32xf32>
    %242 = vector.extract_strided_slice %240 {offsets = [2, 0, 0], sizes = [2, 8, 32], strides = [1, 1, 1]} : vector<8x8x32xf32> to vector<2x8x32xf32>
    %243 = vector.extract_strided_slice %240 {offsets = [4, 0, 0], sizes = [2, 8, 32], strides = [1, 1, 1]} : vector<8x8x32xf32> to vector<2x8x32xf32>
    %244 = vector.extract_strided_slice %240 {offsets = [6, 0, 0], sizes = [2, 8, 32], strides = [1, 1, 1]} : vector<8x8x32xf32> to vector<2x8x32xf32>
    %245 = tpu.concatenate %241, %242, %243, %244 in 2 : vector<2x8x32xf32>, vector<2x8x32xf32>, vector<2x8x32xf32>, vector<2x8x32xf32> -> vector<2x8x128xf32>
    %246 = vector.shape_cast %245 : vector<2x8x128xf32> to vector<16x128xf32>
    %247 = arith.truncf %246 : vector<16x128xf32> to vector<16x128xbf16>
    %c0_98 = arith.constant 0 : index
    %c0_99 = arith.constant 0 : index
    %c0_100 = arith.constant 0 : index
    %248 = vector.load %arg24[%c0_98, %c0_99, %c0_100] : memref<1x128x128xbf16, #tpu.memory_space<vmem>>, vector<1x128x128xbf16>
    %249 = vector.shape_cast %248 : vector<1x128x128xbf16> to vector<128x128xbf16>
    %cst_101 = arith.constant dense<0.000000e+00> : vector<16x128xf32>
    %250 = tpu.matmul %247, %249, %cst_101 {dimension_numbers = #tpu.dot_dimension_numbers<[1], [0], [0], [1], [0, 0, 1, 1], [], []>} : vector<16x128xbf16>, vector<128x128xbf16>, vector<16x128xf32> -> vector<16x128xf32>
    %c0_102 = arith.constant 0 : index
    %c0_103 = arith.constant 0 : index
    %c0_104 = arith.constant 0 : index
    %251 = vector.load %arg28[%c0_102, %c0_103, %c0_104] : memref<1x1x128xf32, #tpu.memory_space<vmem>>, vector<1x1x128xf32>
    %252 = vector.shape_cast %251 : vector<1x1x128xf32> to vector<1x128xf32>
    %253 = vector.broadcast %252 : vector<1x128xf32> to vector<16x128xf32>
    %254 = arith.addf %250, %253 : vector<16x128xf32>
    %255 = arith.addf %138, %254 : vector<16x128xf32>
    %256 = arith.mulf %255, %255 : vector<16x128xf32>
    %cst_105 = arith.constant dense<0.000000e+00> : vector<16xf32>
    %257 = vector.multi_reduction <add>, %256, %cst_105 [1] : vector<16x128xf32> to vector<16xf32>
    %258 = vector.shape_cast %257 : vector<16xf32> to vector<16x1xf32>
    %cst_106 = arith.constant 1.280000e+02 : f32
    %259 = vector.broadcast %cst_106 : f32 to vector<16x1xf32>
    %260 = arith.divf %258, %259 : vector<16x1xf32>
    %cst_107 = arith.constant 9.99999997E-7 : f32
    %261 = vector.broadcast %cst_107 : f32 to vector<16x1xf32>
    %262 = arith.addf %260, %261 : vector<16x1xf32>
    %263 = math.rsqrt %262 : vector<16x1xf32>
    %264 = vector.broadcast %263 : vector<16x1xf32> to vector<16x128xf32>
    %265 = arith.mulf %255, %264 : vector<16x128xf32>
    %c0_108 = arith.constant 0 : index
    %c0_109 = arith.constant 0 : index
    %c0_110 = arith.constant 0 : index
    %266 = vector.load %arg29[%c0_108, %c0_109, %c0_110] : memref<1x1x128xf32, #tpu.memory_space<vmem>>, vector<1x1x128xf32>
    %267 = vector.shape_cast %266 : vector<1x1x128xf32> to vector<1x128xf32>
    %268 = vector.broadcast %267 : vector<1x128xf32> to vector<16x128xf32>
    %269 = arith.mulf %265, %268 : vector<16x128xf32>
    %270 = arith.truncf %269 : vector<16x128xf32> to vector<16x128xbf16>
    %c0_111 = arith.constant 0 : index
    %c0_112 = arith.constant 0 : index
    %c0_113 = arith.constant 0 : index
    %271 = vector.load %arg30[%c0_111, %c0_112, %c0_113] : memref<1x128x512xbf16, #tpu.memory_space<vmem>>, vector<1x128x512xbf16>
    %272 = vector.shape_cast %271 : vector<1x128x512xbf16> to vector<128x512xbf16>
    %cst_114 = arith.constant dense<0.000000e+00> : vector<16x512xf32>
    %273 = tpu.matmul %270, %272, %cst_114 {dimension_numbers = #tpu.dot_dimension_numbers<[1], [0], [0], [1], [0, 0, 1, 1], [], []>} : vector<16x128xbf16>, vector<128x512xbf16>, vector<16x512xf32> -> vector<16x512xf32>
    %c0_115 = arith.constant 0 : index
    %c0_116 = arith.constant 0 : index
    %c0_117 = arith.constant 0 : index
    %274 = vector.load %arg31[%c0_115, %c0_116, %c0_117] : memref<1x1x512xf32, #tpu.memory_space<vmem>>, vector<1x1x512xf32>
    %275 = vector.shape_cast %274 : vector<1x1x512xf32> to vector<1x512xf32>
    %276 = vector.broadcast %275 : vector<1x512xf32> to vector<16x512xf32>
    %277 = arith.addf %273, %276 : vector<16x512xf32>
    %278 = arith.mulf %277, %277 : vector<16x512xf32>
    %279 = arith.mulf %277, %278 : vector<16x512xf32>
    %cst_118 = arith.constant 4.471500e-02 : f32
    %280 = vector.broadcast %cst_118 : f32 to vector<16x512xf32>
    %281 = arith.mulf %280, %279 : vector<16x512xf32>
    %282 = arith.addf %277, %281 : vector<16x512xf32>
    %cst_119 = arith.constant 0.797884583 : f32
    %283 = vector.broadcast %cst_119 : f32 to vector<16x512xf32>
    %284 = arith.mulf %283, %282 : vector<16x512xf32>
    %285 = math.tanh %284 : vector<16x512xf32>
    %cst_120 = arith.constant 1.000000e+00 : f32
    %286 = vector.broadcast %cst_120 : f32 to vector<16x512xf32>
    %287 = arith.addf %286, %285 : vector<16x512xf32>
    %cst_121 = arith.constant 5.000000e-01 : f32
    %288 = vector.broadcast %cst_121 : f32 to vector<16x512xf32>
    %289 = arith.mulf %288, %287 : vector<16x512xf32>
    %290 = arith.mulf %277, %289 : vector<16x512xf32>
    %291 = arith.truncf %290 : vector<16x512xf32> to vector<16x512xbf16>
    %c0_122 = arith.constant 0 : index
    %c0_123 = arith.constant 0 : index
    %c0_124 = arith.constant 0 : index
    %292 = vector.load %arg32[%c0_122, %c0_123, %c0_124] : memref<1x512x128xbf16, #tpu.memory_space<vmem>>, vector<1x512x128xbf16>
    %293 = vector.shape_cast %292 : vector<1x512x128xbf16> to vector<512x128xbf16>
    %cst_125 = arith.constant dense<0.000000e+00> : vector<16x128xf32>
    %294 = tpu.matmul %291, %293, %cst_125 {dimension_numbers = #tpu.dot_dimension_numbers<[1], [0], [0], [1], [0, 0, 1, 1], [], []>} : vector<16x512xbf16>, vector<512x128xbf16>, vector<16x128xf32> -> vector<16x128xf32>
    %c0_126 = arith.constant 0 : index
    %c0_127 = arith.constant 0 : index
    %c0_128 = arith.constant 0 : index
    %295 = vector.load %arg33[%c0_126, %c0_127, %c0_128] : memref<1x1x128xf32, #tpu.memory_space<vmem>>, vector<1x1x128xf32>
    %296 = vector.shape_cast %295 : vector<1x1x128xf32> to vector<1x128xf32>
    %297 = vector.broadcast %296 : vector<1x128xf32> to vector<16x128xf32>
    %298 = arith.addf %294, %297 : vector<16x128xf32>
    %299 = arith.addf %255, %298 : vector<16x128xf32>
    %c0_129 = arith.constant 0 : index
    %c0_130 = arith.constant 0 : index
    %300 = vector.load %arg34[%c0_129, %c0_130] : memref<16x128xf32, #tpu.memory_space<vmem>>, vector<16x128xf32>
    tpu.vector_store %arg34[%c0_129, %c0_130], %299 {strides = array<i32>} : memref<16x128xf32, #tpu.memory_space<vmem>>, vector<16x128xf32>,
    return
  }
  func.func @transform_0(%arg0: i32) -> (i32, i32) {
    %c0_i32 = arith.constant 0 : i32
    %c0_i32_0 = arith.constant 0 : i32
    %c0_i32_1 = arith.constant 0 : i32
    return %c0_i32, %c0_i32_0 : i32, i32
  }
  func.func @transform_1(%arg0: i32) -> (i32, i32) {
    %c0_i32 = arith.constant 0 : i32
    %c0_i32_0 = arith.constant 0 : i32
    %c0_i32_1 = arith.constant 0 : i32
    return %c0_i32, %c0_i32_0 : i32, i32
  }
  func.func @transform_2(%arg0: i32) -> (i32, i32, i32) {
    %c0_i32 = arith.constant 0 : i32
    %c0_i32_0 = arith.constant 0 : i32
    %c0_i32_1 = arith.constant 0 : i32
    %c0_i32_2 = arith.constant 0 : i32
    return %c0_i32, %c0_i32_0, %c0_i32_1 : i32, i32, i32
  }
  func.func @transform_3(%arg0: i32) -> (i32, i32, i32) {
    %c0_i32 = arith.constant 0 : i32
    %c0_i32_0 = arith.constant 0 : i32
    %c0_i32_1 = arith.constant 0 : i32
    %c0_i32_2 = arith.constant 0 : i32
    return %c0_i32, %c0_i32_0, %c0_i32_1 : i32, i32, i32
  }
  func.func @transform_4(%arg0: i32) -> (i32, i32) {
    %c0_i32 = arith.constant 0 : i32
    %c0_i32_0 = arith.constant 0 : i32
    %c0_i32_1 = arith.constant 0 : i32
    return %c0_i32, %c0_i32_0 : i32, i32
  }
  func.func @transform_5(%arg0: i32) -> (i32, i32) {
    %c0_i32 = arith.constant 0 : i32
    %c0_i32_0 = arith.constant 0 : i32
    %c0_i32_1 = arith.constant 0 : i32
    return %c0_i32, %c0_i32_0 : i32, i32
  }
  func.func @transform_6(%arg0: i32) -> (i32, i32) {
    %c0_i32 = arith.constant 0 : i32
    %c0_i32_0 = arith.constant 0 : i32
    %c0_i32_1 = arith.constant 0 : i32
    return %c0_i32, %c0_i32_0 : i32, i32
  }
  func.func @transform_7(%arg0: i32) -> (i32, i32) {
    %c0_i32 = arith.constant 0 : i32
    %c0_i32_0 = arith.constant 0 : i32
    %c0_i32_1 = arith.constant 0 : i32
    return %c0_i32, %c0_i32_0 : i32, i32
  }
  func.func @transform_8(%arg0: i32) -> (i32, i32) {
    %c0_i32 = arith.constant 0 : i32
    %c0_i32_0 = arith.constant 0 : i32
    %c0_i32_1 = arith.constant 0 : i32
    return %c0_i32, %c0_i32_0 : i32, i32
  }
  func.func @transform_9(%arg0: i32) -> (i32, i32) {
    %c0_i32 = arith.constant 0 : i32
    %c0_i32_0 = arith.constant 0 : i32
    %c0_i32_1 = arith.constant 0 : i32
    return %c0_i32, %c0_i32_0 : i32, i32
  }
  func.func @transform_10(%arg0: i32) -> (i32, i32, i32) {
    %c0_i32 = arith.constant 0 : i32
    %c0_i32_0 = arith.constant 0 : i32
    %c0_i32_1 = arith.constant 0 : i32
    return %arg0, %c0_i32, %c0_i32_0 : i32, i32, i32
  }
  func.func @transform_11(%arg0: i32) -> (i32, i32, i32) {
    %c0_i32 = arith.constant 0 : i32
    %c0_i32_0 = arith.constant 0 : i32
    %c0_i32_1 = arith.constant 0 : i32
    return %arg0, %c0_i32, %c0_i32_0 : i32, i32, i32
  }
  func.func @transform_12(%arg0: i32) -> (i32, i32, i32) {
    %c0_i32 = arith.constant 0 : i32
    %c0_i32_0 = arith.constant 0 : i32
    %c0_i32_1 = arith.constant 0 : i32
    return %arg0, %c0_i32, %c0_i32_0 : i32, i32, i32
  }
  func.func @transform_13(%arg0: i32) -> (i32, i32, i32) {
    %c0_i32 = arith.constant 0 : i32
    %c0_i32_0 = arith.constant 0 : i32
    %c0_i32_1 = arith.constant 0 : i32
    return %arg0, %c0_i32, %c0_i32_0 : i32, i32, i32
  }
  func.func @transform_14(%arg0: i32) -> (i32, i32, i32) {
    %c0_i32 = arith.constant 0 : i32
    %c0_i32_0 = arith.constant 0 : i32
    %c0_i32_1 = arith.constant 0 : i32
    return %arg0, %c0_i32, %c0_i32_0 : i32, i32, i32
  }
  func.func @transform_15(%arg0: i32) -> (i32, i32, i32) {
    %c0_i32 = arith.constant 0 : i32
    %c0_i32_0 = arith.constant 0 : i32
    %c0_i32_1 = arith.constant 0 : i32
    return %arg0, %c0_i32, %c0_i32_0 : i32, i32, i32
  }
  func.func @transform_16(%arg0: i32) -> (i32, i32, i32) {
    %c0_i32 = arith.constant 0 : i32
    %c0_i32_0 = arith.constant 0 : i32
    %c0_i32_1 = arith.constant 0 : i32
    return %arg0, %c0_i32, %c0_i32_0 : i32, i32, i32
  }
  func.func @transform_17(%arg0: i32) -> (i32, i32, i32) {
    %c0_i32 = arith.constant 0 : i32
    %c0_i32_0 = arith.constant 0 : i32
    %c0_i32_1 = arith.constant 0 : i32
    return %arg0, %c0_i32, %c0_i32_0 : i32, i32, i32
  }
  func.func @transform_18(%arg0: i32) -> (i32, i32, i32) {
    %c0_i32 = arith.constant 0 : i32
    %c0_i32_0 = arith.constant 0 : i32
    %c0_i32_1 = arith.constant 0 : i32
    return %arg0, %c0_i32, %c0_i32_0 : i32, i32, i32
  }
  func.func @transform_19(%arg0: i32) -> (i32, i32, i32) {
    %c0_i32 = arith.constant 0 : i32
    %c0_i32_0 = arith.constant 0 : i32
    %c0_i32_1 = arith.constant 0 : i32
    return %arg0, %c0_i32, %c0_i32_0 : i32, i32, i32
  }
  func.func @transform_20(%arg0: i32) -> (i32, i32, i32) {
    %c0_i32 = arith.constant 0 : i32
    %c0_i32_0 = arith.constant 0 : i32
    %c0_i32_1 = arith.constant 0 : i32
    return %arg0, %c0_i32, %c0_i32_0 : i32, i32, i32
  }
  func.func @transform_21(%arg0: i32) -> (i32, i32, i32) {
    %c0_i32 = arith.constant 0 : i32
    %c0_i32_0 = arith.constant 0 : i32
    %c0_i32_1 = arith.constant 0 : i32
    return %arg0, %c0_i32, %c0_i32_0 : i32, i32, i32
  }
  func.func @transform_22(%arg0: i32) -> (i32, i32, i32) {
    %c0_i32 = arith.constant 0 : i32
    %c0_i32_0 = arith.constant 0 : i32
    %c0_i32_1 = arith.constant 0 : i32
    return %arg0, %c0_i32, %c0_i32_0 : i32, i32, i32
  }
  func.func @transform_23(%arg0: i32) -> (i32, i32, i32) {
    %c0_i32 = arith.constant 0 : i32
    %c0_i32_0 = arith.constant 0 : i32
    %c0_i32_1 = arith.constant 0 : i32
    return %arg0, %c0_i32, %c0_i32_0 : i32, i32, i32
  }
  func.func @transform_24(%arg0: i32) -> (i32, i32, i32) {
    %c0_i32 = arith.constant 0 : i32
    %c0_i32_0 = arith.constant 0 : i32
    %c0_i32_1 = arith.constant 0 : i32
    return %arg0, %c0_i32, %c0_i32_0 : i32, i32, i32
  }
  func.func @transform_25(%arg0: i32) -> (i32, i32, i32) {
    %c0_i32 = arith.constant 0 : i32
    %c0_i32_0 = arith.constant 0 : i32
    %c0_i32_1 = arith.constant 0 : i32
    return %arg0, %c0_i32, %c0_i32_0 : i32, i32, i32
  }
  func.func @transform_26(%arg0: i32) -> (i32, i32, i32) {
    %c0_i32 = arith.constant 0 : i32
    %c0_i32_0 = arith.constant 0 : i32
    %c0_i32_1 = arith.constant 0 : i32
    return %arg0, %c0_i32, %c0_i32_0 : i32, i32, i32
  }
  func.func @transform_27(%arg0: i32) -> (i32, i32, i32) {
    %c0_i32 = arith.constant 0 : i32
    %c0_i32_0 = arith.constant 0 : i32
    %c0_i32_1 = arith.constant 0 : i32
    return %arg0, %c0_i32, %c0_i32_0 : i32, i32, i32
  }
  func.func @transform_28(%arg0: i32) -> (i32, i32, i32) {
    %c0_i32 = arith.constant 0 : i32
    %c0_i32_0 = arith.constant 0 : i32
    %c0_i32_1 = arith.constant 0 : i32
    return %arg0, %c0_i32, %c0_i32_0 : i32, i32, i32
  }
  func.func @transform_29(%arg0: i32) -> (i32, i32, i32) {
    %c0_i32 = arith.constant 0 : i32
    %c0_i32_0 = arith.constant 0 : i32
    %c0_i32_1 = arith.constant 0 : i32
    return %arg0, %c0_i32, %c0_i32_0 : i32, i32, i32
  }
  func.func @transform_30(%arg0: i32) -> (i32, i32, i32) {
    %c0_i32 = arith.constant 0 : i32
    %c0_i32_0 = arith.constant 0 : i32
    %c0_i32_1 = arith.constant 0 : i32
    return %arg0, %c0_i32, %c0_i32_0 : i32, i32, i32
  }
  func.func @transform_31(%arg0: i32) -> (i32, i32, i32) {
    %c0_i32 = arith.constant 0 : i32
    %c0_i32_0 = arith.constant 0 : i32
    %c0_i32_1 = arith.constant 0 : i32
    return %arg0, %c0_i32, %c0_i32_0 : i32, i32, i32
  }
  func.func @transform_32(%arg0: i32) -> (i32, i32, i32) {
    %c0_i32 = arith.constant 0 : i32
    %c0_i32_0 = arith.constant 0 : i32
    %c0_i32_1 = arith.constant 0 : i32
    return %arg0, %c0_i32, %c0_i32_0 : i32, i32, i32
  }
  func.func @transform_33(%arg0: i32) -> (i32, i32) {
    %c0_i32 = arith.constant 0 : i32
    %c0_i32_0 = arith.constant 0 : i32
    %c0_i32_1 = arith.constant 0 : i32
    return %c0_i32, %c0_i32_0 : i32, i32
  }
}

</mosaic_0001>

<llo_original>
// kernel: tile.41
$region0: #{tile.41}
  %s0 = inlined_call_operand.vmem [shape: f32[12,4,32], index: 0, kind: input, shape index: {}]
  %s1 = inlined_call_operand.vmem [shape: f32[12,128], index: 1, kind: output, shape index: {}]
  $region1: #{tile.41} parent=0
    #allocation0 [shape = 'u8[49152]{0}', space=vmem, size = 0xc000, scoped, tag = 'scoped mem for input reshape']
    %s3 = sshll.u32 1, 4
    %s4 = ssub.s32 %s3, 1
    %s5 = smul.addr 4, 11
    %s6 = scalar_lea.vmem %s0, %s5
    %v7 = vld [vmem:[%s6] sm:%s4]
    %s8 = scalar_lea.vmem [#allocation0], 88
    %9 = vst [vmem:[%s8] sm:%s4] %v7
    %s10 = smul.addr 4, 10
    %s11 = scalar_lea.vmem %s0, %s10
    %v12 = vld [vmem:[%s11] sm:%s4]
    %s13 = scalar_lea.vmem [#allocation0], 80
    %14 = vst [vmem:[%s13] sm:%s4] %v12
    %s15 = smul.addr 4, 9
    %s16 = scalar_lea.vmem %s0, %s15
    %v17 = vld [vmem:[%s16] sm:%s4]
    %s18 = scalar_lea.vmem [#allocation0], 72
    %19 = vst [vmem:[%s18] sm:%s4] %v17
    %s20 = smul.addr 4, 8
    %s21 = scalar_lea.vmem %s0, %s20
    %v22 = vld [vmem:[%s21] sm:%s4]
    %s23 = scalar_lea.vmem [#allocation0], 64
    %24 = vst [vmem:[%s23] sm:%s4] %v22
    %s25 = smul.addr 4, 7
    %s26 = scalar_lea.vmem %s0, %s25
    %v27 = vld [vmem:[%s26] sm:%s4]
    %s28 = scalar_lea.vmem [#allocation0], 56
    %29 = vst [vmem:[%s28] sm:%s4] %v27
    %s30 = smul.addr 4, 6
    %s31 = scalar_lea.vmem %s0, %s30
    %v32 = vld [vmem:[%s31] sm:%s4]
    %s33 = scalar_lea.vmem [#allocation0], 48
    %34 = vst [vmem:[%s33] sm:%s4] %v32
    %s35 = smul.addr 4, 5
    %s36 = scalar_lea.vmem %s0, %s35
    %v37 = vld [vmem:[%s36] sm:%s4]
    %s38 = scalar_lea.vmem [#allocation0], 40
    %39 = vst [vmem:[%s38] sm:%s4] %v37
    %s40 = smul.addr 4, 4
    %s41 = scalar_lea.vmem %s0, %s40
    %v42 = vld [vmem:[%s41] sm:%s4]
    %s43 = scalar_lea.vmem [#allocation0], 32
    %44 = vst [vmem:[%s43] sm:%s4] %v42
    %s45 = smul.addr 4, 3
    %s46 = scalar_lea.vmem %s0, %s45
    %v47 = vld [vmem:[%s46] sm:%s4]
    %s48 = scalar_lea.vmem [#allocation0], 24
    %49 = vst [vmem:[%s48] sm:%s4] %v47
    %s50 = smul.addr 4, 2
    %s51 = scalar_lea.vmem %s0, %s50
    %v52 = vld [vmem:[%s51] sm:%s4]
    %s53 = scalar_lea.vmem [#allocation0], 16
    %54 = vst [vmem:[%s53] sm:%s4] %v52
    %s55 = scalar_lea.vmem %s0, 4
    %v56 = vld [vmem:[%s55] sm:%s4]
    %s57 = scalar_lea.vmem [#allocation0], 8
    %58 = vst [vmem:[%s57] sm:%s4] %v56
    %v59 = vld [vmem:[%s0] sm:%s4]
    %60 = vst [vmem:[#allocation0] sm:%s4] %v59
    %v61 = vld [vmem:[#allocation0] ss:$8 sm:$0xf]
    %v62 = vld [vmem:[#allocation0] ss:$8 sm:$0xf0]
    %vm63 = vcmask 1047556
    %v64 = vsel %vm63, %v62, %v61
    %vm65 = vcmask 261120
    %66 = vst.msk [vmem:[%s1] sm:$0xff] %vm65, %v64
    %s67 = scalar_lea.vmem [#allocation0], 64
    %v68 = vld [vmem:[%s67] ss:$8 sm:$0xf]
    %vm69 = vcmask 261120
    %s70 = scalar_lea.vmem %s1, 8
    %71 = vst.msk [vmem:[%s70] sm:$0xf] %vm69, %v68
    %s72 = scalar_lea.vmem [#allocation0], 3
    %v73 = vld [vmem:[%s72] ss:$8 sm:$0xf]
    %s74 = scalar_lea.vmem [#allocation0], 3
    %v75 = vld [vmem:[%s74] ss:$8 sm:$0xf0]
    %vm76 = vcmask 1047556
    %v77 = vsel %vm76, %v75, %v73
    %78 = vrot.lane.b32.xlu0 %v77, 96
    %v79 = vpop.permute.xlu0 %78
    %vm80 = vcmask 1048320
    %81 = vst.msk [vmem:[%s1] sm:$0xff] %vm80, %v79
    %s82 = scalar_lea.vmem [#allocation0], 67
    %v83 = vld [vmem:[%s82] ss:$8 sm:$0xf]
    %84 = vrot.lane.b32.xlu0 %v83, 96
    %v85 = vpop.permute.xlu0 %84
    %vm86 = vcmask 1048320
    %s87 = scalar_lea.vmem %s1, 8
    %88 = vst.msk [vmem:[%s87] sm:$0xf] %vm86, %v85
    %s89 = scalar_lea.vmem [#allocation0], 2
    %v90 = vld [vmem:[%s89] ss:$8 sm:$0xf]
    %s91 = scalar_lea.vmem [#allocation0], 2
    %v92 = vld [vmem:[%s91] ss:$8 sm:$0xf0]
    %vm93 = vcmask 1047556
    %v94 = vsel %vm93, %v92, %v90
    %95 = vrot.lane.b32.xlu0 %v94, 64
    %v96 = vpop.permute.xlu0 %95
    %vm97 = vcmask 785920
    %98 = vst.msk [vmem:[%s1] sm:$0xff] %vm97, %v96
    %s99 = scalar_lea.vmem [#allocation0], 66
    %v100 = vld [vmem:[%s99] ss:$8 sm:$0xf]
    %101 = vrot.lane.b32.xlu0 %v100, 64
    %v102 = vpop.permute.xlu0 %101
    %vm103 = vcmask 785920
    %s104 = scalar_lea.vmem %s1, 8
    %105 = vst.msk [vmem:[%s104] sm:$0xf] %vm103, %v102
    %s106 = scalar_lea.vmem [#allocation0], 1
    %v107 = vld [vmem:[%s106] ss:$8 sm:$0xf]
    %s108 = scalar_lea.vmem [#allocation0], 1
    %v109 = vld [vmem:[%s108] ss:$8 sm:$0xf0]
    %vm110 = vcmask 1047556
    %v111 = vsel %vm110, %v109, %v107
    %112 = vrot.lane.b32.xlu0 %v111, 32
    %v113 = vpop.permute.xlu0 %112
    %vm114 = vcmask 523520
    %115 = vst.msk [vmem:[%s1] sm:$0xff] %vm114, %v113
    %s116 = scalar_lea.vmem [#allocation0], 65
    %v117 = vld [vmem:[%s116] ss:$8 sm:$0xf]
    %118 = vrot.lane.b32.xlu0 %v117, 32
    %v119 = vpop.permute.xlu0 %118
    %vm120 = vcmask 523520
    %s121 = scalar_lea.vmem %s1, 8
    %122 = vst.msk [vmem:[%s121] sm:$0xf] %vm120, %v119

// kernel: tile.33
$region0: #{tile.33}
  %s0 = inlined_call_operand.vmem [shape: f32[8,4,32], index: 0, kind: input, shape index: {}]
  %s1 = inlined_call_operand.vmem [shape: f32[8,128], index: 1, kind: output, shape index: {}]
  $region1: #{tile.33} parent=0
    #allocation0 [shape = 'u8[32768]{0}', space=vmem, size = 0x8000, scoped, tag = 'scoped mem for input reshape']
    %s3 = sshll.u32 1, 4
    %s4 = ssub.s32 %s3, 1
    %s5 = smul.addr 4, 7
    %s6 = scalar_lea.vmem %s0, %s5
    %v7 = vld [vmem:[%s6] sm:%s4]
    %s8 = scalar_lea.vmem [#allocation0], 56
    %9 = vst [vmem:[%s8] sm:%s4] %v7
    %s10 = smul.addr 4, 6
    %s11 = scalar_lea.vmem %s0, %s10
    %v12 = vld [vmem:[%s11] sm:%s4]
    %s13 = scalar_lea.vmem [#allocation0], 48
    %14 = vst [vmem:[%s13] sm:%s4] %v12
    %s15 = smul.addr 4, 5
    %s16 = scalar_lea.vmem %s0, %s15
    %v17 = vld [vmem:[%s16] sm:%s4]
    %s18 = scalar_lea.vmem [#allocation0], 40
    %19 = vst [vmem:[%s18] sm:%s4] %v17
    %s20 = smul.addr 4, 4
    %s21 = scalar_lea.vmem %s0, %s20
    %v22 = vld [vmem:[%s21] sm:%s4]
    %s23 = scalar_lea.vmem [#allocation0], 32
    %24 = vst [vmem:[%s23] sm:%s4] %v22
    %s25 = smul.addr 4, 3
    %s26 = scalar_lea.vmem %s0, %s25
    %v27 = vld [vmem:[%s26] sm:%s4]
    %s28 = scalar_lea.vmem [#allocation0], 24
    %29 = vst [vmem:[%s28] sm:%s4] %v27
    %s30 = smul.addr 4, 2
    %s31 = scalar_lea.vmem %s0, %s30
    %v32 = vld [vmem:[%s31] sm:%s4]
    %s33 = scalar_lea.vmem [#allocation0], 16
    %34 = vst [vmem:[%s33] sm:%s4] %v32
    %s35 = scalar_lea.vmem %s0, 4
    %v36 = vld [vmem:[%s35] sm:%s4]
    %s37 = scalar_lea.vmem [#allocation0], 8
    %38 = vst [vmem:[%s37] sm:%s4] %v36
    %v39 = vld [vmem:[%s0] sm:%s4]
    %40 = vst [vmem:[#allocation0] sm:%s4] %v39
    %v41 = vld [vmem:[#allocation0] ss:$8 sm:$0xf]
    %v42 = vld [vmem:[#allocation0] ss:$8 sm:$0xf0]
    %vm43 = vcmask 1047556
    %v44 = vsel %vm43, %v42, %v41
    %vm45 = vcmask 261120
    %46 = vst.msk [vmem:[%s1] sm:$0xff] %vm45, %v44
    %s47 = scalar_lea.vmem [#allocation0], 3
    %v48 = vld [vmem:[%s47] ss:$8 sm:$0xf]
    %s49 = scalar_lea.vmem [#allocation0], 3
    %v50 = vld [vmem:[%s49] ss:$8 sm:$0xf0]
    %vm51 = vcmask 1047556
    %v52 = vsel %vm51, %v50, %v48
    %53 = vrot.lane.b32.xlu0 %v52, 96
    %v54 = vpop.permute.xlu0 %53
    %vm55 = vcmask 1048320
    %56 = vst.msk [vmem:[%s1] sm:$0xff] %vm55, %v54
    %s57 = scalar_lea.vmem [#allocation0], 2
    %v58 = vld [vmem:[%s57] ss:$8 sm:$0xf]
    %s59 = scalar_lea.vmem [#allocation0], 2
    %v60 = vld [vmem:[%s59] ss:$8 sm:$0xf0]
    %vm61 = vcmask 1047556
    %v62 = vsel %vm61, %v60, %v58
    %63 = vrot.lane.b32.xlu0 %v62, 64
    %v64 = vpop.permute.xlu0 %63
    %vm65 = vcmask 785920
    %66 = vst.msk [vmem:[%s1] sm:$0xff] %vm65, %v64
    %s67 = scalar_lea.vmem [#allocation0], 1
    %v68 = vld [vmem:[%s67] ss:$8 sm:$0xf]
    %s69 = scalar_lea.vmem [#allocation0], 1
    %v70 = vld [vmem:[%s69] ss:$8 sm:$0xf0]
    %vm71 = vcmask 1047556
    %v72 = vsel %vm71, %v70, %v68
    %73 = vrot.lane.b32.xlu0 %v72, 32
    %v74 = vpop.permute.xlu0 %73
    %vm75 = vcmask 523520
    %76 = vst.msk [vmem:[%s1] sm:$0xff] %vm75, %v74

// kernel: t5_decoder_forward.1
$region0: #{t5_decoder_forward.1}
  #allocation0 [shape = 'u32[]', space=smem, size = 0x4, offset = 0x4, fixed_abs, tag = 'smem constant byte address 0x4 - core index']
  #allocation1 [shape = 'u32[144,128]{1,0:T(1,128)}', space=vmem, size = 0x12000, scoped, tag = 'internal scratch']
  %s0 = inlined_call_operand.smem [shape: u32[34], index: -1, kind: input, shape index: {}]
  %s1 = sld [smem:[%s0]]
  %s2 = scalar_lea.smem %s0, 1
  %s3 = sld [smem:[%s2]]
  %s4 = scalar_lea.smem %s0, 2
  %s5 = sld [smem:[%s4]]
  %s6 = scalar_lea.smem %s0, 3
  %s7 = sld [smem:[%s6]]
  %s8 = scalar_lea.smem %s0, 4
  %s9 = sld [smem:[%s8]]
  %s10 = scalar_lea.smem %s0, 5
  %s11 = sld [smem:[%s10]]
  %s12 = scalar_lea.smem %s0, 6
  %s13 = sld [smem:[%s12]]
  %s14 = scalar_lea.smem %s0, 7
  %s15 = sld [smem:[%s14]]
  %s16 = scalar_lea.smem %s0, 8
  %s17 = sld [smem:[%s16]]
  %s18 = scalar_lea.smem %s0, 9
  %s19 = sld [smem:[%s18]]
  %s20 = scalar_lea.smem %s0, 10
  %s21 = sld [smem:[%s20]]
  %s22 = scalar_lea.smem %s0, 11
  %s23 = sld [smem:[%s22]]
  %s24 = scalar_lea.smem %s0, 12
  %s25 = sld [smem:[%s24]]
  %s26 = scalar_lea.smem %s0, 13
  %s27 = sld [smem:[%s26]]
  %s28 = scalar_lea.smem %s0, 14
  %s29 = sld [smem:[%s28]]
  %s30 = scalar_lea.smem %s0, 15
  %s31 = sld [smem:[%s30]]
  %s32 = scalar_lea.smem %s0, 16
  %s33 = sld [smem:[%s32]]
  %s34 = scalar_lea.smem %s0, 17
  %s35 = sld [smem:[%s34]]
  %s36 = scalar_lea.smem %s0, 18
  %s37 = sld [smem:[%s36]]
  %s38 = scalar_lea.smem %s0, 19
  %s39 = sld [smem:[%s38]]
  %s40 = scalar_lea.smem %s0, 20
  %s41 = sld [smem:[%s40]]
  %s42 = scalar_lea.smem %s0, 21
  %s43 = sld [smem:[%s42]]
  %s44 = scalar_lea.smem %s0, 22
  %s45 = sld [smem:[%s44]]
  %s46 = scalar_lea.smem %s0, 23
  %s47 = sld [smem:[%s46]]
  %s48 = scalar_lea.smem %s0, 24
  %s49 = sld [smem:[%s48]]
  %s50 = scalar_lea.smem %s0, 25
  %s51 = sld [smem:[%s50]]
  %s52 = scalar_lea.smem %s0, 26
  %s53 = sld [smem:[%s52]]
  %s54 = scalar_lea.smem %s0, 27
  %s55 = sld [smem:[%s54]]
  %s56 = scalar_lea.smem %s0, 28
  %s57 = sld [smem:[%s56]]
  %s58 = scalar_lea.smem %s0, 29
  %s59 = sld [smem:[%s58]]
  %s60 = scalar_lea.smem %s0, 30
  %s61 = sld [smem:[%s60]]
  %s62 = scalar_lea.smem %s0, 31
  %s63 = sld [smem:[%s62]]
  %s64 = scalar_lea.smem %s0, 32
  %s65 = sld [smem:[%s64]]
  %s66 = scalar_lea.smem %s0, 33
  %s67 = sld [smem:[%s66]]
  %s68 = sld [smem:[#allocation0]]
  $region169: #{t5_decoder_forward.1} parent=0
    _
  %s70 = ssub.s32 1, %s68
  %s71 = scalar_select 0, %s70, %s68
  $region1: #{t5_decoder_forward.1} parent=0
    #allocation2 [shape = 'u8[8192]{0}', space=vmem, size = 0x2000, scoped, tag = 'output window, operand 0, single buffered']
    #allocation3 [shape = 's32[2]{0}', space=sflag, size = 0x8, scoped, tag = 'scoped memory for t5_decoder_forward.1']
    %72 = vsyncpa [#allocation3], 0
    loop: start=0, step=1, limit=4
    $region2: #{t5_decoder_forward.1} parent=1 // loop_pre_header
      _
    $region3: #{t5_decoder_forward.1} parent=1 // loop_header
      %s74 = sphi 0, %s78
      %p75 = scmp.ge.s32.totalorder %s74, 4
      %s82 = sphi 0, %s82
      %s84 = sphi 0, %s82
      %s85 = sphi 0, %s84
      %s99 = sphi 0, %s85
      %s103 = sphi 0, %s103
      %s105 = sphi 0, %s103
      %s106 = sphi 0, %s105
      %s120 = sphi 0, %s106
      %s124 = sphi 0, %s124
      %s126 = sphi 0, %s124
      %s127 = sphi 0, %s126
      %s141 = sphi 0, %s127
      %s145 = sphi 0, %s145
      %s147 = sphi 0, %s145
      %s148 = sphi 0, %s147
      %s162 = sphi 0, %s148
      %s166 = sphi 0, %s166
      %s168 = sphi 0, %s166
      %s169 = sphi 0, %s168
      %s183 = sphi 0, %s169
      %s187 = sphi 0, %s187
      %s189 = sphi 0, %s187
      %s190 = sphi 0, %s189
      %s204 = sphi 0, %s190
      %s208 = sphi 0, %s208
      %s210 = sphi 0, %s208
      %s211 = sphi 0, %s210
      %s225 = sphi 0, %s211
      %s229 = sphi 0, %s229
      %s231 = sphi 0, %s229
      %s232 = sphi 0, %s231
      %s246 = sphi 0, %s232
      %s250 = sphi 0, %s250
      %s252 = sphi 0, %s250
      %s253 = sphi 0, %s252
      %s267 = sphi 0, %s253
      %s271 = sphi 0, %s271
      %s273 = sphi 0, %s271
      %s274 = sphi 0, %s273
      %s288 = sphi 0, %s274
      %s294 = sphi 0, %s296
      %s297 = sphi 0, %s294
      %s298 = sphi 0, %s297
      %s314 = sphi 0, %s298
      %s320 = sphi 0, %s322
      %s323 = sphi 0, %s320
      %s324 = sphi 0, %s323
      %s340 = sphi 0, %s324
      %s346 = sphi 0, %s348
      %s349 = sphi 0, %s346
      %s350 = sphi 0, %s349
      %s366 = sphi 0, %s350
      %s372 = sphi 0, %s374
      %s375 = sphi 0, %s372
      %s376 = sphi 0, %s375
      %s392 = sphi 0, %s376
      %s398 = sphi 0, %s400
      %s401 = sphi 0, %s398
      %s402 = sphi 0, %s401
      %s418 = sphi 0, %s402
      %s424 = sphi 0, %s426
      %s427 = sphi 0, %s424
      %s428 = sphi 0, %s427
      %s444 = sphi 0, %s428
      %s450 = sphi 0, %s452
      %s453 = sphi 0, %s450
      %s454 = sphi 0, %s453
      %s470 = sphi 0, %s454
      %s476 = sphi 0, %s478
      %s479 = sphi 0, %s476
      %s480 = sphi 0, %s479
      %s496 = sphi 0, %s480
      %s502 = sphi 0, %s504
      %s505 = sphi 0, %s502
      %s506 = sphi 0, %s505
      %s522 = sphi 0, %s506
      %s528 = sphi 0, %s530
      %s531 = sphi 0, %s528
      %s532 = sphi 0, %s531
      %s548 = sphi 0, %s532
      %s554 = sphi 0, %s556
      %s557 = sphi 0, %s554
      %s558 = sphi 0, %s557
      %s574 = sphi 0, %s558
      %s580 = sphi 0, %s582
      %s583 = sphi 0, %s580
      %s584 = sphi 0, %s583
      %s600 = sphi 0, %s584
      %s606 = sphi 0, %s608
      %s609 = sphi 0, %s606
      %s610 = sphi 0, %s609
      %s626 = sphi 0, %s610
      %s632 = sphi 0, %s634
      %s635 = sphi 0, %s632
      %s636 = sphi 0, %s635
      %s652 = sphi 0, %s636
      %s658 = sphi 0, %s660
      %s661 = sphi 0, %s658
      %s662 = sphi 0, %s661
      %s678 = sphi 0, %s662
      %s684 = sphi 0, %s686
      %s687 = sphi 0, %s684
      %s688 = sphi 0, %s687
      %s704 = sphi 0, %s688
      %s710 = sphi 0, %s712
      %s713 = sphi 0, %s710
      %s714 = sphi 0, %s713
      %s730 = sphi 0, %s714
      %s736 = sphi 0, %s738
      %s739 = sphi 0, %s736
      %s740 = sphi 0, %s739
      %s756 = sphi 0, %s740
      %s762 = sphi 0, %s764
      %s765 = sphi 0, %s762
      %s766 = sphi 0, %s765
      %s782 = sphi 0, %s766
      %s788 = sphi 0, %s790
      %s791 = sphi 0, %s788
      %s792 = sphi 0, %s791
      %s808 = sphi 0, %s792
      %s814 = sphi 0, %s816
      %s817 = sphi 0, %s814
      %s818 = sphi 0, %s817
      %s834 = sphi 0, %s818
      %s840 = sphi 0, %s842
      %s843 = sphi 0, %s840
      %s844 = sphi 0, %s843
      %s860 = sphi 0, %s844
      %s866 = sphi 0, %s868
      %s869 = sphi 0, %s866
      %s870 = sphi 0, %s869
      %s886 = sphi 0, %s870
      %s890 = sphi 0, %s890
      %s892 = sphi 0, %s890
      %s893 = sphi 0, %s892
      %s907 = sphi 0, %s893
    $region4: #{t5_decoder_forward.1} parent=1 // loop_header_branch
      %77 = sbr.rel (%p75) target = $region8
    $region5: #{t5_decoder_forward.1} parent=1 // loop_body
      %s79 = ssub.s32 %s74, 1
      %s80 = ssub.s32 %s74, 2
      %s81 = sadd.s32 %s74, 1
      %s83 = sadd.s32 %s82, 1
      %p86 = scmp.eq.s32.totalorder %s74, 1
      %p87 = scmp.ne.s32.totalorder %s82, %s84
      %p88 = scmp.eq.s32.totalorder %s74, 0
      %p89 = por %p87, %p88
      %p90 = scmp.ne.s32.totalorder %s82, %s84
      %p91 = scmp.eq.s32.totalorder %s79, 1
      %p92 = por %p90, %p91
      %p93 = scmp.ne.s32.totalorder %s84, %s85
      %p94 = scmp.eq.s32.totalorder %s79, 0
      %p95 = por %p93, %p94
      %p96 = scmp.ne.s32.totalorder %s84, %s85
      %p97 = scmp.eq.s32.totalorder %s80, 1
      %p98 = por %p96, %p97
      %p100 = scmp.ne.s32.totalorder %s85, %s99
      %p101 = scmp.eq.s32.totalorder %s80, 0
      %p102 = por %p100, %p101
      %s104 = sadd.s32 %s103, 1
      %p107 = scmp.eq.s32.totalorder %s74, 1
      %p108 = scmp.ne.s32.totalorder %s103, %s105
      %p109 = scmp.eq.s32.totalorder %s74, 0
      %p110 = por %p108, %p109
      %p111 = scmp.ne.s32.totalorder %s103, %s105
      %p112 = scmp.eq.s32.totalorder %s79, 1
      %p113 = por %p111, %p112
      %p114 = scmp.ne.s32.totalorder %s105, %s106
      %p115 = scmp.eq.s32.totalorder %s79, 0
      %p116 = por %p114, %p115
      %p117 = scmp.ne.s32.totalorder %s105, %s106
      %p118 = scmp.eq.s32.totalorder %s80, 1
      %p119 = por %p117, %p118
      %p121 = scmp.ne.s32.totalorder %s106, %s120
      %p122 = scmp.eq.s32.totalorder %s80, 0
      %p123 = por %p121, %p122
      %s125 = sadd.s32 %s124, 1
      %p128 = scmp.eq.s32.totalorder %s74, 1
      %p129 = scmp.ne.s32.totalorder %s124, %s126
      %p130 = scmp.eq.s32.totalorder %s74, 0
      %p131 = por %p129, %p130
      %p132 = scmp.ne.s32.totalorder %s124, %s126
      %p133 = scmp.eq.s32.totalorder %s79, 1
      %p134 = por %p132, %p133
      %p135 = scmp.ne.s32.totalorder %s126, %s127
      %p136 = scmp.eq.s32.totalorder %s79, 0
      %p137 = por %p135, %p136
      %p138 = scmp.ne.s32.totalorder %s126, %s127
      %p139 = scmp.eq.s32.totalorder %s80, 1
      %p140 = por %p138, %p139
      %p142 = scmp.ne.s32.totalorder %s127, %s141
      %p143 = scmp.eq.s32.totalorder %s80, 0
      %p144 = por %p142, %p143
      %s146 = sadd.s32 %s145, 1
      %p149 = scmp.eq.s32.totalorder %s74, 1
      %p150 = scmp.ne.s32.totalorder %s145, %s147
      %p151 = scmp.eq.s32.totalorder %s74, 0
      %p152 = por %p150, %p151
      %p153 = scmp.ne.s32.totalorder %s145, %s147
      %p154 = scmp.eq.s32.totalorder %s79, 1
      %p155 = por %p153, %p154
      %p156 = scmp.ne.s32.totalorder %s147, %s148
      %p157 = scmp.eq.s32.totalorder %s79, 0
      %p158 = por %p156, %p157
      %p159 = scmp.ne.s32.totalorder %s147, %s148
      %p160 = scmp.eq.s32.totalorder %s80, 1
      %p161 = por %p159, %p160
      %p163 = scmp.ne.s32.totalorder %s148, %s162
      %p164 = scmp.eq.s32.totalorder %s80, 0
      %p165 = por %p163, %p164
      %s167 = sadd.s32 %s166, 1
      %p170 = scmp.eq.s32.totalorder %s74, 1
      %p171 = scmp.ne.s32.totalorder %s166, %s168
      %p172 = scmp.eq.s32.totalorder %s74, 0
      %p173 = por %p171, %p172
      %p174 = scmp.ne.s32.totalorder %s166, %s168
      %p175 = scmp.eq.s32.totalorder %s79, 1
      %p176 = por %p174, %p175
      %p177 = scmp.ne.s32.totalorder %s168, %s169
      %p178 = scmp.eq.s32.totalorder %s79, 0
      %p179 = por %p177, %p178
      %p180 = scmp.ne.s32.totalorder %s168, %s169
      %p181 = scmp.eq.s32.totalorder %s80, 1
      %p182 = por %p180, %p181
      %p184 = scmp.ne.s32.totalorder %s169, %s183
      %p185 = scmp.eq.s32.totalorder %s80, 0
      %p186 = por %p184, %p185
      %s188 = sadd.s32 %s187, 1
      %p191 = scmp.eq.s32.totalorder %s74, 1
      %p192 = scmp.ne.s32.totalorder %s187, %s189
      %p193 = scmp.eq.s32.totalorder %s74, 0
      %p194 = por %p192, %p193
      %p195 = scmp.ne.s32.totalorder %s187, %s189
      %p196 = scmp.eq.s32.totalorder %s79, 1
      %p197 = por %p195, %p196
      %p198 = scmp.ne.s32.totalorder %s189, %s190
      %p199 = scmp.eq.s32.totalorder %s79, 0
      %p200 = por %p198, %p199
      %p201 = scmp.ne.s32.totalorder %s189, %s190
      %p202 = scmp.eq.s32.totalorder %s80, 1
      %p203 = por %p201, %p202
      %p205 = scmp.ne.s32.totalorder %s190, %s204
      %p206 = scmp.eq.s32.totalorder %s80, 0
      %p207 = por %p205, %p206
      %s209 = sadd.s32 %s208, 1
      %p212 = scmp.eq.s32.totalorder %s74, 1
      %p213 = scmp.ne.s32.totalorder %s208, %s210
      %p214 = scmp.eq.s32.totalorder %s74, 0
      %p215 = por %p213, %p214
      %p216 = scmp.ne.s32.totalorder %s208, %s210
      %p217 = scmp.eq.s32.totalorder %s79, 1
      %p218 = por %p216, %p217
      %p219 = scmp.ne.s32.totalorder %s210, %s211
      %p220 = scmp.eq.s32.totalorder %s79, 0
      %p221 = por %p219, %p220
      %p222 = scmp.ne.s32.totalorder %s210, %s211
      %p223 = scmp.eq.s32.totalorder %s80, 1
      %p224 = por %p222, %p223
      %p226 = scmp.ne.s32.totalorder %s211, %s225
      %p227 = scmp.eq.s32.totalorder %s80, 0
      %p228 = por %p226, %p227
      %s230 = sadd.s32 %s229, 1
      %p233 = scmp.eq.s32.totalorder %s74, 1
      %p234 = scmp.ne.s32.totalorder %s229, %s231
      %p235 = scmp.eq.s32.totalorder %s74, 0
      %p236 = por %p234, %p235
      %p237 = scmp.ne.s32.totalorder %s229, %s231
      %p238 = scmp.eq.s32.totalorder %s79, 1
      %p239 = por %p237, %p238
      %p240 = scmp.ne.s32.totalorder %s231, %s232
      %p241 = scmp.eq.s32.totalorder %s79, 0
      %p242 = por %p240, %p241
      %p243 = scmp.ne.s32.totalorder %s231, %s232
      %p244 = scmp.eq.s32.totalorder %s80, 1
      %p245 = por %p243, %p244
      %p247 = scmp.ne.s32.totalorder %s232, %s246
      %p248 = scmp.eq.s32.totalorder %s80, 0
      %p249 = por %p247, %p248
      %s251 = sadd.s32 %s250, 1
      %p254 = scmp.eq.s32.totalorder %s74, 1
      %p255 = scmp.ne.s32.totalorder %s250, %s252
      %p256 = scmp.eq.s32.totalorder %s74, 0
      %p257 = por %p255, %p256
      %p258 = scmp.ne.s32.totalorder %s250, %s252
      %p259 = scmp.eq.s32.totalorder %s79, 1
      %p260 = por %p258, %p259
      %p261 = scmp.ne.s32.totalorder %s252, %s253
      %p262 = scmp.eq.s32.totalorder %s79, 0
      %p263 = por %p261, %p262
      %p264 = scmp.ne.s32.totalorder %s252, %s253
      %p265 = scmp.eq.s32.totalorder %s80, 1
      %p266 = por %p264, %p265
      %p268 = scmp.ne.s32.totalorder %s253, %s267
      %p269 = scmp.eq.s32.totalorder %s80, 0
      %p270 = por %p268, %p269
      %s272 = sadd.s32 %s271, 1
      %p275 = scmp.eq.s32.totalorder %s74, 1
      %p276 = scmp.ne.s32.totalorder %s271, %s273
      %p277 = scmp.eq.s32.totalorder %s74, 0
      %p278 = por %p276, %p277
      %p279 = scmp.ne.s32.totalorder %s271, %s273
      %p280 = scmp.eq.s32.totalorder %s79, 1
      %p281 = por %p279, %p280
      %p282 = scmp.ne.s32.totalorder %s273, %s274
      %p283 = scmp.eq.s32.totalorder %s79, 0
      %p284 = por %p282, %p283
      %p285 = scmp.ne.s32.totalorder %s273, %s274
      %p286 = scmp.eq.s32.totalorder %s80, 1
      %p287 = por %p285, %p286
      %p289 = scmp.ne.s32.totalorder %s274, %s288
      %p290 = scmp.eq.s32.totalorder %s80, 0
      %p291 = por %p289, %p290
      %s292 = ssub.s32 %s74, %s81
      %p293 = scmp.eq.s32.totalorder %s292, 0
      %s295 = sadd.s32 %s294, 1
      %s296 = scalar_select %p293, %s294, %s295
      %p299 = pneg %p293
      %p300 = scmp.eq.s32.totalorder %s74, 1
      %p301 = por %p299, %p300
      %p302 = scmp.ne.s32.totalorder %s294, %s297
      %p303 = scmp.eq.s32.totalorder %s74, 0
      %p304 = por %p302, %p303
      %p305 = scmp.ne.s32.totalorder %s294, %s297
      %p306 = scmp.eq.s32.totalorder %s79, 1
      %p307 = por %p305, %p306
      %p308 = scmp.ne.s32.totalorder %s297, %s298
      %p309 = scmp.eq.s32.totalorder %s79, 0
      %p310 = por %p308, %p309
      %p311 = scmp.ne.s32.totalorder %s297, %s298
      %p312 = scmp.eq.s32.totalorder %s80, 1
      %p313 = por %p311, %p312
      %p315 = scmp.ne.s32.totalorder %s298, %s314
      %p316 = scmp.eq.s32.totalorder %s80, 0
      %p317 = por %p315, %p316
      %s318 = ssub.s32 %s74, %s81
      %p319 = scmp.eq.s32.totalorder %s318, 0
      %s321 = sadd.s32 %s320, 1
      %s322 = scalar_select %p319, %s320, %s321
      %p325 = pneg %p319
      %p326 = scmp.eq.s32.totalorder %s74, 1
      %p327 = por %p325, %p326
      %p328 = scmp.ne.s32.totalorder %s320, %s323
      %p329 = scmp.eq.s32.totalorder %s74, 0
      %p330 = por %p328, %p329
      %p331 = scmp.ne.s32.totalorder %s320, %s323
      %p332 = scmp.eq.s32.totalorder %s79, 1
      %p333 = por %p331, %p332
      %p334 = scmp.ne.s32.totalorder %s323, %s324
      %p335 = scmp.eq.s32.totalorder %s79, 0
      %p336 = por %p334, %p335
      %p337 = scmp.ne.s32.totalorder %s323, %s324
      %p338 = scmp.eq.s32.totalorder %s80, 1
      %p339 = por %p337, %p338
      %p341 = scmp.ne.s32.totalorder %s324, %s340
      %p342 = scmp.eq.s32.totalorder %s80, 0
      %p343 = por %p341, %p342
      %s344 = ssub.s32 %s74, %s81
      %p345 = scmp.eq.s32.totalorder %s344, 0
      %s347 = sadd.s32 %s346, 1
      %s348 = scalar_select %p345, %s346, %s347
      %p351 = pneg %p345
      %p352 = scmp.eq.s32.totalorder %s74, 1
      %p353 = por %p351, %p352
      %p354 = scmp.ne.s32.totalorder %s346, %s349
      %p355 = scmp.eq.s32.totalorder %s74, 0
      %p356 = por %p354, %p355
      %p357 = scmp.ne.s32.totalorder %s346, %s349
      %p358 = scmp.eq.s32.totalorder %s79, 1
      %p359 = por %p357, %p358
      %p360 = scmp.ne.s32.totalorder %s349, %s350
      %p361 = scmp.eq.s32.totalorder %s79, 0
      %p362 = por %p360, %p361
      %p363 = scmp.ne.s32.totalorder %s349, %s350
      %p364 = scmp.eq.s32.totalorder %s80, 1
      %p365 = por %p363, %p364
      %p367 = scmp.ne.s32.totalorder %s350, %s366
      %p368 = scmp.eq.s32.totalorder %s80, 0
      %p369 = por %p367, %p368
      %s370 = ssub.s32 %s74, %s81
      %p371 = scmp.eq.s32.totalorder %s370, 0
      %s373 = sadd.s32 %s372, 1
      %s374 = scalar_select %p371, %s372, %s373
      %p377 = pneg %p371
      %p378 = scmp.eq.s32.totalorder %s74, 1
      %p379 = por %p377, %p378
      %p380 = scmp.ne.s32.totalorder %s372, %s375
      %p381 = scmp.eq.s32.totalorder %s74, 0
      %p382 = por %p380, %p381
      %p383 = scmp.ne.s32.totalorder %s372, %s375
      %p384 = scmp.eq.s32.totalorder %s79, 1
      %p385 = por %p383, %p384
      %p386 = scmp.ne.s32.totalorder %s375, %s376
      %p387 = scmp.eq.s32.totalorder %s79, 0
      %p388 = por %p386, %p387
      %p389 = scmp.ne.s32.totalorder %s375, %s376
      %p390 = scmp.eq.s32.totalorder %s80, 1
      %p391 = por %p389, %p390
      %p393 = scmp.ne.s32.totalorder %s376, %s392
      %p394 = scmp.eq.s32.totalorder %s80, 0
      %p395 = por %p393, %p394
      %s396 = ssub.s32 %s74, %s81
      %p397 = scmp.eq.s32.totalorder %s396, 0
      %s399 = sadd.s32 %s398, 1
      %s400 = scalar_select %p397, %s398, %s399
      %p403 = pneg %p397
      %p404 = scmp.eq.s32.totalorder %s74, 1
      %p405 = por %p403, %p404
      %p406 = scmp.ne.s32.totalorder %s398, %s401
      %p407 = scmp.eq.s32.totalorder %s74, 0
      %p408 = por %p406, %p407
      %p409 = scmp.ne.s32.totalorder %s398, %s401
      %p410 = scmp.eq.s32.totalorder %s79, 1
      %p411 = por %p409, %p410
      %p412 = scmp.ne.s32.totalorder %s401, %s402
      %p413 = scmp.eq.s32.totalorder %s79, 0
      %p414 = por %p412, %p413
      %p415 = scmp.ne.s32.totalorder %s401, %s402
      %p416 = scmp.eq.s32.totalorder %s80, 1
      %p417 = por %p415, %p416
      %p419 = scmp.ne.s32.totalorder %s402, %s418
      %p420 = scmp.eq.s32.totalorder %s80, 0
      %p421 = por %p419, %p420
      %s422 = ssub.s32 %s74, %s81
      %p423 = scmp.eq.s32.totalorder %s422, 0
      %s425 = sadd.s32 %s424, 1
      %s426 = scalar_select %p423, %s424, %s425
      %p429 = pneg %p423
      %p430 = scmp.eq.s32.totalorder %s74, 1
      %p431 = por %p429, %p430
      %p432 = scmp.ne.s32.totalorder %s424, %s427
      %p433 = scmp.eq.s32.totalorder %s74, 0
      %p434 = por %p432, %p433
      %p435 = scmp.ne.s32.totalorder %s424, %s427
      %p436 = scmp.eq.s32.totalorder %s79, 1
      %p437 = por %p435, %p436
      %p438 = scmp.ne.s32.totalorder %s427, %s428
      %p439 = scmp.eq.s32.totalorder %s79, 0
      %p440 = por %p438, %p439
      %p441 = scmp.ne.s32.totalorder %s427, %s428
      %p442 = scmp.eq.s32.totalorder %s80, 1
      %p443 = por %p441, %p442
      %p445 = scmp.ne.s32.totalorder %s428, %s444
      %p446 = scmp.eq.s32.totalorder %s80, 0
      %p447 = por %p445, %p446
      %s448 = ssub.s32 %s74, %s81
      %p449 = scmp.eq.s32.totalorder %s448, 0
      %s451 = sadd.s32 %s450, 1
      %s452 = scalar_select %p449, %s450, %s451
      %p455 = pneg %p449
      %p456 = scmp.eq.s32.totalorder %s74, 1
      %p457 = por %p455, %p456
      %p458 = scmp.ne.s32.totalorder %s450, %s453
      %p459 = scmp.eq.s32.totalorder %s74, 0
      %p460 = por %p458, %p459
      %p461 = scmp.ne.s32.totalorder %s450, %s453
      %p462 = scmp.eq.s32.totalorder %s79, 1
      %p463 = por %p461, %p462
      %p464 = scmp.ne.s32.totalorder %s453, %s454
      %p465 = scmp.eq.s32.totalorder %s79, 0
      %p466 = por %p464, %p465
      %p467 = scmp.ne.s32.totalorder %s453, %s454
      %p468 = scmp.eq.s32.totalorder %s80, 1
      %p469 = por %p467, %p468
      %p471 = scmp.ne.s32.totalorder %s454, %s470
      %p472 = scmp.eq.s32.totalorder %s80, 0
      %p473 = por %p471, %p472
      %s474 = ssub.s32 %s74, %s81
      %p475 = scmp.eq.s32.totalorder %s474, 0
      %s477 = sadd.s32 %s476, 1
      %s478 = scalar_select %p475, %s476, %s477
      %p481 = pneg %p475
      %p482 = scmp.eq.s32.totalorder %s74, 1
      %p483 = por %p481, %p482
      %p484 = scmp.ne.s32.totalorder %s476, %s479
      %p485 = scmp.eq.s32.totalorder %s74, 0
      %p486 = por %p484, %p485
      %p487 = scmp.ne.s32.totalorder %s476, %s479
      %p488 = scmp.eq.s32.totalorder %s79, 1
      %p489 = por %p487, %p488
      %p490 = scmp.ne.s32.totalorder %s479, %s480
      %p491 = scmp.eq.s32.totalorder %s79, 0
      %p492 = por %p490, %p491
      %p493 = scmp.ne.s32.totalorder %s479, %s480
      %p494 = scmp.eq.s32.totalorder %s80, 1
      %p495 = por %p493, %p494
      %p497 = scmp.ne.s32.totalorder %s480, %s496
      %p498 = scmp.eq.s32.totalorder %s80, 0
      %p499 = por %p497, %p498
      %s500 = ssub.s32 %s74, %s81
      %p501 = scmp.eq.s32.totalorder %s500, 0
      %s503 = sadd.s32 %s502, 1
      %s504 = scalar_select %p501, %s502, %s503
      %p507 = pneg %p501
      %p508 = scmp.eq.s32.totalorder %s74, 1
      %p509 = por %p507, %p508
      %p510 = scmp.ne.s32.totalorder %s502, %s505
      %p511 = scmp.eq.s32.totalorder %s74, 0
      %p512 = por %p510, %p511
      %p513 = scmp.ne.s32.totalorder %s502, %s505
      %p514 = scmp.eq.s32.totalorder %s79, 1
      %p515 = por %p513, %p514
      %p516 = scmp.ne.s32.totalorder %s505, %s506
      %p517 = scmp.eq.s32.totalorder %s79, 0
      %p518 = por %p516, %p517
      %p519 = scmp.ne.s32.totalorder %s505, %s506
      %p520 = scmp.eq.s32.totalorder %s80, 1
      %p521 = por %p519, %p520
      %p523 = scmp.ne.s32.totalorder %s506, %s522
      %p524 = scmp.eq.s32.totalorder %s80, 0
      %p525 = por %p523, %p524
      %s526 = ssub.s32 %s74, %s81
      %p527 = scmp.eq.s32.totalorder %s526, 0
      %s529 = sadd.s32 %s528, 1
      %s530 = scalar_select %p527, %s528, %s529
      %p533 = pneg %p527
      %p534 = scmp.eq.s32.totalorder %s74, 1
      %p535 = por %p533, %p534
      %p536 = scmp.ne.s32.totalorder %s528, %s531
      %p537 = scmp.eq.s32.totalorder %s74, 0
      %p538 = por %p536, %p537
      %p539 = scmp.ne.s32.totalorder %s528, %s531
      %p540 = scmp.eq.s32.totalorder %s79, 1
      %p541 = por %p539, %p540
      %p542 = scmp.ne.s32.totalorder %s531, %s532
      %p543 = scmp.eq.s32.totalorder %s79, 0
      %p544 = por %p542, %p543
      %p545 = scmp.ne.s32.totalorder %s531, %s532
      %p546 = scmp.eq.s32.totalorder %s80, 1
      %p547 = por %p545, %p546
      %p549 = scmp.ne.s32.totalorder %s532, %s548
      %p550 = scmp.eq.s32.totalorder %s80, 0
      %p551 = por %p549, %p550
      %s552 = ssub.s32 %s74, %s81
      %p553 = scmp.eq.s32.totalorder %s552, 0
      %s555 = sadd.s32 %s554, 1
      %s556 = scalar_select %p553, %s554, %s555
      %p559 = pneg %p553
      %p560 = scmp.eq.s32.totalorder %s74, 1
      %p561 = por %p559, %p560
      %p562 = scmp.ne.s32.totalorder %s554, %s557
      %p563 = scmp.eq.s32.totalorder %s74, 0
      %p564 = por %p562, %p563
      %p565 = scmp.ne.s32.totalorder %s554, %s557
      %p566 = scmp.eq.s32.totalorder %s79, 1
      %p567 = por %p565, %p566
      %p568 = scmp.ne.s32.totalorder %s557, %s558
      %p569 = scmp.eq.s32.totalorder %s79, 0
      %p570 = por %p568, %p569
      %p571 = scmp.ne.s32.totalorder %s557, %s558
      %p572 = scmp.eq.s32.totalorder %s80, 1
      %p573 = por %p571, %p572
      %p575 = scmp.ne.s32.totalorder %s558, %s574
      %p576 = scmp.eq.s32.totalorder %s80, 0
      %p577 = por %p575, %p576
      %s578 = ssub.s32 %s74, %s81
      %p579 = scmp.eq.s32.totalorder %s578, 0
      %s581 = sadd.s32 %s580, 1
      %s582 = scalar_select %p579, %s580, %s581
      %p585 = pneg %p579
      %p586 = scmp.eq.s32.totalorder %s74, 1
      %p587 = por %p585, %p586
      %p588 = scmp.ne.s32.totalorder %s580, %s583
      %p589 = scmp.eq.s32.totalorder %s74, 0
      %p590 = por %p588, %p589
      %p591 = scmp.ne.s32.totalorder %s580, %s583
      %p592 = scmp.eq.s32.totalorder %s79, 1
      %p593 = por %p591, %p592
      %p594 = scmp.ne.s32.totalorder %s583, %s584
      %p595 = scmp.eq.s32.totalorder %s79, 0
      %p596 = por %p594, %p595
      %p597 = scmp.ne.s32.totalorder %s583, %s584
      %p598 = scmp.eq.s32.totalorder %s80, 1
      %p599 = por %p597, %p598
      %p601 = scmp.ne.s32.totalorder %s584, %s600
      %p602 = scmp.eq.s32.totalorder %s80, 0
      %p603 = por %p601, %p602
      %s604 = ssub.s32 %s74, %s81
      %p605 = scmp.eq.s32.totalorder %s604, 0
      %s607 = sadd.s32 %s606, 1
      %s608 = scalar_select %p605, %s606, %s607
      %p611 = pneg %p605
      %p612 = scmp.eq.s32.totalorder %s74, 1
      %p613 = por %p611, %p612
      %p614 = scmp.ne.s32.totalorder %s606, %s609
      %p615 = scmp.eq.s32.totalorder %s74, 0
      %p616 = por %p614, %p615
      %p617 = scmp.ne.s32.totalorder %s606, %s609
      %p618 = scmp.eq.s32.totalorder %s79, 1
      %p619 = por %p617, %p618
      %p620 = scmp.ne.s32.totalorder %s609, %s610
      %p621 = scmp.eq.s32.totalorder %s79, 0
      %p622 = por %p620, %p621
      %p623 = scmp.ne.s32.totalorder %s609, %s610
      %p624 = scmp.eq.s32.totalorder %s80, 1
      %p625 = por %p623, %p624
      %p627 = scmp.ne.s32.totalorder %s610, %s626
      %p628 = scmp.eq.s32.totalorder %s80, 0
      %p629 = por %p627, %p628
      %s630 = ssub.s32 %s74, %s81
      %p631 = scmp.eq.s32.totalorder %s630, 0
      %s633 = sadd.s32 %s632, 1
      %s634 = scalar_select %p631, %s632, %s633
      %p637 = pneg %p631
      %p638 = scmp.eq.s32.totalorder %s74, 1
      %p639 = por %p637, %p638
      %p640 = scmp.ne.s32.totalorder %s632, %s635
      %p641 = scmp.eq.s32.totalorder %s74, 0
      %p642 = por %p640, %p641
      %p643 = scmp.ne.s32.totalorder %s632, %s635
      %p644 = scmp.eq.s32.totalorder %s79, 1
      %p645 = por %p643, %p644
      %p646 = scmp.ne.s32.totalorder %s635, %s636
      %p647 = scmp.eq.s32.totalorder %s79, 0
      %p648 = por %p646, %p647
      %p649 = scmp.ne.s32.totalorder %s635, %s636
      %p650 = scmp.eq.s32.totalorder %s80, 1
      %p651 = por %p649, %p650
      %p653 = scmp.ne.s32.totalorder %s636, %s652
      %p654 = scmp.eq.s32.totalorder %s80, 0
      %p655 = por %p653, %p654
      %s656 = ssub.s32 %s74, %s81
      %p657 = scmp.eq.s32.totalorder %s656, 0
      %s659 = sadd.s32 %s658, 1
      %s660 = scalar_select %p657, %s658, %s659
      %p663 = pneg %p657
      %p664 = scmp.eq.s32.totalorder %s74, 1
      %p665 = por %p663, %p664
      %p666 = scmp.ne.s32.totalorder %s658, %s661
      %p667 = scmp.eq.s32.totalorder %s74, 0
      %p668 = por %p666, %p667
      %p669 = scmp.ne.s32.totalorder %s658, %s661
      %p670 = scmp.eq.s32.totalorder %s79, 1
      %p671 = por %p669, %p670
      %p672 = scmp.ne.s32.totalorder %s661, %s662
      %p673 = scmp.eq.s32.totalorder %s79, 0
      %p674 = por %p672, %p673
      %p675 = scmp.ne.s32.totalorder %s661, %s662
      %p676 = scmp.eq.s32.totalorder %s80, 1
      %p677 = por %p675, %p676
      %p679 = scmp.ne.s32.totalorder %s662, %s678
      %p680 = scmp.eq.s32.totalorder %s80, 0
      %p681 = por %p679, %p680
      %s682 = ssub.s32 %s74, %s81
      %p683 = scmp.eq.s32.totalorder %s682, 0
      %s685 = sadd.s32 %s684, 1
      %s686 = scalar_select %p683, %s684, %s685
      %p689 = pneg %p683
      %p690 = scmp.eq.s32.totalorder %s74, 1
      %p691 = por %p689, %p690
      %p692 = scmp.ne.s32.totalorder %s684, %s687
      %p693 = scmp.eq.s32.totalorder %s74, 0
      %p694 = por %p692, %p693
      %p695 = scmp.ne.s32.totalorder %s684, %s687
      %p696 = scmp.eq.s32.totalorder %s79, 1
      %p697 = por %p695, %p696
      %p698 = scmp.ne.s32.totalorder %s687, %s688
      %p699 = scmp.eq.s32.totalorder %s79, 0
      %p700 = por %p698, %p699
      %p701 = scmp.ne.s32.totalorder %s687, %s688
      %p702 = scmp.eq.s32.totalorder %s80, 1
      %p703 = por %p701, %p702
      %p705 = scmp.ne.s32.totalorder %s688, %s704
      %p706 = scmp.eq.s32.totalorder %s80, 0
      %p707 = por %p705, %p706
      %s708 = ssub.s32 %s74, %s81
      %p709 = scmp.eq.s32.totalorder %s708, 0
      %s711 = sadd.s32 %s710, 1
      %s712 = scalar_select %p709, %s710, %s711
      %p715 = pneg %p709
      %p716 = scmp.eq.s32.totalorder %s74, 1
      %p717 = por %p715, %p716
      %p718 = scmp.ne.s32.totalorder %s710, %s713
      %p719 = scmp.eq.s32.totalorder %s74, 0
      %p720 = por %p718, %p719
      %p721 = scmp.ne.s32.totalorder %s710, %s713
      %p722 = scmp.eq.s32.totalorder %s79, 1
      %p723 = por %p721, %p722
      %p724 = scmp.ne.s32.totalorder %s713, %s714
      %p725 = scmp.eq.s32.totalorder %s79, 0
      %p726 = por %p724, %p725
      %p727 = scmp.ne.s32.totalorder %s713, %s714
      %p728 = scmp.eq.s32.totalorder %s80, 1
      %p729 = por %p727, %p728
      %p731 = scmp.ne.s32.totalorder %s714, %s730
      %p732 = scmp.eq.s32.totalorder %s80, 0
      %p733 = por %p731, %p732
      %s734 = ssub.s32 %s74, %s81
      %p735 = scmp.eq.s32.totalorder %s734, 0
      %s737 = sadd.s32 %s736, 1
      %s738 = scalar_select %p735, %s736, %s737
      %p741 = pneg %p735
      %p742 = scmp.eq.s32.totalorder %s74, 1
      %p743 = por %p741, %p742
      %p744 = scmp.ne.s32.totalorder %s736, %s739
      %p745 = scmp.eq.s32.totalorder %s74, 0
      %p746 = por %p744, %p745
      %p747 = scmp.ne.s32.totalorder %s736, %s739
      %p748 = scmp.eq.s32.totalorder %s79, 1
      %p749 = por %p747, %p748
      %p750 = scmp.ne.s32.totalorder %s739, %s740
      %p751 = scmp.eq.s32.totalorder %s79, 0
      %p752 = por %p750, %p751
      %p753 = scmp.ne.s32.totalorder %s739, %s740
      %p754 = scmp.eq.s32.totalorder %s80, 1
      %p755 = por %p753, %p754
      %p757 = scmp.ne.s32.totalorder %s740, %s756
      %p758 = scmp.eq.s32.totalorder %s80, 0
      %p759 = por %p757, %p758
      %s760 = ssub.s32 %s74, %s81
      %p761 = scmp.eq.s32.totalorder %s760, 0
      %s763 = sadd.s32 %s762, 1
      %s764 = scalar_select %p761, %s762, %s763
      %p767 = pneg %p761
      %p768 = scmp.eq.s32.totalorder %s74, 1
      %p769 = por %p767, %p768
      %p770 = scmp.ne.s32.totalorder %s762, %s765
      %p771 = scmp.eq.s32.totalorder %s74, 0
      %p772 = por %p770, %p771
      %p773 = scmp.ne.s32.totalorder %s762, %s765
      %p774 = scmp.eq.s32.totalorder %s79, 1
      %p775 = por %p773, %p774
      %p776 = scmp.ne.s32.totalorder %s765, %s766
      %p777 = scmp.eq.s32.totalorder %s79, 0
      %p778 = por %p776, %p777
      %p779 = scmp.ne.s32.totalorder %s765, %s766
      %p780 = scmp.eq.s32.totalorder %s80, 1
      %p781 = por %p779, %p780
      %p783 = scmp.ne.s32.totalorder %s766, %s782
      %p784 = scmp.eq.s32.totalorder %s80, 0
      %p785 = por %p783, %p784
      %s786 = ssub.s32 %s74, %s81
      %p787 = scmp.eq.s32.totalorder %s786, 0
      %s789 = sadd.s32 %s788, 1
      %s790 = scalar_select %p787, %s788, %s789
      %p793 = pneg %p787
      %p794 = scmp.eq.s32.totalorder %s74, 1
      %p795 = por %p793, %p794
      %p796 = scmp.ne.s32.totalorder %s788, %s791
      %p797 = scmp.eq.s32.totalorder %s74, 0
      %p798 = por %p796, %p797
      %p799 = scmp.ne.s32.totalorder %s788, %s791
      %p800 = scmp.eq.s32.totalorder %s79, 1
      %p801 = por %p799, %p800
      %p802 = scmp.ne.s32.totalorder %s791, %s792
      %p803 = scmp.eq.s32.totalorder %s79, 0
      %p804 = por %p802, %p803
      %p805 = scmp.ne.s32.totalorder %s791, %s792
      %p806 = scmp.eq.s32.totalorder %s80, 1
      %p807 = por %p805, %p806
      %p809 = scmp.ne.s32.totalorder %s792, %s808
      %p810 = scmp.eq.s32.totalorder %s80, 0
      %p811 = por %p809, %p810
      %s812 = ssub.s32 %s74, %s81
      %p813 = scmp.eq.s32.totalorder %s812, 0
      %s815 = sadd.s32 %s814, 1
      %s816 = scalar_select %p813, %s814, %s815
      %p819 = pneg %p813
      %p820 = scmp.eq.s32.totalorder %s74, 1
      %p821 = por %p819, %p820
      %p822 = scmp.ne.s32.totalorder %s814, %s817
      %p823 = scmp.eq.s32.totalorder %s74, 0
      %p824 = por %p822, %p823
      %p825 = scmp.ne.s32.totalorder %s814, %s817
      %p826 = scmp.eq.s32.totalorder %s79, 1
      %p827 = por %p825, %p826
      %p828 = scmp.ne.s32.totalorder %s817, %s818
      %p829 = scmp.eq.s32.totalorder %s79, 0
      %p830 = por %p828, %p829
      %p831 = scmp.ne.s32.totalorder %s817, %s818
      %p832 = scmp.eq.s32.totalorder %s80, 1
      %p833 = por %p831, %p832
      %p835 = scmp.ne.s32.totalorder %s818, %s834
      %p836 = scmp.eq.s32.totalorder %s80, 0
      %p837 = por %p835, %p836
      %s838 = ssub.s32 %s74, %s81
      %p839 = scmp.eq.s32.totalorder %s838, 0
      %s841 = sadd.s32 %s840, 1
      %s842 = scalar_select %p839, %s840, %s841
      %p845 = pneg %p839
      %p846 = scmp.eq.s32.totalorder %s74, 1
      %p847 = por %p845, %p846
      %p848 = scmp.ne.s32.totalorder %s840, %s843
      %p849 = scmp.eq.s32.totalorder %s74, 0
      %p850 = por %p848, %p849
      %p851 = scmp.ne.s32.totalorder %s840, %s843
      %p852 = scmp.eq.s32.totalorder %s79, 1
      %p853 = por %p851, %p852
      %p854 = scmp.ne.s32.totalorder %s843, %s844
      %p855 = scmp.eq.s32.totalorder %s79, 0
      %p856 = por %p854, %p855
      %p857 = scmp.ne.s32.totalorder %s843, %s844
      %p858 = scmp.eq.s32.totalorder %s80, 1
      %p859 = por %p857, %p858
      %p861 = scmp.ne.s32.totalorder %s844, %s860
      %p862 = scmp.eq.s32.totalorder %s80, 0
      %p863 = por %p861, %p862
      %s864 = ssub.s32 %s74, %s81
      %p865 = scmp.eq.s32.totalorder %s864, 0
      %s867 = sadd.s32 %s866, 1
      %s868 = scalar_select %p865, %s866, %s867
      %p871 = pneg %p865
      %p872 = scmp.eq.s32.totalorder %s74, 1
      %p873 = por %p871, %p872
      %p874 = scmp.ne.s32.totalorder %s866, %s869
      %p875 = scmp.eq.s32.totalorder %s74, 0
      %p876 = por %p874, %p875
      %p877 = scmp.ne.s32.totalorder %s866, %s869
      %p878 = scmp.eq.s32.totalorder %s79, 1
      %p879 = por %p877, %p878
      %p880 = scmp.ne.s32.totalorder %s869, %s870
      %p881 = scmp.eq.s32.totalorder %s79, 0
      %p882 = por %p880, %p881
      %p883 = scmp.ne.s32.totalorder %s869, %s870
      %p884 = scmp.eq.s32.totalorder %s80, 1
      %p885 = por %p883, %p884
      %p887 = scmp.ne.s32.totalorder %s870, %s886
      %p888 = scmp.eq.s32.totalorder %s80, 0
      %p889 = por %p887, %p888
      %s891 = sadd.s32 %s890, 1
      %p894 = scmp.eq.s32.totalorder %s74, 1
      %p895 = scmp.ne.s32.totalorder %s890, %s892
      %p896 = scmp.eq.s32.totalorder %s74, 0
      %p897 = por %p895, %p896
      %p898 = scmp.ne.s32.totalorder %s890, %s892
      %p899 = scmp.eq.s32.totalorder %s79, 1
      %p900 = por %p898, %p899
      %p901 = scmp.ne.s32.totalorder %s892, %s893
      %p902 = scmp.eq.s32.totalorder %s79, 0
      %p903 = por %p901, %p902
      %p904 = scmp.ne.s32.totalorder %s892, %s893
      %p905 = scmp.eq.s32.totalorder %s80, 1
      %p906 = por %p904, %p905
      %p908 = scmp.ne.s32.totalorder %s893, %s907
      %p909 = scmp.eq.s32.totalorder %s80, 0
      %p910 = por %p908, %p909
      %p911 = scmp.le.s32.totalorder 1, %s74
      %p912 = scmp.lt.s32.totalorder %s74, 3
      %p913 = pnand %p911, %p912
      %p914 = pneg %p913
      // Predicated region
      $region9: #{t5_decoder_forward.1} parent=5 // pred_check
        _
      $region10: #{t5_decoder_forward.1} parent=5 // pred_check_branch
        %916 = sbr.rel (%p913) target = $region12
      $region11: #{t5_decoder_forward.1} parent=5 // pred_region
        %s917 = ssub.s32 %s74, 1
        // Predicated region
        $region13: #{t5_decoder_forward.1} parent=11 // pred_check
          %p918 = pneg %p95
        $region14: #{t5_decoder_forward.1} parent=11 // pred_check_branch
          %920 = sbr.rel (%p918) target = $region16
        $region15: #{t5_decoder_forward.1} parent=11 // pred_region
          _
        $region16: #{t5_decoder_forward.1} parent=11 // pred_fallthru
          _
        // Predicated region
        $region17: #{t5_decoder_forward.1} parent=11 // pred_check
          %p921 = pneg %p116
        $region18: #{t5_decoder_forward.1} parent=11 // pred_check_branch
          %923 = sbr.rel (%p921) target = $region20
        $region19: #{t5_decoder_forward.1} parent=11 // pred_region
          _
        $region20: #{t5_decoder_forward.1} parent=11 // pred_fallthru
          _
        // Predicated region
        $region21: #{t5_decoder_forward.1} parent=11 // pred_check
          %p924 = pneg %p137
        $region22: #{t5_decoder_forward.1} parent=11 // pred_check_branch
          %926 = sbr.rel (%p924) target = $region24
        $region23: #{t5_decoder_forward.1} parent=11 // pred_region
          _
        $region24: #{t5_decoder_forward.1} parent=11 // pred_fallthru
          _
        // Predicated region
        $region25: #{t5_decoder_forward.1} parent=11 // pred_check
          %p927 = pneg %p158
        $region26: #{t5_decoder_forward.1} parent=11 // pred_check_branch
          %929 = sbr.rel (%p927) target = $region28
        $region27: #{t5_decoder_forward.1} parent=11 // pred_region
          _
        $region28: #{t5_decoder_forward.1} parent=11 // pred_fallthru
          _
        // Predicated region
        $region29: #{t5_decoder_forward.1} parent=11 // pred_check
          %p930 = pneg %p179
        $region30: #{t5_decoder_forward.1} parent=11 // pred_check_branch
          %932 = sbr.rel (%p930) target = $region32
        $region31: #{t5_decoder_forward.1} parent=11 // pred_region
          _
        $region32: #{t5_decoder_forward.1} parent=11 // pred_fallthru
          _
        // Predicated region
        $region33: #{t5_decoder_forward.1} parent=11 // pred_check
          %p933 = pneg %p200
        $region34: #{t5_decoder_forward.1} parent=11 // pred_check_branch
          %935 = sbr.rel (%p933) target = $region36
        $region35: #{t5_decoder_forward.1} parent=11 // pred_region
          _
        $region36: #{t5_decoder_forward.1} parent=11 // pred_fallthru
          _
        // Predicated region
        $region37: #{t5_decoder_forward.1} parent=11 // pred_check
          %p936 = pneg %p221
        $region38: #{t5_decoder_forward.1} parent=11 // pred_check_branch
          %938 = sbr.rel (%p936) target = $region40
        $region39: #{t5_decoder_forward.1} parent=11 // pred_region
          _
        $region40: #{t5_decoder_forward.1} parent=11 // pred_fallthru
          _
        // Predicated region
        $region41: #{t5_decoder_forward.1} parent=11 // pred_check
          %p939 = pneg %p242
        $region42: #{t5_decoder_forward.1} parent=11 // pred_check_branch
          %941 = sbr.rel (%p939) target = $region44
        $region43: #{t5_decoder_forward.1} parent=11 // pred_region
          _
        $region44: #{t5_decoder_forward.1} parent=11 // pred_fallthru
          _
        // Predicated region
        $region45: #{t5_decoder_forward.1} parent=11 // pred_check
          %p942 = pneg %p263
        $region46: #{t5_decoder_forward.1} parent=11 // pred_check_branch
          %944 = sbr.rel (%p942) target = $region48
        $region47: #{t5_decoder_forward.1} parent=11 // pred_region
          _
        $region48: #{t5_decoder_forward.1} parent=11 // pred_fallthru
          _
        // Predicated region
        $region49: #{t5_decoder_forward.1} parent=11 // pred_check
          %p945 = pneg %p284
        $region50: #{t5_decoder_forward.1} parent=11 // pred_check_branch
          %947 = sbr.rel (%p945) target = $region52
        $region51: #{t5_decoder_forward.1} parent=11 // pred_region
          _
        $region52: #{t5_decoder_forward.1} parent=11 // pred_fallthru
          _
      $region12: #{t5_decoder_forward.1} parent=5 // pred_fallthru
        _
      %p948 = scmp.lt.s32.totalorder %s74, 2
      // Predicated region
      $region53: #{t5_decoder_forward.1} parent=5 // pred_check
        %p949 = pneg %p948
      $region54: #{t5_decoder_forward.1} parent=5 // pred_check_branch
        %951 = sbr.rel (%p949) target = $region56
      $region55: #{t5_decoder_forward.1} parent=5 // pred_region
        // Predicated region
        $region57: #{t5_decoder_forward.1} parent=55 // pred_check
          %p952 = pneg %p304
        $region58: #{t5_decoder_forward.1} parent=55 // pred_check_branch
          %954 = sbr.rel (%p952) target = $region60
        $region59: #{t5_decoder_forward.1} parent=55 // pred_region
          %p955 = scmp.lt.s32.totalorder %s74, 1
          %s956 = scalar_select %p955, %s74, 1
          %s957 = scalar_lea.vmem %s21, %s956
        $region60: #{t5_decoder_forward.1} parent=55 // pred_fallthru
          _
        // Predicated region
        $region61: #{t5_decoder_forward.1} parent=55 // pred_check
          %p958 = pneg %p330
        $region62: #{t5_decoder_forward.1} parent=55 // pred_check_branch
          %960 = sbr.rel (%p958) target = $region64
        $region63: #{t5_decoder_forward.1} parent=55 // pred_region
          %p961 = scmp.lt.s32.totalorder %s74, 1
          %s962 = scalar_select %p961, %s74, 1
          %s963 = smul.addr %s962, 16
          %s964 = smul.addr %s963, 4
          %s965 = scalar_lea.vmem %s23, %s964
        $region64: #{t5_decoder_forward.1} parent=55 // pred_fallthru
          _
        // Predicated region
        $region65: #{t5_decoder_forward.1} parent=55 // pred_check
          %p966 = pneg %p356
        $region66: #{t5_decoder_forward.1} parent=55 // pred_check_branch
          %968 = sbr.rel (%p966) target = $region68
        $region67: #{t5_decoder_forward.1} parent=55 // pred_region
          %p969 = scmp.lt.s32.totalorder %s74, 1
          %s970 = scalar_select %p969, %s74, 1
          %s971 = smul.addr %s970, 16
          %s972 = smul.addr %s971, 4
          %s973 = scalar_lea.vmem %s25, %s972
        $region68: #{t5_decoder_forward.1} parent=55 // pred_fallthru
          _
        // Predicated region
        $region69: #{t5_decoder_forward.1} parent=55 // pred_check
          %p974 = pneg %p382
        $region70: #{t5_decoder_forward.1} parent=55 // pred_check_branch
          %976 = sbr.rel (%p974) target = $region72
        $region71: #{t5_decoder_forward.1} parent=55 // pred_region
          %p977 = scmp.lt.s32.totalorder %s74, 1
          %s978 = scalar_select %p977, %s74, 1
          %s979 = smul.addr %s978, 16
          %s980 = smul.addr %s979, 4
          %s981 = scalar_lea.vmem %s27, %s980
        $region72: #{t5_decoder_forward.1} parent=55 // pred_fallthru
          _
        // Predicated region
        $region73: #{t5_decoder_forward.1} parent=55 // pred_check
          %p982 = pneg %p408
        $region74: #{t5_decoder_forward.1} parent=55 // pred_check_branch
          %984 = sbr.rel (%p982) target = $region76
        $region75: #{t5_decoder_forward.1} parent=55 // pred_region
          %p985 = scmp.lt.s32.totalorder %s74, 1
          %s986 = scalar_select %p985, %s74, 1
          %s987 = smul.addr %s986, 16
          %s988 = smul.addr %s987, 4
          %s989 = scalar_lea.vmem %s29, %s988
        $region76: #{t5_decoder_forward.1} parent=55 // pred_fallthru
          _
        // Predicated region
        $region77: #{t5_decoder_forward.1} parent=55 // pred_check
          %p990 = pneg %p434
        $region78: #{t5_decoder_forward.1} parent=55 // pred_check_branch
          %992 = sbr.rel (%p990) target = $region80
        $region79: #{t5_decoder_forward.1} parent=55 // pred_region
          %p993 = scmp.lt.s32.totalorder %s74, 1
          %s994 = scalar_select %p993, %s74, 1
          %s995 = scalar_lea.vmem %s31, %s994
        $region80: #{t5_decoder_forward.1} parent=55 // pred_fallthru
          _
        // Predicated region
        $region81: #{t5_decoder_forward.1} parent=55 // pred_check
          %p996 = pneg %p460
        $region82: #{t5_decoder_forward.1} parent=55 // pred_check_branch
          %998 = sbr.rel (%p996) target = $region84
        $region83: #{t5_decoder_forward.1} parent=55 // pred_region
          %p999 = scmp.lt.s32.totalorder %s74, 1
          %s1000 = scalar_select %p999, %s74, 1
          %s1001 = scalar_lea.vmem %s33, %s1000
        $region84: #{t5_decoder_forward.1} parent=55 // pred_fallthru
          _
        // Predicated region
        $region85: #{t5_decoder_forward.1} parent=55 // pred_check
          %p1002 = pneg %p486
        $region86: #{t5_decoder_forward.1} parent=55 // pred_check_branch
          %1004 = sbr.rel (%p1002) target = $region88
        $region87: #{t5_decoder_forward.1} parent=55 // pred_region
          %p1005 = scmp.lt.s32.totalorder %s74, 1
          %s1006 = scalar_select %p1005, %s74, 1
          %s1007 = scalar_lea.vmem %s35, %s1006
        $region88: #{t5_decoder_forward.1} parent=55 // pred_fallthru
          _
        // Predicated region
        $region89: #{t5_decoder_forward.1} parent=55 // pred_check
          %p1008 = pneg %p512
        $region90: #{t5_decoder_forward.1} parent=55 // pred_check_branch
          %1010 = sbr.rel (%p1008) target = $region92
        $region91: #{t5_decoder_forward.1} parent=55 // pred_region
          %p1011 = scmp.lt.s32.totalorder %s74, 1
          %s1012 = scalar_select %p1011, %s74, 1
          %s1013 = scalar_lea.vmem %s37, %s1012
        $region92: #{t5_decoder_forward.1} parent=55 // pred_fallthru
          _
        // Predicated region
        $region93: #{t5_decoder_forward.1} parent=55 // pred_check
          %p1014 = pneg %p538
        $region94: #{t5_decoder_forward.1} parent=55 // pred_check_branch
          %1016 = sbr.rel (%p1014) target = $region96
        $region95: #{t5_decoder_forward.1} parent=55 // pred_region
          %p1017 = scmp.lt.s32.totalorder %s74, 1
          %s1018 = scalar_select %p1017, %s74, 1
          %s1019 = scalar_lea.vmem %s39, %s1018
        $region96: #{t5_decoder_forward.1} parent=55 // pred_fallthru
          _
        // Predicated region
        $region97: #{t5_decoder_forward.1} parent=55 // pred_check
          %p1020 = pneg %p564
        $region98: #{t5_decoder_forward.1} parent=55 // pred_check_branch
          %1022 = sbr.rel (%p1020) target = $region100
        $region99: #{t5_decoder_forward.1} parent=55 // pred_region
          %p1023 = scmp.lt.s32.totalorder %s74, 1
          %s1024 = scalar_select %p1023, %s74, 1
          %s1025 = smul.addr %s1024, 16
          %s1026 = smul.addr %s1025, 4
          %s1027 = scalar_lea.vmem %s41, %s1026
        $region100: #{t5_decoder_forward.1} parent=55 // pred_fallthru
          _
        // Predicated region
        $region101: #{t5_decoder_forward.1} parent=55 // pred_check
          %p1028 = pneg %p590
        $region102: #{t5_decoder_forward.1} parent=55 // pred_check_branch
          %1030 = sbr.rel (%p1028) target = $region104
        $region103: #{t5_decoder_forward.1} parent=55 // pred_region
          %p1031 = scmp.lt.s32.totalorder %s74, 1
          %s1032 = scalar_select %p1031, %s74, 1
          %s1033 = smul.addr %s1032, 16
          %s1034 = smul.addr %s1033, 4
          %s1035 = scalar_lea.vmem %s43, %s1034
        $region104: #{t5_decoder_forward.1} parent=55 // pred_fallthru
          _
        // Predicated region
        $region105: #{t5_decoder_forward.1} parent=55 // pred_check
          %p1036 = pneg %p616
        $region106: #{t5_decoder_forward.1} parent=55 // pred_check_branch
          %1038 = sbr.rel (%p1036) target = $region108
        $region107: #{t5_decoder_forward.1} parent=55 // pred_region
          %p1039 = scmp.lt.s32.totalorder %s74, 1
          %s1040 = scalar_select %p1039, %s74, 1
          %s1041 = smul.addr %s1040, 16
          %s1042 = smul.addr %s1041, 4
          %s1043 = scalar_lea.vmem %s45, %s1042
        $region108: #{t5_decoder_forward.1} parent=55 // pred_fallthru
          _
        // Predicated region
        $region109: #{t5_decoder_forward.1} parent=55 // pred_check
          %p1044 = pneg %p642
        $region110: #{t5_decoder_forward.1} parent=55 // pred_check_branch
          %1046 = sbr.rel (%p1044) target = $region112
        $region111: #{t5_decoder_forward.1} parent=55 // pred_region
          %p1047 = scmp.lt.s32.totalorder %s74, 1
          %s1048 = scalar_select %p1047, %s74, 1
          %s1049 = smul.addr %s1048, 16
          %s1050 = smul.addr %s1049, 4
          %s1051 = scalar_lea.vmem %s47, %s1050
        $region112: #{t5_decoder_forward.1} parent=55 // pred_fallthru
          _
        // Predicated region
        $region113: #{t5_decoder_forward.1} parent=55 // pred_check
          %p1052 = pneg %p668
        $region114: #{t5_decoder_forward.1} parent=55 // pred_check_branch
          %1054 = sbr.rel (%p1052) target = $region116
        $region115: #{t5_decoder_forward.1} parent=55 // pred_region
          %p1055 = scmp.lt.s32.totalorder %s74, 1
          %s1056 = scalar_select %p1055, %s74, 1
          %s1057 = scalar_lea.vmem %s49, %s1056
        $region116: #{t5_decoder_forward.1} parent=55 // pred_fallthru
          _
        // Predicated region
        $region117: #{t5_decoder_forward.1} parent=55 // pred_check
          %p1058 = pneg %p694
        $region118: #{t5_decoder_forward.1} parent=55 // pred_check_branch
          %1060 = sbr.rel (%p1058) target = $region120
        $region119: #{t5_decoder_forward.1} parent=55 // pred_region
          %p1061 = scmp.lt.s32.totalorder %s74, 1
          %s1062 = scalar_select %p1061, %s74, 1
          %s1063 = scalar_lea.vmem %s51, %s1062
        $region120: #{t5_decoder_forward.1} parent=55 // pred_fallthru
          _
        // Predicated region
        $region121: #{t5_decoder_forward.1} parent=55 // pred_check
          %p1064 = pneg %p720
        $region122: #{t5_decoder_forward.1} parent=55 // pred_check_branch
          %1066 = sbr.rel (%p1064) target = $region124
        $region123: #{t5_decoder_forward.1} parent=55 // pred_region
          %p1067 = scmp.lt.s32.totalorder %s74, 1
          %s1068 = scalar_select %p1067, %s74, 1
          %s1069 = scalar_lea.vmem %s53, %s1068
        $region124: #{t5_decoder_forward.1} parent=55 // pred_fallthru
          _
        // Predicated region
        $region125: #{t5_decoder_forward.1} parent=55 // pred_check
          %p1070 = pneg %p746
        $region126: #{t5_decoder_forward.1} parent=55 // pred_check_branch
          %1072 = sbr.rel (%p1070) target = $region128
        $region127: #{t5_decoder_forward.1} parent=55 // pred_region
          %p1073 = scmp.lt.s32.totalorder %s74, 1
          %s1074 = scalar_select %p1073, %s74, 1
          %s1075 = scalar_lea.vmem %s55, %s1074
        $region128: #{t5_decoder_forward.1} parent=55 // pred_fallthru
          _
        // Predicated region
        $region129: #{t5_decoder_forward.1} parent=55 // pred_check
          %p1076 = pneg %p772
        $region130: #{t5_decoder_forward.1} parent=55 // pred_check_branch
          %1078 = sbr.rel (%p1076) target = $region132
        $region131: #{t5_decoder_forward.1} parent=55 // pred_region
          %p1079 = scmp.lt.s32.totalorder %s74, 1
          %s1080 = scalar_select %p1079, %s74, 1
          %s1081 = scalar_lea.vmem %s57, %s1080
        $region132: #{t5_decoder_forward.1} parent=55 // pred_fallthru
          _
        // Predicated region
        $region133: #{t5_decoder_forward.1} parent=55 // pred_check
          %p1082 = pneg %p798
        $region134: #{t5_decoder_forward.1} parent=55 // pred_check_branch
          %1084 = sbr.rel (%p1082) target = $region136
        $region135: #{t5_decoder_forward.1} parent=55 // pred_region
          %p1085 = scmp.lt.s32.totalorder %s74, 1
          %s1086 = scalar_select %p1085, %s74, 1
          %s1087 = smul.addr %s1086, 64
          %s1088 = smul.addr %s1087, 4
          %s1089 = scalar_lea.vmem %s59, %s1088
        $region136: #{t5_decoder_forward.1} parent=55 // pred_fallthru
          _
        // Predicated region
        $region137: #{t5_decoder_forward.1} parent=55 // pred_check
          %p1090 = pneg %p824
        $region138: #{t5_decoder_forward.1} parent=55 // pred_check_branch
          %1092 = sbr.rel (%p1090) target = $region140
        $region139: #{t5_decoder_forward.1} parent=55 // pred_region
          %p1093 = scmp.lt.s32.totalorder %s74, 1
          %s1094 = scalar_select %p1093, %s74, 1
          %s1095 = smul.addr %s1094, 4
          %s1096 = scalar_lea.vmem %s61, %s1095
        $region140: #{t5_decoder_forward.1} parent=55 // pred_fallthru
          _
        // Predicated region
        $region141: #{t5_decoder_forward.1} parent=55 // pred_check
          %p1097 = pneg %p850
        $region142: #{t5_decoder_forward.1} parent=55 // pred_check_branch
          %1099 = sbr.rel (%p1097) target = $region144
        $region143: #{t5_decoder_forward.1} parent=55 // pred_region
          %p1100 = scmp.lt.s32.totalorder %s74, 1
          %s1101 = scalar_select %p1100, %s74, 1
          %s1102 = smul.addr %s1101, 64
          %s1103 = smul.addr %s1102, 4
          %s1104 = scalar_lea.vmem %s63, %s1103
        $region144: #{t5_decoder_forward.1} parent=55 // pred_fallthru
          _
        // Predicated region
        $region145: #{t5_decoder_forward.1} parent=55 // pred_check
          %p1105 = pneg %p876
        $region146: #{t5_decoder_forward.1} parent=55 // pred_check_branch
          %1107 = sbr.rel (%p1105) target = $region148
        $region147: #{t5_decoder_forward.1} parent=55 // pred_region
          %p1108 = scmp.lt.s32.totalorder %s74, 1
          %s1109 = scalar_select %p1108, %s74, 1
          %s1110 = scalar_lea.vmem %s65, %s1109
        $region148: #{t5_decoder_forward.1} parent=55 // pred_fallthru
          _
      $region56: #{t5_decoder_forward.1} parent=5 // pred_fallthru
        _
      %p1111 = scmp.le.s32.totalorder 1, %s74
      %p1112 = scmp.lt.s32.totalorder %s74, 3
      %p1113 = pnand %p1111, %p1112
      %p1114 = pneg %p1113
      // Predicated region
      $region149: #{t5_decoder_forward.1} parent=5 // pred_check
        _
      $region150: #{t5_decoder_forward.1} parent=5 // pred_check_branch
        %1116 = sbr.rel (%p1113) target = $region152
      $region151: #{t5_decoder_forward.1} parent=5 // pred_region
        %s1117 = ssub.s32 %s74, 1
        %p1118 = pneg %p95
        %p1119 = pneg %p92
        %p1120 = pneg %p116
        %p1121 = pneg %p113
        %p1122 = pneg %p137
        %p1123 = pneg %p134
        %p1124 = pneg %p158
        %p1125 = pneg %p155
        %p1126 = pneg %p179
        %p1127 = pneg %p176
        %p1128 = pneg %p200
        %p1129 = pneg %p197
        %p1130 = pneg %p221
        %p1131 = pneg %p218
        %p1132 = pneg %p242
        %p1133 = pneg %p239
        %p1134 = pneg %p263
        %p1135 = pneg %p260
        %p1136 = pneg %p284
        %p1137 = pneg %p281
        %p1138 = scmp.lt.s32.totalorder %s79, 1
        %s1139 = scalar_select %p1138, %s79, 1
        %s1140 = scalar_lea.vmem %s21, %s1139
        %p1141 = pneg %p310
        %p1142 = pneg %p307
        %p1143 = scmp.lt.s32.totalorder %s79, 1
        %s1144 = scalar_select %p1143, %s79, 1
        %s1145 = smul.addr %s1144, 16
        %s1146 = smul.addr %s1145, 4
        %s1147 = scalar_lea.vmem %s23, %s1146
        %p1148 = pneg %p336
        %p1149 = pneg %p333
        %p1150 = scmp.lt.s32.totalorder %s79, 1
        %s1151 = scalar_select %p1150, %s79, 1
        %s1152 = smul.addr %s1151, 16
        %s1153 = smul.addr %s1152, 4
        %s1154 = scalar_lea.vmem %s25, %s1153
        %p1155 = pneg %p362
        %p1156 = pneg %p359
        %p1157 = scmp.lt.s32.totalorder %s79, 1
        %s1158 = scalar_select %p1157, %s79, 1
        %s1159 = smul.addr %s1158, 16
        %s1160 = smul.addr %s1159, 4
        %s1161 = scalar_lea.vmem %s27, %s1160
        %p1162 = pneg %p388
        %p1163 = pneg %p385
        %p1164 = scmp.lt.s32.totalorder %s79, 1
        %s1165 = scalar_select %p1164, %s79, 1
        %s1166 = smul.addr %s1165, 16
        %s1167 = smul.addr %s1166, 4
        %s1168 = scalar_lea.vmem %s29, %s1167
        %p1169 = pneg %p414
        %p1170 = pneg %p411
        %p1171 = scmp.lt.s32.totalorder %s79, 1
        %s1172 = scalar_select %p1171, %s79, 1
        %s1173 = scalar_lea.vmem %s31, %s1172
        %p1174 = pneg %p440
        %p1175 = pneg %p437
        %p1176 = scmp.lt.s32.totalorder %s79, 1
        %s1177 = scalar_select %p1176, %s79, 1
        %s1178 = scalar_lea.vmem %s33, %s1177
        %p1179 = pneg %p466
        %p1180 = pneg %p463
        %p1181 = scmp.lt.s32.totalorder %s79, 1
        %s1182 = scalar_select %p1181, %s79, 1
        %s1183 = scalar_lea.vmem %s35, %s1182
        %p1184 = pneg %p492
        %p1185 = pneg %p489
        %p1186 = scmp.lt.s32.totalorder %s79, 1
        %s1187 = scalar_select %p1186, %s79, 1
        %s1188 = scalar_lea.vmem %s37, %s1187
        %p1189 = pneg %p518
        %p1190 = pneg %p515
        %p1191 = scmp.lt.s32.totalorder %s79, 1
        %s1192 = scalar_select %p1191, %s79, 1
        %s1193 = scalar_lea.vmem %s39, %s1192
        %p1194 = pneg %p544
        %p1195 = pneg %p541
        %p1196 = scmp.lt.s32.totalorder %s79, 1
        %s1197 = scalar_select %p1196, %s79, 1
        %s1198 = smul.addr %s1197, 16
        %s1199 = smul.addr %s1198, 4
        %s1200 = scalar_lea.vmem %s41, %s1199
        %p1201 = pneg %p570
        %p1202 = pneg %p567
        %p1203 = scmp.lt.s32.totalorder %s79, 1
        %s1204 = scalar_select %p1203, %s79, 1
        %s1205 = smul.addr %s1204, 16
        %s1206 = smul.addr %s1205, 4
        %s1207 = scalar_lea.vmem %s43, %s1206
        %p1208 = pneg %p596
        %p1209 = pneg %p593
        %p1210 = scmp.lt.s32.totalorder %s79, 1
        %s1211 = scalar_select %p1210, %s79, 1
        %s1212 = smul.addr %s1211, 16
        %s1213 = smul.addr %s1212, 4
        %s1214 = scalar_lea.vmem %s45, %s1213
        %p1215 = pneg %p622
        %p1216 = pneg %p619
        %p1217 = scmp.lt.s32.totalorder %s79, 1
        %s1218 = scalar_select %p1217, %s79, 1
        %s1219 = smul.addr %s1218, 16
        %s1220 = smul.addr %s1219, 4
        %s1221 = scalar_lea.vmem %s47, %s1220
        %p1222 = pneg %p648
        %p1223 = pneg %p645
        %p1224 = scmp.lt.s32.totalorder %s79, 1
        %s1225 = scalar_select %p1224, %s79, 1
        %s1226 = scalar_lea.vmem %s49, %s1225
        %p1227 = pneg %p674
        %p1228 = pneg %p671
        %p1229 = scmp.lt.s32.totalorder %s79, 1
        %s1230 = scalar_select %p1229, %s79, 1
        %s1231 = scalar_lea.vmem %s51, %s1230
        %p1232 = pneg %p700
        %p1233 = pneg %p697
        %p1234 = scmp.lt.s32.totalorder %s79, 1
        %s1235 = scalar_select %p1234, %s79, 1
        %s1236 = scalar_lea.vmem %s53, %s1235
        %p1237 = pneg %p726
        %p1238 = pneg %p723
        %p1239 = scmp.lt.s32.totalorder %s79, 1
        %s1240 = scalar_select %p1239, %s79, 1
        %s1241 = scalar_lea.vmem %s55, %s1240
        %p1242 = pneg %p752
        %p1243 = pneg %p749
        %p1244 = scmp.lt.s32.totalorder %s79, 1
        %s1245 = scalar_select %p1244, %s79, 1
        %s1246 = scalar_lea.vmem %s57, %s1245
        %p1247 = pneg %p778
        %p1248 = pneg %p775
        %p1249 = scmp.lt.s32.totalorder %s79, 1
        %s1250 = scalar_select %p1249, %s79, 1
        %s1251 = smul.addr %s1250, 64
        %s1252 = smul.addr %s1251, 4
        %s1253 = scalar_lea.vmem %s59, %s1252
        %p1254 = pneg %p804
        %p1255 = pneg %p801
        %p1256 = scmp.lt.s32.totalorder %s79, 1
        %s1257 = scalar_select %p1256, %s79, 1
        %s1258 = smul.addr %s1257, 4
        %s1259 = scalar_lea.vmem %s61, %s1258
        %p1260 = pneg %p830
        %p1261 = pneg %p827
        %p1262 = scmp.lt.s32.totalorder %s79, 1
        %s1263 = scalar_select %p1262, %s79, 1
        %s1264 = smul.addr %s1263, 64
        %s1265 = smul.addr %s1264, 4
        %s1266 = scalar_lea.vmem %s63, %s1265
        %p1267 = pneg %p856
        %p1268 = pneg %p853
        %p1269 = scmp.lt.s32.totalorder %s79, 1
        %s1270 = scalar_select %p1269, %s79, 1
        %s1271 = scalar_lea.vmem %s65, %s1270
        %p1272 = pneg %p882
        %p1273 = pneg %p879
        %p1274 = pneg %p903
        %p1275 = pneg %p900
        %p1276 = scmp.lt.s32.totalorder %s79, 1
        %s1277 = scalar_select %p1276, %s79, 1
        %s1278 = scalar_lea.vmem %s21, %s1277
        %p1279 = scmp.lt.s32.totalorder %s79, 1
        %s1280 = scalar_select %p1279, %s79, 1
        %s1281 = smul.addr %s1280, 16
        %s1282 = smul.addr %s1281, 4
        %s1283 = scalar_lea.vmem %s23, %s1282
        %p1284 = scmp.lt.s32.totalorder %s79, 1
        %s1285 = scalar_select %p1284, %s79, 1
        %s1286 = smul.addr %s1285, 16
        %s1287 = smul.addr %s1286, 4
        %s1288 = scalar_lea.vmem %s25, %s1287
        %p1289 = scmp.lt.s32.totalorder %s79, 1
        %s1290 = scalar_select %p1289, %s79, 1
        %s1291 = smul.addr %s1290, 16
        %s1292 = smul.addr %s1291, 4
        %s1293 = scalar_lea.vmem %s27, %s1292
        %p1294 = scmp.lt.s32.totalorder %s79, 1
        %s1295 = scalar_select %p1294, %s79, 1
        %s1296 = smul.addr %s1295, 16
        %s1297 = smul.addr %s1296, 4
        %s1298 = scalar_lea.vmem %s29, %s1297
        %p1299 = scmp.lt.s32.totalorder %s79, 1
        %s1300 = scalar_select %p1299, %s79, 1
        %s1301 = scalar_lea.vmem %s31, %s1300
        %p1302 = scmp.lt.s32.totalorder %s79, 1
        %s1303 = scalar_select %p1302, %s79, 1
        %s1304 = scalar_lea.vmem %s33, %s1303
        %p1305 = scmp.lt.s32.totalorder %s79, 1
        %s1306 = scalar_select %p1305, %s79, 1
        %s1307 = scalar_lea.vmem %s35, %s1306
        %p1308 = scmp.lt.s32.totalorder %s79, 1
        %s1309 = scalar_select %p1308, %s79, 1
        %s1310 = scalar_lea.vmem %s37, %s1309
        %p1311 = scmp.lt.s32.totalorder %s79, 1
        %s1312 = scalar_select %p1311, %s79, 1
        %s1313 = scalar_lea.vmem %s39, %s1312
        %p1314 = scmp.lt.s32.totalorder %s79, 1
        %s1315 = scalar_select %p1314, %s79, 1
        %s1316 = smul.addr %s1315, 16
        %s1317 = smul.addr %s1316, 4
        %s1318 = scalar_lea.vmem %s41, %s1317
        %p1319 = scmp.lt.s32.totalorder %s79, 1
        %s1320 = scalar_select %p1319, %s79, 1
        %s1321 = smul.addr %s1320, 16
        %s1322 = smul.addr %s1321, 4
        %s1323 = scalar_lea.vmem %s43, %s1322
        %p1324 = scmp.lt.s32.totalorder %s79, 1
        %s1325 = scalar_select %p1324, %s79, 1
        %s1326 = smul.addr %s1325, 16
        %s1327 = smul.addr %s1326, 4
        %s1328 = scalar_lea.vmem %s45, %s1327
        %p1329 = scmp.lt.s32.totalorder %s79, 1
        %s1330 = scalar_select %p1329, %s79, 1
        %s1331 = smul.addr %s1330, 16
        %s1332 = smul.addr %s1331, 4
        %s1333 = scalar_lea.vmem %s47, %s1332
        %p1334 = scmp.lt.s32.totalorder %s79, 1
        %s1335 = scalar_select %p1334, %s79, 1
        %s1336 = scalar_lea.vmem %s49, %s1335
        %p1337 = scmp.lt.s32.totalorder %s79, 1
        %s1338 = scalar_select %p1337, %s79, 1
        %s1339 = scalar_lea.vmem %s51, %s1338
        %p1340 = scmp.lt.s32.totalorder %s79, 1
        %s1341 = scalar_select %p1340, %s79, 1
        %s1342 = scalar_lea.vmem %s53, %s1341
        %p1343 = scmp.lt.s32.totalorder %s79, 1
        %s1344 = scalar_select %p1343, %s79, 1
        %s1345 = scalar_lea.vmem %s55, %s1344
        %p1346 = scmp.lt.s32.totalorder %s79, 1
        %s1347 = scalar_select %p1346, %s79, 1
        %s1348 = scalar_lea.vmem %s57, %s1347
        %p1349 = scmp.lt.s32.totalorder %s79, 1
        %s1350 = scalar_select %p1349, %s79, 1
        %s1351 = smul.addr %s1350, 64
        %s1352 = smul.addr %s1351, 4
        %s1353 = scalar_lea.vmem %s59, %s1352
        %p1354 = scmp.lt.s32.totalorder %s79, 1
        %s1355 = scalar_select %p1354, %s79, 1
        %s1356 = smul.addr %s1355, 4
        %s1357 = scalar_lea.vmem %s61, %s1356
        %p1358 = scmp.lt.s32.totalorder %s79, 1
        %s1359 = scalar_select %p1358, %s79, 1
        %s1360 = smul.addr %s1359, 64
        %s1361 = smul.addr %s1360, 4
        %s1362 = scalar_lea.vmem %s63, %s1361
        %p1363 = scmp.lt.s32.totalorder %s79, 1
        %s1364 = scalar_select %p1363, %s79, 1
        %s1365 = scalar_lea.vmem %s65, %s1364
        %p1367 = scmp.eq.s32.totalorder %s79, 0
        // Predicated region
        $region153: #{t5_decoder_forward.1} parent=151 // pred_check
          %p1368 = pneg %p1367
        $region154: #{t5_decoder_forward.1} parent=151 // pred_check_branch
          %1370 = sbr.rel (%p1368) target = $region156
        $region155: #{t5_decoder_forward.1} parent=151 // pred_region
          %v1371 = vld [vmem:[%s1] sm:$0xff]
          %v1372 = vld [vmem:[%s1 + $0x8] sm:$0xff]
          %1373 = vst [vmem:[#allocation2] sm:$0xff] %v1371
          %1374 = vst [vmem:[#allocation2 + $0x8] sm:$0xff] %v1372
        $region156: #{t5_decoder_forward.1} parent=151 // pred_fallthru
          _
        %v1375 = vld [vmem:[#allocation2] sm:$0xff]
        %v1376 = vld [vmem:[#allocation2 + $0x8] sm:$0xff]
        %v1377 = vld [vmem:[%s3] sm:$0xf]
        %v1378 = vld [vmem:[%s3 + $0x4] sm:$0xf]
        %v1379 = vld [vmem:[%s3 + $0x8] sm:$0xf]
        %v1380 = vld [vmem:[%s5] sm:$0x1]
        %v1381 = vld [vmem:[%s5 + $0x1] sm:$0x1]
        %v1382 = vld [vmem:[%s5 + $0x2] sm:$0x1]
        %v1383 = vld [vmem:[%s5 + $0x3] sm:$0x1]
        %v1384 = vld [vmem:[%s5 + $0x4] sm:$0x1]
        %v1385 = vld [vmem:[%s5 + $0x5] sm:$0x1]
        %v1386 = vld [vmem:[%s5 + $0x6] sm:$0x1]
        %v1387 = vld [vmem:[%s5 + $0x7] sm:$0x1]
        %v1388 = vld [vmem:[%s7] sm:$0x1]
        %v1389 = vld [vmem:[%s7 + $0x1] sm:$0x1]
        %v1390 = vld [vmem:[%s7 + $0x2] sm:$0x1]
        %v1391 = vld [vmem:[%s7 + $0x3] sm:$0x1]
        %v1392 = vld [vmem:[%s7 + $0x4] sm:$0x1]
        %v1393 = vld [vmem:[%s7 + $0x5] sm:$0x1]
        %v1394 = vld [vmem:[%s7 + $0x6] sm:$0x1]
        %v1395 = vld [vmem:[%s7 + $0x7] sm:$0x1]
        %v1396 = vld [vmem:[%s9] sm:$0xff]
        %v1397 = vld [vmem:[%s11] sm:$0xff]
        %v1398 = vld [vmem:[%s13] sm:$0xff]
        %v1399 = vld [vmem:[%s15] sm:$0xff]
        %v1400 = vld [vmem:[%s15 + $0x8] sm:$0xf]
        %v1401 = vld [vmem:[%s17] sm:$0xff]
        %v1402 = vld [vmem:[%s17 + $0x8] sm:$0xf]
        %v1403 = vld [vmem:[%s19] sm:$0xff]
        %v1404 = vld [vmem:[%s19 + $0x8] sm:$0xf]
        %v1405 = vlaneseq
        %v1406 = vshrl.u32 %v1405, 7
        %v1407 = vlaneseq
        %v1408 = vand.u32 %v1407, 127
        %vm1409 = vcmp.gt.s32.totalorder %v1408, %v1406
        %v1410 = vsel %vm1409, -1e+09, 0.0
        %v1411 = vmul.f32 %v1375, %v1375
        %v1412 = vmul.f32 %v1376, %v1376
        %1413 = vadd.xlane.f32.xlu0 %v1411
        %v1414 = vpop.xlane.xlu0 %1413
        %1415 = vadd.xlane.f32.xlu0 %v1412
        %v1416 = vpop.xlane.xlu0 %1415
        %v1417 = vrcp.pop 128.0
        %v1418 = vmul.f32 %v1414, %v1417
        %v1419 = vmul.f32 %v1416, %v1417
        %v1420 = vadd.f32 %v1418, 1e-06
        %v1421 = vadd.f32 %v1419, 1e-06
        %v1422 = vrsqrt.pop %v1420
        %v1423 = vrsqrt.pop %v1421
        %v1424 = vmul.f32 %v1375, %v1422
        %v1425 = vmul.f32 %v1376, %v1423
        %v1426 = vld [vmem:[%s1278] sm:$0x1]
        %v1428 = vlaneseq
        %v1429 = vshrl.u32 %v1428, 7
        %v1430 = vsub.s32 0, %v1429
        %v1431 = vrot.slane %v1426, %v1430
        %v1433 = vmul.f32 %v1424, %v1431
        %v1434 = vmul.f32 %v1425, %v1431
        %v1435 = vpack.c.bf16 %v1434, %v1433
        %v1436 = vld [vmem:[%s1283] sm:$0xf]
        %v1437 = vld [vmem:[%s1283 + $0x4] sm:$0xf]
        %v1438 = vld [vmem:[%s1283 + $0x8] sm:$0xf]
        %v1439 = vld [vmem:[%s1283 + $0xc] sm:$0xf]
        %v1440 = vld [vmem:[%s1283 + $0x10] sm:$0xf]
        %v1441 = vld [vmem:[%s1283 + $0x14] sm:$0xf]
        %v1442 = vld [vmem:[%s1283 + $0x18] sm:$0xf]
        %v1443 = vld [vmem:[%s1283 + $0x1c] sm:$0xf]
        %v1444 = vld [vmem:[%s1283 + $0x20] sm:$0xf]
        %v1445 = vld [vmem:[%s1283 + $0x24] sm:$0xf]
        %v1446 = vld [vmem:[%s1283 + $0x28] sm:$0xf]
        %v1447 = vld [vmem:[%s1283 + $0x2c] sm:$0xf]
        %v1448 = vld [vmem:[%s1283 + $0x30] sm:$0xf]
        %v1449 = vld [vmem:[%s1283 + $0x34] sm:$0xf]
        %v1450 = vld [vmem:[%s1283 + $0x38] sm:$0xf]
        %v1451 = vld [vmem:[%s1283 + $0x3c] sm:$0xf]
        %v1452 = vld [vmem:[%s1301] sm:$0x1]
        %v1454 = vlaneseq
        %v1455 = vshrl.u32 %v1454, 7
        %v1456 = vsub.s32 0, %v1455
        %v1457 = vrot.slane %v1452, %v1456
        %v1475 = vunpack.c.l.b16 %v1436
        %v1476 = vunpack.c.l.b16 %v1437
        %v1477 = vunpack.c.l.b16 %v1438
        %v1478 = vunpack.c.l.b16 %v1439
        %v1479 = vunpack.c.l.b16 %v1440
        %v1480 = vunpack.c.l.b16 %v1441
        %v1481 = vunpack.c.l.b16 %v1442
        %v1482 = vunpack.c.l.b16 %v1443
        %v1483 = vunpack.c.l.b16 %v1444
        %v1484 = vunpack.c.l.b16 %v1445
        %v1485 = vunpack.c.l.b16 %v1446
        %v1486 = vunpack.c.l.b16 %v1447
        %v1487 = vunpack.c.l.b16 %v1448
        %v1488 = vunpack.c.l.b16 %v1449
        %v1489 = vunpack.c.l.b16 %v1450
        %v1490 = vunpack.c.l.b16 %v1451
        %v1491 = vpack.c.b16 %v1476, %v1475
        %v1492 = vpack.c.b16 %v1478, %v1477
        %v1493 = vpack.c.b16 %v1480, %v1479
        %v1494 = vpack.c.b16 %v1482, %v1481
        %v1495 = vpack.c.b16 %v1484, %v1483
        %v1496 = vpack.c.b16 %v1486, %v1485
        %v1497 = vpack.c.b16 %v1488, %v1487
        %v1498 = vpack.c.b16 %v1490, %v1489
        %1507 = vmatprep.subr.bf16.mxu0 0
        %1508 = vmatpush1.bf16.msra.mxu0 %v1498
        %1509 = vmatprep.subr.bf16.mxu0 0
        %1510 = vmatpush1.bf16.msra.mxu0 %v1497
        %1511 = vmatprep.subr.bf16.mxu0 0
        %1512 = vmatpush1.bf16.msra.mxu0 %v1496
        %1513 = vmatprep.subr.bf16.mxu0 0
        %1514 = vmatpush1.bf16.msra.mxu0 %v1495
        %1515 = vmatprep.subr.bf16.mxu0 0
        %1516 = vmatpush1.bf16.msra.mxu0 %v1494
        %1517 = vmatprep.subr.bf16.mxu0 0
        %1518 = vmatpush1.bf16.msra.mxu0 %v1493
        %1519 = vmatprep.subr.bf16.mxu0 0
        %1520 = vmatpush1.bf16.msra.mxu0 %v1492
        %1521 = vmatprep.subr.bf16.mxu0 0
        %1522 = vmatpush1.bf16.msra.mxu0 %v1491
        %1523 = vmatprep.subr.bf16.mxu0 0
        %1524 = vmatpush2.bf16.msra.mxu0 0
        %1525 = vmatprep.subr.bf16.mxu0 0
        %1526 = vmatpush2.bf16.msra.mxu0 0
        %1527 = vmatprep.subr.bf16.mxu0 0
        %1528 = vmatpush2.bf16.msra.mxu0 0
        %1529 = vmatprep.subr.bf16.mxu0 0
        %1530 = vmatpush2.bf16.msra.mxu0 0
        %1531 = vmatprep.subr.bf16.mxu0 0
        %1532 = vmatpush2.bf16.msra.mxu0 0
        %1533 = vmatprep.subr.bf16.mxu0 0
        %1534 = vmatpush2.bf16.msra.mxu0 0
        %1535 = vmatprep.subr.bf16.mxu0 0
        %1536 = vmatpush2.bf16.msra.mxu0 0
        %1537 = vmatprep.subr.bf16.mxu0 0
        %1538 = vmatpush2.bf16.msra.mxu0 0
        %1539 = vmatprep.mubr.bf16.mxu0 0
        %1540 = vmatmul.mubr.bf16.gmra.mxu0 %v1435
        %v1541 = vpop.f32.mrf.mxu0
        %v1542 = vadd.f32 %v1457, %v1541
        %v1543 = vpop.f32.mrf.mxu0
        %v1544 = vpop.f32.mrf.mxu0
        %v1545 = vadd.f32 %v1457, %v1544
        %v1546 = vpop.f32.mrf.mxu0
        %1547 = vdwg.mxu0
        %1548 = vrot.lane.b32.xlu0 %v1542, 127
        %v1549 = vpop.permute.xlu0 %1548
        %1550 = vrot.lane.b32.xlu0 %v1545, 127
        %v1551 = vpop.permute.xlu0 %1550
        %1552 = vrot.lane.b32.xlu0 %v1542, 1
        %v1553 = vpop.permute.xlu0 %1552
        %1554 = vrot.lane.b32.xlu0 %v1545, 1
        %v1555 = vpop.permute.xlu0 %1554
        %v1556 = vmul.f32 %v1542, %v1396
        %v1557 = vmul.f32 %v1545, %v1396
        %v1558 = vmul.f32 %v1549, %v1397
        %v1559 = vmul.f32 %v1551, %v1397
        %v1560 = vadd.f32 %v1556, %v1558
        %v1561 = vadd.f32 %v1557, %v1559
        %v1562 = vmul.f32 %v1553, %v1398
        %v1563 = vmul.f32 %v1555, %v1398
        %v1564 = vadd.f32 %v1560, %v1562
        %v1565 = vadd.f32 %v1561, %v1563
        %v1566 = vld [vmem:[%s1288] sm:$0xf]
        %v1567 = vld [vmem:[%s1288 + $0x4] sm:$0xf]
        %v1568 = vld [vmem:[%s1288 + $0x8] sm:$0xf]
        %v1569 = vld [vmem:[%s1288 + $0xc] sm:$0xf]
        %v1570 = vld [vmem:[%s1288 + $0x10] sm:$0xf]
        %v1571 = vld [vmem:[%s1288 + $0x14] sm:$0xf]
        %v1572 = vld [vmem:[%s1288 + $0x18] sm:$0xf]
        %v1573 = vld [vmem:[%s1288 + $0x1c] sm:$0xf]
        %v1574 = vld [vmem:[%s1288 + $0x20] sm:$0xf]
        %v1575 = vld [vmem:[%s1288 + $0x24] sm:$0xf]
        %v1576 = vld [vmem:[%s1288 + $0x28] sm:$0xf]
        %v1577 = vld [vmem:[%s1288 + $0x2c] sm:$0xf]
        %v1578 = vld [vmem:[%s1288 + $0x30] sm:$0xf]
        %v1579 = vld [vmem:[%s1288 + $0x34] sm:$0xf]
        %v1580 = vld [vmem:[%s1288 + $0x38] sm:$0xf]
        %v1581 = vld [vmem:[%s1288 + $0x3c] sm:$0xf]
        %v1582 = vld [vmem:[%s1304] sm:$0x1]
        %v1584 = vlaneseq
        %v1585 = vshrl.u32 %v1584, 7
        %v1586 = vsub.s32 0, %v1585
        %v1587 = vrot.slane %v1582, %v1586
        %v1605 = vunpack.c.l.b16 %v1566
        %v1606 = vunpack.c.l.b16 %v1567
        %v1607 = vunpack.c.l.b16 %v1568
        %v1608 = vunpack.c.l.b16 %v1569
        %v1609 = vunpack.c.l.b16 %v1570
        %v1610 = vunpack.c.l.b16 %v1571
        %v1611 = vunpack.c.l.b16 %v1572
        %v1612 = vunpack.c.l.b16 %v1573
        %v1613 = vunpack.c.l.b16 %v1574
        %v1614 = vunpack.c.l.b16 %v1575
        %v1615 = vunpack.c.l.b16 %v1576
        %v1616 = vunpack.c.l.b16 %v1577
        %v1617 = vunpack.c.l.b16 %v1578
        %v1618 = vunpack.c.l.b16 %v1579
        %v1619 = vunpack.c.l.b16 %v1580
        %v1620 = vunpack.c.l.b16 %v1581
        %v1621 = vpack.c.b16 %v1606, %v1605
        %v1622 = vpack.c.b16 %v1608, %v1607
        %v1623 = vpack.c.b16 %v1610, %v1609
        %v1624 = vpack.c.b16 %v1612, %v1611
        %v1625 = vpack.c.b16 %v1614, %v1613
        %v1626 = vpack.c.b16 %v1616, %v1615
        %v1627 = vpack.c.b16 %v1618, %v1617
        %v1628 = vpack.c.b16 %v1620, %v1619
        %1637 = vmatprep.subr.bf16.mxu0 0
        %1638 = vmatpush1.bf16.msra.mxu0 %v1628
        %1639 = vmatprep.subr.bf16.mxu0 0
        %1640 = vmatpush1.bf16.msra.mxu0 %v1627
        %1641 = vmatprep.subr.bf16.mxu0 0
        %1642 = vmatpush1.bf16.msra.mxu0 %v1626
        %1643 = vmatprep.subr.bf16.mxu0 0
        %1644 = vmatpush1.bf16.msra.mxu0 %v1625
        %1645 = vmatprep.subr.bf16.mxu0 0
        %1646 = vmatpush1.bf16.msra.mxu0 %v1624
        %1647 = vmatprep.subr.bf16.mxu0 0
        %1648 = vmatpush1.bf16.msra.mxu0 %v1623
        %1649 = vmatprep.subr.bf16.mxu0 0
        %1650 = vmatpush1.bf16.msra.mxu0 %v1622
        %1651 = vmatprep.subr.bf16.mxu0 0
        %1652 = vmatpush1.bf16.msra.mxu0 %v1621
        %1653 = vmatprep.subr.bf16.mxu0 0
        %1654 = vmatpush2.bf16.msra.mxu0 0
        %1655 = vmatprep.subr.bf16.mxu0 0
        %1656 = vmatpush2.bf16.msra.mxu0 0
        %1657 = vmatprep.subr.bf16.mxu0 0
        %1658 = vmatpush2.bf16.msra.mxu0 0
        %1659 = vmatprep.subr.bf16.mxu0 0
        %1660 = vmatpush2.bf16.msra.mxu0 0
        %1661 = vmatprep.subr.bf16.mxu0 0
        %1662 = vmatpush2.bf16.msra.mxu0 0
        %1663 = vmatprep.subr.bf16.mxu0 0
        %1664 = vmatpush2.bf16.msra.mxu0 0
        %1665 = vmatprep.subr.bf16.mxu0 0
        %1666 = vmatpush2.bf16.msra.mxu0 0
        %1667 = vmatprep.subr.bf16.mxu0 0
        %1668 = vmatpush2.bf16.msra.mxu0 0
        %1669 = vmatprep.mubr.bf16.mxu0 0
        %1670 = vmatmul.mubr.bf16.gmra.mxu0 %v1435
        %v1671 = vpop.f32.mrf.mxu0
        %v1672 = vadd.f32 %v1587, %v1671
        %v1673 = vpop.f32.mrf.mxu0
        %v1674 = vpop.f32.mrf.mxu0
        %v1675 = vadd.f32 %v1587, %v1674
        %v1676 = vpop.f32.mrf.mxu0
        %1677 = vdwg.mxu0
        %1678 = vrot.lane.b32.xlu0 %v1672, 127
        %v1679 = vpop.permute.xlu0 %1678
        %1680 = vrot.lane.b32.xlu0 %v1675, 127
        %v1681 = vpop.permute.xlu0 %1680
        %1682 = vrot.lane.b32.xlu0 %v1672, 1
        %v1683 = vpop.permute.xlu0 %1682
        %1684 = vrot.lane.b32.xlu0 %v1675, 1
        %v1685 = vpop.permute.xlu0 %1684
        %v1686 = vmul.f32 %v1672, %v1396
        %v1687 = vmul.f32 %v1675, %v1396
        %v1688 = vmul.f32 %v1679, %v1397
        %v1689 = vmul.f32 %v1681, %v1397
        %v1690 = vadd.f32 %v1686, %v1688
        %v1691 = vadd.f32 %v1687, %v1689
        %v1692 = vmul.f32 %v1683, %v1398
        %v1693 = vmul.f32 %v1685, %v1398
        %v1694 = vadd.f32 %v1690, %v1692
        %v1695 = vadd.f32 %v1691, %v1693
        %v1696 = vld [vmem:[%s1293] sm:$0xf]
        %v1697 = vld [vmem:[%s1293 + $0x4] sm:$0xf]
        %v1698 = vld [vmem:[%s1293 + $0x8] sm:$0xf]
        %v1699 = vld [vmem:[%s1293 + $0xc] sm:$0xf]
        %v1700 = vld [vmem:[%s1293 + $0x10] sm:$0xf]
        %v1701 = vld [vmem:[%s1293 + $0x14] sm:$0xf]
        %v1702 = vld [vmem:[%s1293 + $0x18] sm:$0xf]
        %v1703 = vld [vmem:[%s1293 + $0x1c] sm:$0xf]
        %v1704 = vld [vmem:[%s1293 + $0x20] sm:$0xf]
        %v1705 = vld [vmem:[%s1293 + $0x24] sm:$0xf]
        %v1706 = vld [vmem:[%s1293 + $0x28] sm:$0xf]
        %v1707 = vld [vmem:[%s1293 + $0x2c] sm:$0xf]
        %v1708 = vld [vmem:[%s1293 + $0x30] sm:$0xf]
        %v1709 = vld [vmem:[%s1293 + $0x34] sm:$0xf]
        %v1710 = vld [vmem:[%s1293 + $0x38] sm:$0xf]
        %v1711 = vld [vmem:[%s1293 + $0x3c] sm:$0xf]
        %v1712 = vld [vmem:[%s1307] sm:$0x1]
        %v1714 = vlaneseq
        %v1715 = vshrl.u32 %v1714, 7
        %v1716 = vsub.s32 0, %v1715
        %v1717 = vrot.slane %v1712, %v1716
        %v1735 = vunpack.c.l.b16 %v1696
        %v1736 = vunpack.c.l.b16 %v1697
        %v1737 = vunpack.c.l.b16 %v1698
        %v1738 = vunpack.c.l.b16 %v1699
        %v1739 = vunpack.c.l.b16 %v1700
        %v1740 = vunpack.c.l.b16 %v1701
        %v1741 = vunpack.c.l.b16 %v1702
        %v1742 = vunpack.c.l.b16 %v1703
        %v1743 = vunpack.c.l.b16 %v1704
        %v1744 = vunpack.c.l.b16 %v1705
        %v1745 = vunpack.c.l.b16 %v1706
        %v1746 = vunpack.c.l.b16 %v1707
        %v1747 = vunpack.c.l.b16 %v1708
        %v1748 = vunpack.c.l.b16 %v1709
        %v1749 = vunpack.c.l.b16 %v1710
        %v1750 = vunpack.c.l.b16 %v1711
        %v1751 = vpack.c.b16 %v1736, %v1735
        %v1752 = vpack.c.b16 %v1738, %v1737
        %v1753 = vpack.c.b16 %v1740, %v1739
        %v1754 = vpack.c.b16 %v1742, %v1741
        %v1755 = vpack.c.b16 %v1744, %v1743
        %v1756 = vpack.c.b16 %v1746, %v1745
        %v1757 = vpack.c.b16 %v1748, %v1747
        %v1758 = vpack.c.b16 %v1750, %v1749
        %1767 = vmatprep.subr.bf16.mxu0 0
        %1768 = vmatpush1.bf16.msra.mxu0 %v1758
        %1769 = vmatprep.subr.bf16.mxu0 0
        %1770 = vmatpush1.bf16.msra.mxu0 %v1757
        %1771 = vmatprep.subr.bf16.mxu0 0
        %1772 = vmatpush1.bf16.msra.mxu0 %v1756
        %1773 = vmatprep.subr.bf16.mxu0 0
        %1774 = vmatpush1.bf16.msra.mxu0 %v1755
        %1775 = vmatprep.subr.bf16.mxu0 0
        %1776 = vmatpush1.bf16.msra.mxu0 %v1754
        %1777 = vmatprep.subr.bf16.mxu0 0
        %1778 = vmatpush1.bf16.msra.mxu0 %v1753
        %1779 = vmatprep.subr.bf16.mxu0 0
        %1780 = vmatpush1.bf16.msra.mxu0 %v1752
        %1781 = vmatprep.subr.bf16.mxu0 0
        %1782 = vmatpush1.bf16.msra.mxu0 %v1751
        %1783 = vmatprep.subr.bf16.mxu0 0
        %1784 = vmatpush2.bf16.msra.mxu0 0
        %1785 = vmatprep.subr.bf16.mxu0 0
        %1786 = vmatpush2.bf16.msra.mxu0 0
        %1787 = vmatprep.subr.bf16.mxu0 0
        %1788 = vmatpush2.bf16.msra.mxu0 0
        %1789 = vmatprep.subr.bf16.mxu0 0
        %1790 = vmatpush2.bf16.msra.mxu0 0
        %1791 = vmatprep.subr.bf16.mxu0 0
        %1792 = vmatpush2.bf16.msra.mxu0 0
        %1793 = vmatprep.subr.bf16.mxu0 0
        %1794 = vmatpush2.bf16.msra.mxu0 0
        %1795 = vmatprep.subr.bf16.mxu0 0
        %1796 = vmatpush2.bf16.msra.mxu0 0
        %1797 = vmatprep.subr.bf16.mxu0 0
        %1798 = vmatpush2.bf16.msra.mxu0 0
        %1799 = vmatprep.mubr.bf16.mxu0 0
        %1800 = vmatmul.mubr.bf16.gmra.mxu0 %v1435
        %v1801 = vpop.f32.mrf.mxu0
        %v1802 = vadd.f32 %v1717, %v1801
        %v1803 = vpop.f32.mrf.mxu0
        %v1804 = vpop.f32.mrf.mxu0
        %v1805 = vadd.f32 %v1717, %v1804
        %v1806 = vpop.f32.mrf.mxu0
        %1807 = vdwg.mxu0
        %1810 = vrot.lane.b32.xlu0 %v1564, 96
        %v1811 = vpop.permute.xlu0 %1810
        %1812 = vrot.lane.b32.xlu0 %v1565, 96
        %v1813 = vpop.permute.xlu0 %1812
        %1816 = vrot.lane.b32.xlu0 %v1564, 64
        %v1817 = vpop.permute.xlu0 %1816
        %1818 = vrot.lane.b32.xlu0 %v1565, 64
        %v1819 = vpop.permute.xlu0 %1818
        %1822 = vrot.lane.b32.xlu0 %v1564, 32
        %v1823 = vpop.permute.xlu0 %1822
        %1824 = vrot.lane.b32.xlu0 %v1565, 32
        %v1825 = vpop.permute.xlu0 %1824
        %v1828 = vpack.c.bf16 %v1564, %v1564
        %v1829 = vpack.c.bf16 %v1565, %v1565
        %v1830 = vpack.c.bf16 %v1811, %v1811
        %v1831 = vpack.c.bf16 %v1813, %v1813
        %v1832 = vpack.c.bf16 %v1817, %v1817
        %v1833 = vpack.c.bf16 %v1819, %v1819
        %v1834 = vpack.c.bf16 %v1823, %v1823
        %v1835 = vpack.c.bf16 %v1825, %v1825
        %1838 = vrot.lane.b32.xlu0 %v1694, 96
        %v1839 = vpop.permute.xlu0 %1838
        %1840 = vrot.lane.b32.xlu0 %v1695, 96
        %v1841 = vpop.permute.xlu0 %1840
        %1844 = vrot.lane.b32.xlu0 %v1694, 64
        %v1845 = vpop.permute.xlu0 %1844
        %1846 = vrot.lane.b32.xlu0 %v1695, 64
        %v1847 = vpop.permute.xlu0 %1846
        %1850 = vrot.lane.b32.xlu0 %v1694, 32
        %v1851 = vpop.permute.xlu0 %1850
        %1852 = vrot.lane.b32.xlu0 %v1695, 32
        %v1853 = vpop.permute.xlu0 %1852
        %v1856 = vpack.c.bf16 %v1694, %v1694
        %v1857 = vpack.c.bf16 %v1695, %v1695
        %v1858 = vpack.c.bf16 %v1839, %v1839
        %v1859 = vpack.c.bf16 %v1841, %v1841
        %v1860 = vpack.c.bf16 %v1845, %v1845
        %v1861 = vpack.c.bf16 %v1847, %v1847
        %v1862 = vpack.c.bf16 %v1851, %v1851
        %v1863 = vpack.c.bf16 %v1853, %v1853
        %1866 = vrot.lane.b32.xlu0 %v1802, 96
        %v1867 = vpop.permute.xlu0 %1866
        %1868 = vrot.lane.b32.xlu0 %v1805, 96
        %v1869 = vpop.permute.xlu0 %1868
        %1872 = vrot.lane.b32.xlu0 %v1802, 64
        %v1873 = vpop.permute.xlu0 %1872
        %1874 = vrot.lane.b32.xlu0 %v1805, 64
        %v1875 = vpop.permute.xlu0 %1874
        %1878 = vrot.lane.b32.xlu0 %v1802, 32
        %v1879 = vpop.permute.xlu0 %1878
        %1880 = vrot.lane.b32.xlu0 %v1805, 32
        %v1881 = vpop.permute.xlu0 %1880
        %v1884 = vpack.c.bf16 %v1802, %v1802
        %v1885 = vpack.c.bf16 %v1805, %v1805
        %v1886 = vpack.c.bf16 %v1867, %v1867
        %v1887 = vpack.c.bf16 %v1869, %v1869
        %v1888 = vpack.c.bf16 %v1873, %v1873
        %v1889 = vpack.c.bf16 %v1875, %v1875
        %v1890 = vpack.c.bf16 %v1879, %v1879
        %v1891 = vpack.c.bf16 %v1881, %v1881
        %v1900 = vlaneseq
        %v1901 = vshrl.u32 %v1900, 7
        %v1902 = vsub.s32 0, %v1901
        %v1903 = vrot.slane %v1380, %v1902
        %v1904 = vlaneseq
        %v1905 = vshrl.u32 %v1904, 7
        %v1906 = vsub.s32 0, %v1905
        %v1907 = vrot.slane %v1381, %v1906
        %v1908 = vlaneseq
        %v1909 = vshrl.u32 %v1908, 7
        %v1910 = vsub.s32 0, %v1909
        %v1911 = vrot.slane %v1382, %v1910
        %v1912 = vlaneseq
        %v1913 = vshrl.u32 %v1912, 7
        %v1914 = vsub.s32 0, %v1913
        %v1915 = vrot.slane %v1383, %v1914
        %v1916 = vlaneseq
        %v1917 = vshrl.u32 %v1916, 7
        %v1918 = vsub.s32 0, %v1917
        %v1919 = vrot.slane %v1384, %v1918
        %v1920 = vlaneseq
        %v1921 = vshrl.u32 %v1920, 7
        %v1922 = vsub.s32 0, %v1921
        %v1923 = vrot.slane %v1385, %v1922
        %v1924 = vlaneseq
        %v1925 = vshrl.u32 %v1924, 7
        %v1926 = vsub.s32 0, %v1925
        %v1927 = vrot.slane %v1386, %v1926
        %v1928 = vlaneseq
        %v1929 = vshrl.u32 %v1928, 7
        %v1930 = vsub.s32 0, %v1929
        %v1931 = vrot.slane %v1387, %v1930
        %vm1940 = vcmask 261120
        %v1942 = vsel %vm1940, %v1828, 0
        %v1945 = vsel %vm1940, %v1856, 0
        %1947 = vmatprep.subr.bf16.mxu0 0
        %1948 = vmatpush1.bf16.xpose.msra.mxu0 0
        %1949 = vmatprep.subr.bf16.mxu0 0
        %1950 = vmatpush1.bf16.xpose.msra.mxu0 0
        %1951 = vmatprep.subr.bf16.mxu0 0
        %1952 = vmatpush1.bf16.xpose.msra.mxu0 0
        %1953 = vmatprep.subr.bf16.mxu0 0
        %1954 = vmatpush1.bf16.xpose.msra.mxu0 0
        %1955 = vmatprep.subr.bf16.mxu0 0
        %1956 = vmatpush1.bf16.xpose.msra.mxu0 0
        %1957 = vmatprep.subr.bf16.mxu0 0
        %1958 = vmatpush1.bf16.xpose.msra.mxu0 0
        %1959 = vmatprep.subr.bf16.mxu0 0
        %1960 = vmatpush1.bf16.xpose.msra.mxu0 0
        %1961 = vmatprep.subr.bf16.mxu0 0
        %1962 = vmatpush1.bf16.xpose.msra.mxu0 %v1945
        %1963 = vmatprep.subr.bf16.mxu0 0
        %1964 = vmatpush2.bf16.xpose.msra.mxu0 0
        %1965 = vmatprep.subr.bf16.mxu0 0
        %1966 = vmatpush2.bf16.xpose.msra.mxu0 0
        %1967 = vmatprep.subr.bf16.mxu0 0
        %1968 = vmatpush2.bf16.xpose.msra.mxu0 0
        %1969 = vmatprep.subr.bf16.mxu0 0
        %1970 = vmatpush2.bf16.xpose.msra.mxu0 0
        %1971 = vmatprep.subr.bf16.mxu0 0
        %1972 = vmatpush2.bf16.xpose.msra.mxu0 0
        %1973 = vmatprep.subr.bf16.mxu0 0
        %1974 = vmatpush2.bf16.xpose.msra.mxu0 0
        %1975 = vmatprep.subr.bf16.mxu0 0
        %1976 = vmatpush2.bf16.xpose.msra.mxu0 0
        %1977 = vmatprep.subr.bf16.mxu0 0
        %1978 = vmatpush2.bf16.xpose.msra.mxu0 0
        %1979 = vmatprep.mubr.bf16.mxu0 0
        %1980 = vmatmul.mubr.bf16.gmra.mxu0 %v1942
        %v1981 = vpop.f32.mrf.mxu0
        %v1982 = vadd.f32 %v1903, %v1981
        %v1983 = vpop.f32.mrf.mxu0
        %v1984 = vpop.f32.mrf.mxu0
        %v1985 = vpop.f32.mrf.mxu0
        %1986 = vdwg.mxu0
        %v1988 = vsel %vm1940, %v1829, 0
        %v1991 = vsel %vm1940, %v1857, 0
        %1993 = vmatprep.subr.bf16.mxu0 0
        %1994 = vmatpush1.bf16.xpose.msra.mxu0 0
        %1995 = vmatprep.subr.bf16.mxu0 0
        %1996 = vmatpush1.bf16.xpose.msra.mxu0 0
        %1997 = vmatprep.subr.bf16.mxu0 0
        %1998 = vmatpush1.bf16.xpose.msra.mxu0 0
        %1999 = vmatprep.subr.bf16.mxu0 0
        %2000 = vmatpush1.bf16.xpose.msra.mxu0 0
        %2001 = vmatprep.subr.bf16.mxu0 0
        %2002 = vmatpush1.bf16.xpose.msra.mxu0 0
        %2003 = vmatprep.subr.bf16.mxu0 0
        %2004 = vmatpush1.bf16.xpose.msra.mxu0 0
        %2005 = vmatprep.subr.bf16.mxu0 0
        %2006 = vmatpush1.bf16.xpose.msra.mxu0 0
        %2007 = vmatprep.subr.bf16.mxu0 0
        %2008 = vmatpush1.bf16.xpose.msra.mxu0 %v1991
        %2009 = vmatprep.subr.bf16.mxu0 0
        %2010 = vmatpush2.bf16.xpose.msra.mxu0 0
        %2011 = vmatprep.subr.bf16.mxu0 0
        %2012 = vmatpush2.bf16.xpose.msra.mxu0 0
        %2013 = vmatprep.subr.bf16.mxu0 0
        %2014 = vmatpush2.bf16.xpose.msra.mxu0 0
        %2015 = vmatprep.subr.bf16.mxu0 0
        %2016 = vmatpush2.bf16.xpose.msra.mxu0 0
        %2017 = vmatprep.subr.bf16.mxu0 0
        %2018 = vmatpush2.bf16.xpose.msra.mxu0 0
        %2019 = vmatprep.subr.bf16.mxu0 0
        %2020 = vmatpush2.bf16.xpose.msra.mxu0 0
        %2021 = vmatprep.subr.bf16.mxu0 0
        %2022 = vmatpush2.bf16.xpose.msra.mxu0 0
        %2023 = vmatprep.subr.bf16.mxu0 0
        %2024 = vmatpush2.bf16.xpose.msra.mxu0 0
        %2025 = vmatprep.mubr.bf16.mxu0 0
        %2026 = vmatmul.mubr.bf16.gmra.mxu0 %v1988
        %v2027 = vpop.f32.mrf.mxu0
        %v2028 = vadd.f32 %v1907, %v2027
        %v2029 = vpop.f32.mrf.mxu0
        %v2030 = vpop.f32.mrf.mxu0
        %v2031 = vpop.f32.mrf.mxu0
        %2032 = vdwg.mxu0
        %v2034 = vsel %vm1940, %v1830, 0
        %v2037 = vsel %vm1940, %v1858, 0
        %2039 = vmatprep.subr.bf16.mxu0 0
        %2040 = vmatpush1.bf16.xpose.msra.mxu0 0
        %2041 = vmatprep.subr.bf16.mxu0 0
        %2042 = vmatpush1.bf16.xpose.msra.mxu0 0
        %2043 = vmatprep.subr.bf16.mxu0 0
        %2044 = vmatpush1.bf16.xpose.msra.mxu0 0
        %2045 = vmatprep.subr.bf16.mxu0 0
        %2046 = vmatpush1.bf16.xpose.msra.mxu0 0
        %2047 = vmatprep.subr.bf16.mxu0 0
        %2048 = vmatpush1.bf16.xpose.msra.mxu0 0
        %2049 = vmatprep.subr.bf16.mxu0 0
        %2050 = vmatpush1.bf16.xpose.msra.mxu0 0
        %2051 = vmatprep.subr.bf16.mxu0 0
        %2052 = vmatpush1.bf16.xpose.msra.mxu0 0
        %2053 = vmatprep.subr.bf16.mxu0 0
        %2054 = vmatpush1.bf16.xpose.msra.mxu0 %v2037
        %2055 = vmatprep.subr.bf16.mxu0 0
        %2056 = vmatpush2.bf16.xpose.msra.mxu0 0
        %2057 = vmatprep.subr.bf16.mxu0 0
        %2058 = vmatpush2.bf16.xpose.msra.mxu0 0
        %2059 = vmatprep.subr.bf16.mxu0 0
        %2060 = vmatpush2.bf16.xpose.msra.mxu0 0
        %2061 = vmatprep.subr.bf16.mxu0 0
        %2062 = vmatpush2.bf16.xpose.msra.mxu0 0
        %2063 = vmatprep.subr.bf16.mxu0 0
        %2064 = vmatpush2.bf16.xpose.msra.mxu0 0
        %2065 = vmatprep.subr.bf16.mxu0 0
        %2066 = vmatpush2.bf16.xpose.msra.mxu0 0
        %2067 = vmatprep.subr.bf16.mxu0 0
        %2068 = vmatpush2.bf16.xpose.msra.mxu0 0
        %2069 = vmatprep.subr.bf16.mxu0 0
        %2070 = vmatpush2.bf16.xpose.msra.mxu0 0
        %2071 = vmatprep.mubr.bf16.mxu0 0
        %2072 = vmatmul.mubr.bf16.gmra.mxu0 %v2034
        %v2073 = vpop.f32.mrf.mxu0
        %v2074 = vadd.f32 %v1911, %v2073
        %v2075 = vpop.f32.mrf.mxu0
        %v2076 = vpop.f32.mrf.mxu0
        %v2077 = vpop.f32.mrf.mxu0
        %2078 = vdwg.mxu0
        %v2080 = vsel %vm1940, %v1831, 0
        %v2083 = vsel %vm1940, %v1859, 0
        %2085 = vmatprep.subr.bf16.mxu0 0
        %2086 = vmatpush1.bf16.xpose.msra.mxu0 0
        %2087 = vmatprep.subr.bf16.mxu0 0
        %2088 = vmatpush1.bf16.xpose.msra.mxu0 0
        %2089 = vmatprep.subr.bf16.mxu0 0
        %2090 = vmatpush1.bf16.xpose.msra.mxu0 0
        %2091 = vmatprep.subr.bf16.mxu0 0
        %2092 = vmatpush1.bf16.xpose.msra.mxu0 0
        %2093 = vmatprep.subr.bf16.mxu0 0
        %2094 = vmatpush1.bf16.xpose.msra.mxu0 0
        %2095 = vmatprep.subr.bf16.mxu0 0
        %2096 = vmatpush1.bf16.xpose.msra.mxu0 0
        %2097 = vmatprep.subr.bf16.mxu0 0
        %2098 = vmatpush1.bf16.xpose.msra.mxu0 0
        %2099 = vmatprep.subr.bf16.mxu0 0
        %2100 = vmatpush1.bf16.xpose.msra.mxu0 %v2083
        %2101 = vmatprep.subr.bf16.mxu0 0
        %2102 = vmatpush2.bf16.xpose.msra.mxu0 0
        %2103 = vmatprep.subr.bf16.mxu0 0
        %2104 = vmatpush2.bf16.xpose.msra.mxu0 0
        %2105 = vmatprep.subr.bf16.mxu0 0
        %2106 = vmatpush2.bf16.xpose.msra.mxu0 0
        %2107 = vmatprep.subr.bf16.mxu0 0
        %2108 = vmatpush2.bf16.xpose.msra.mxu0 0
        %2109 = vmatprep.subr.bf16.mxu0 0
        %2110 = vmatpush2.bf16.xpose.msra.mxu0 0
        %2111 = vmatprep.subr.bf16.mxu0 0
        %2112 = vmatpush2.bf16.xpose.msra.mxu0 0
        %2113 = vmatprep.subr.bf16.mxu0 0
        %2114 = vmatpush2.bf16.xpose.msra.mxu0 0
        %2115 = vmatprep.subr.bf16.mxu0 0
        %2116 = vmatpush2.bf16.xpose.msra.mxu0 0
        %2117 = vmatprep.mubr.bf16.mxu0 0
        %2118 = vmatmul.mubr.bf16.gmra.mxu0 %v2080
        %v2119 = vpop.f32.mrf.mxu0
        %v2120 = vadd.f32 %v1915, %v2119
        %v2121 = vpop.f32.mrf.mxu0
        %v2122 = vpop.f32.mrf.mxu0
        %v2123 = vpop.f32.mrf.mxu0
        %2124 = vdwg.mxu0
        %v2126 = vsel %vm1940, %v1832, 0
        %v2129 = vsel %vm1940, %v1860, 0
        %2131 = vmatprep.subr.bf16.mxu0 0
        %2132 = vmatpush1.bf16.xpose.msra.mxu0 0
        %2133 = vmatprep.subr.bf16.mxu0 0
        %2134 = vmatpush1.bf16.xpose.msra.mxu0 0
        %2135 = vmatprep.subr.bf16.mxu0 0
        %2136 = vmatpush1.bf16.xpose.msra.mxu0 0
        %2137 = vmatprep.subr.bf16.mxu0 0
        %2138 = vmatpush1.bf16.xpose.msra.mxu0 0
        %2139 = vmatprep.subr.bf16.mxu0 0
        %2140 = vmatpush1.bf16.xpose.msra.mxu0 0
        %2141 = vmatprep.subr.bf16.mxu0 0
        %2142 = vmatpush1.bf16.xpose.msra.mxu0 0
        %2143 = vmatprep.subr.bf16.mxu0 0
        %2144 = vmatpush1.bf16.xpose.msra.mxu0 0
        %2145 = vmatprep.subr.bf16.mxu0 0
        %2146 = vmatpush1.bf16.xpose.msra.mxu0 %v2129
        %2147 = vmatprep.subr.bf16.mxu0 0
        %2148 = vmatpush2.bf16.xpose.msra.mxu0 0
        %2149 = vmatprep.subr.bf16.mxu0 0
        %2150 = vmatpush2.bf16.xpose.msra.mxu0 0
        %2151 = vmatprep.subr.bf16.mxu0 0
        %2152 = vmatpush2.bf16.xpose.msra.mxu0 0
        %2153 = vmatprep.subr.bf16.mxu0 0
        %2154 = vmatpush2.bf16.xpose.msra.mxu0 0
        %2155 = vmatprep.subr.bf16.mxu0 0
        %2156 = vmatpush2.bf16.xpose.msra.mxu0 0
        %2157 = vmatprep.subr.bf16.mxu0 0
        %2158 = vmatpush2.bf16.xpose.msra.mxu0 0
        %2159 = vmatprep.subr.bf16.mxu0 0
        %2160 = vmatpush2.bf16.xpose.msra.mxu0 0
        %2161 = vmatprep.subr.bf16.mxu0 0
        %2162 = vmatpush2.bf16.xpose.msra.mxu0 0
        %2163 = vmatprep.mubr.bf16.mxu0 0
        %2164 = vmatmul.mubr.bf16.gmra.mxu0 %v2126
        %v2165 = vpop.f32.mrf.mxu0
        %v2166 = vadd.f32 %v1919, %v2165
        %v2167 = vpop.f32.mrf.mxu0
        %v2168 = vpop.f32.mrf.mxu0
        %v2169 = vpop.f32.mrf.mxu0
        %2170 = vdwg.mxu0
        %v2172 = vsel %vm1940, %v1833, 0
        %v2175 = vsel %vm1940, %v1861, 0
        %2177 = vmatprep.subr.bf16.mxu0 0
        %2178 = vmatpush1.bf16.xpose.msra.mxu0 0
        %2179 = vmatprep.subr.bf16.mxu0 0
        %2180 = vmatpush1.bf16.xpose.msra.mxu0 0
        %2181 = vmatprep.subr.bf16.mxu0 0
        %2182 = vmatpush1.bf16.xpose.msra.mxu0 0
        %2183 = vmatprep.subr.bf16.mxu0 0
        %2184 = vmatpush1.bf16.xpose.msra.mxu0 0
        %2185 = vmatprep.subr.bf16.mxu0 0
        %2186 = vmatpush1.bf16.xpose.msra.mxu0 0
        %2187 = vmatprep.subr.bf16.mxu0 0
        %2188 = vmatpush1.bf16.xpose.msra.mxu0 0
        %2189 = vmatprep.subr.bf16.mxu0 0
        %2190 = vmatpush1.bf16.xpose.msra.mxu0 0
        %2191 = vmatprep.subr.bf16.mxu0 0
        %2192 = vmatpush1.bf16.xpose.msra.mxu0 %v2175
        %2193 = vmatprep.subr.bf16.mxu0 0
        %2194 = vmatpush2.bf16.xpose.msra.mxu0 0
        %2195 = vmatprep.subr.bf16.mxu0 0
        %2196 = vmatpush2.bf16.xpose.msra.mxu0 0
        %2197 = vmatprep.subr.bf16.mxu0 0
        %2198 = vmatpush2.bf16.xpose.msra.mxu0 0
        %2199 = vmatprep.subr.bf16.mxu0 0
        %2200 = vmatpush2.bf16.xpose.msra.mxu0 0
        %2201 = vmatprep.subr.bf16.mxu0 0
        %2202 = vmatpush2.bf16.xpose.msra.mxu0 0
        %2203 = vmatprep.subr.bf16.mxu0 0
        %2204 = vmatpush2.bf16.xpose.msra.mxu0 0
        %2205 = vmatprep.subr.bf16.mxu0 0
        %2206 = vmatpush2.bf16.xpose.msra.mxu0 0
        %2207 = vmatprep.subr.bf16.mxu0 0
        %2208 = vmatpush2.bf16.xpose.msra.mxu0 0
        %2209 = vmatprep.mubr.bf16.mxu0 0
        %2210 = vmatmul.mubr.bf16.gmra.mxu0 %v2172
        %v2211 = vpop.f32.mrf.mxu0
        %v2212 = vadd.f32 %v1923, %v2211
        %v2213 = vpop.f32.mrf.mxu0
        %v2214 = vpop.f32.mrf.mxu0
        %v2215 = vpop.f32.mrf.mxu0
        %2216 = vdwg.mxu0
        %v2218 = vsel %vm1940, %v1834, 0
        %v2221 = vsel %vm1940, %v1862, 0
        %2223 = vmatprep.subr.bf16.mxu0 0
        %2224 = vmatpush1.bf16.xpose.msra.mxu0 0
        %2225 = vmatprep.subr.bf16.mxu0 0
        %2226 = vmatpush1.bf16.xpose.msra.mxu0 0
        %2227 = vmatprep.subr.bf16.mxu0 0
        %2228 = vmatpush1.bf16.xpose.msra.mxu0 0
        %2229 = vmatprep.subr.bf16.mxu0 0
        %2230 = vmatpush1.bf16.xpose.msra.mxu0 0
        %2231 = vmatprep.subr.bf16.mxu0 0
        %2232 = vmatpush1.bf16.xpose.msra.mxu0 0
        %2233 = vmatprep.subr.bf16.mxu0 0
        %2234 = vmatpush1.bf16.xpose.msra.mxu0 0
        %2235 = vmatprep.subr.bf16.mxu0 0
        %2236 = vmatpush1.bf16.xpose.msra.mxu0 0
        %2237 = vmatprep.subr.bf16.mxu0 0
        %2238 = vmatpush1.bf16.xpose.msra.mxu0 %v2221
        %2239 = vmatprep.subr.bf16.mxu0 0
        %2240 = vmatpush2.bf16.xpose.msra.mxu0 0
        %2241 = vmatprep.subr.bf16.mxu0 0
        %2242 = vmatpush2.bf16.xpose.msra.mxu0 0
        %2243 = vmatprep.subr.bf16.mxu0 0
        %2244 = vmatpush2.bf16.xpose.msra.mxu0 0
        %2245 = vmatprep.subr.bf16.mxu0 0
        %2246 = vmatpush2.bf16.xpose.msra.mxu0 0
        %2247 = vmatprep.subr.bf16.mxu0 0
        %2248 = vmatpush2.bf16.xpose.msra.mxu0 0
        %2249 = vmatprep.subr.bf16.mxu0 0
        %2250 = vmatpush2.bf16.xpose.msra.mxu0 0
        %2251 = vmatprep.subr.bf16.mxu0 0
        %2252 = vmatpush2.bf16.xpose.msra.mxu0 0
        %2253 = vmatprep.subr.bf16.mxu0 0
        %2254 = vmatpush2.bf16.xpose.msra.mxu0 0
        %2255 = vmatprep.mubr.bf16.mxu0 0
        %2256 = vmatmul.mubr.bf16.gmra.mxu0 %v2218
        %v2257 = vpop.f32.mrf.mxu0
        %v2258 = vadd.f32 %v1927, %v2257
        %v2259 = vpop.f32.mrf.mxu0
        %v2260 = vpop.f32.mrf.mxu0
        %v2261 = vpop.f32.mrf.mxu0
        %2262 = vdwg.mxu0
        %v2264 = vsel %vm1940, %v1835, 0
        %v2267 = vsel %vm1940, %v1863, 0
        %2269 = vmatprep.subr.bf16.mxu0 0
        %2270 = vmatpush1.bf16.xpose.msra.mxu0 0
        %2271 = vmatprep.subr.bf16.mxu0 0
        %2272 = vmatpush1.bf16.xpose.msra.mxu0 0
        %2273 = vmatprep.subr.bf16.mxu0 0
        %2274 = vmatpush1.bf16.xpose.msra.mxu0 0
        %2275 = vmatprep.subr.bf16.mxu0 0
        %2276 = vmatpush1.bf16.xpose.msra.mxu0 0
        %2277 = vmatprep.subr.bf16.mxu0 0
        %2278 = vmatpush1.bf16.xpose.msra.mxu0 0
        %2279 = vmatprep.subr.bf16.mxu0 0
        %2280 = vmatpush1.bf16.xpose.msra.mxu0 0
        %2281 = vmatprep.subr.bf16.mxu0 0
        %2282 = vmatpush1.bf16.xpose.msra.mxu0 0
        %2283 = vmatprep.subr.bf16.mxu0 0
        %2284 = vmatpush1.bf16.xpose.msra.mxu0 %v2267
        %2285 = vmatprep.subr.bf16.mxu0 0
        %2286 = vmatpush2.bf16.xpose.msra.mxu0 0
        %2287 = vmatprep.subr.bf16.mxu0 0
        %2288 = vmatpush2.bf16.xpose.msra.mxu0 0
        %2289 = vmatprep.subr.bf16.mxu0 0
        %2290 = vmatpush2.bf16.xpose.msra.mxu0 0
        %2291 = vmatprep.subr.bf16.mxu0 0
        %2292 = vmatpush2.bf16.xpose.msra.mxu0 0
        %2293 = vmatprep.subr.bf16.mxu0 0
        %2294 = vmatpush2.bf16.xpose.msra.mxu0 0
        %2295 = vmatprep.subr.bf16.mxu0 0
        %2296 = vmatpush2.bf16.xpose.msra.mxu0 0
        %2297 = vmatprep.subr.bf16.mxu0 0
        %2298 = vmatpush2.bf16.xpose.msra.mxu0 0
        %2299 = vmatprep.subr.bf16.mxu0 0
        %2300 = vmatpush2.bf16.xpose.msra.mxu0 0
        %2301 = vmatprep.mubr.bf16.mxu0 0
        %2302 = vmatmul.mubr.bf16.gmra.mxu0 %v2264
        %v2303 = vpop.f32.mrf.mxu0
        %v2304 = vadd.f32 %v1931, %v2303
        %v2305 = vpop.f32.mrf.mxu0
        %v2306 = vpop.f32.mrf.mxu0
        %v2307 = vpop.f32.mrf.mxu0
        %2308 = vdwg.mxu0
        %v2309 = vadd.f32 %v1982, %v1410
        %v2310 = vadd.f32 %v2028, %v1410
        %v2311 = vadd.f32 %v2074, %v1410
        %v2312 = vadd.f32 %v2120, %v1410
        %v2313 = vadd.f32 %v2166, %v1410
        %v2314 = vadd.f32 %v2212, %v1410
        %v2315 = vadd.f32 %v2258, %v1410
        %v2316 = vadd.f32 %v2304, %v1410
        %vm2317 = vcmask 64512
        %v2318 = vsel %vm2317, %v2309, -inf
        %2319 = vmax.xlane.f32.xlu0 %v2318
        %v2320 = vpop.xlane.xlu0 %2319
        %v2321 = vsel %vm2317, %v2310, -inf
        %2322 = vmax.xlane.f32.xlu0 %v2321
        %v2323 = vpop.xlane.xlu0 %2322
        %v2324 = vsel %vm2317, %v2311, -inf
        %2325 = vmax.xlane.f32.xlu0 %v2324
        %v2326 = vpop.xlane.xlu0 %2325
        %v2327 = vsel %vm2317, %v2312, -inf
        %2328 = vmax.xlane.f32.xlu0 %v2327
        %v2329 = vpop.xlane.xlu0 %2328
        %v2330 = vsel %vm2317, %v2313, -inf
        %2331 = vmax.xlane.f32.xlu0 %v2330
        %v2332 = vpop.xlane.xlu0 %2331
        %v2333 = vsel %vm2317, %v2314, -inf
        %2334 = vmax.xlane.f32.xlu0 %v2333
        %v2335 = vpop.xlane.xlu0 %2334
        %v2336 = vsel %vm2317, %v2315, -inf
        %2337 = vmax.xlane.f32.xlu0 %v2336
        %v2338 = vpop.xlane.xlu0 %2337
        %v2339 = vsel %vm2317, %v2316, -inf
        %2340 = vmax.xlane.f32.xlu0 %v2339
        %v2341 = vpop.xlane.xlu0 %2340
        %v2342 = vsub.f32 %v2309, %v2320
        %v2343 = vsub.f32 %v2310, %v2323
        %v2344 = vsub.f32 %v2311, %v2326
        %v2345 = vsub.f32 %v2312, %v2329
        %v2346 = vsub.f32 %v2313, %v2332
        %v2347 = vsub.f32 %v2314, %v2335
        %v2348 = vsub.f32 %v2315, %v2338
        %v2349 = vsub.f32 %v2316, %v2341
        %v2350 = vmul.f32 %v2342, 1.442695
        %v2351 = vpow.pop %v2350
        %v2352 = vmul.f32 %v2343, 1.442695
        %v2353 = vpow.pop %v2352
        %v2354 = vmul.f32 %v2344, 1.442695
        %v2355 = vpow.pop %v2354
        %v2356 = vmul.f32 %v2345, 1.442695
        %v2357 = vpow.pop %v2356
        %v2358 = vmul.f32 %v2346, 1.442695
        %v2359 = vpow.pop %v2358
        %v2360 = vmul.f32 %v2347, 1.442695
        %v2361 = vpow.pop %v2360
        %v2362 = vmul.f32 %v2348, 1.442695
        %v2363 = vpow.pop %v2362
        %v2364 = vmul.f32 %v2349, 1.442695
        %v2365 = vpow.pop %v2364
        %v2366 = vsel %vm2317, %v2351, 0.0
        %2367 = vadd.xlane.f32.xlu0 %v2366
        %v2368 = vpop.xlane.xlu0 %2367
        %v2369 = vsel %vm2317, %v2353, 0.0
        %2370 = vadd.xlane.f32.xlu0 %v2369
        %v2371 = vpop.xlane.xlu0 %2370
        %v2372 = vsel %vm2317, %v2355, 0.0
        %2373 = vadd.xlane.f32.xlu0 %v2372
        %v2374 = vpop.xlane.xlu0 %2373
        %v2375 = vsel %vm2317, %v2357, 0.0
        %2376 = vadd.xlane.f32.xlu0 %v2375
        %v2377 = vpop.xlane.xlu0 %2376
        %v2378 = vsel %vm2317, %v2359, 0.0
        %2379 = vadd.xlane.f32.xlu0 %v2378
        %v2380 = vpop.xlane.xlu0 %2379
        %v2381 = vsel %vm2317, %v2361, 0.0
        %2382 = vadd.xlane.f32.xlu0 %v2381
        %v2383 = vpop.xlane.xlu0 %2382
        %v2384 = vsel %vm2317, %v2363, 0.0
        %2385 = vadd.xlane.f32.xlu0 %v2384
        %v2386 = vpop.xlane.xlu0 %2385
        %v2387 = vsel %vm2317, %v2365, 0.0
        %2388 = vadd.xlane.f32.xlu0 %v2387
        %v2389 = vpop.xlane.xlu0 %2388
        %v2390 = vrcp.pop %v2368
        %v2391 = vrcp.pop %v2371
        %v2392 = vrcp.pop %v2374
        %v2393 = vrcp.pop %v2377
        %v2394 = vrcp.pop %v2380
        %v2395 = vrcp.pop %v2383
        %v2396 = vrcp.pop %v2386
        %v2397 = vrcp.pop %v2389
        %v2398 = vmul.f32 %v2351, %v2390
        %v2399 = vmul.f32 %v2353, %v2391
        %v2400 = vmul.f32 %v2355, %v2392
        %v2401 = vmul.f32 %v2357, %v2393
        %v2402 = vmul.f32 %v2359, %v2394
        %v2403 = vmul.f32 %v2361, %v2395
        %v2404 = vmul.f32 %v2363, %v2396
        %v2405 = vmul.f32 %v2365, %v2397
        %v2406 = vpack.c.bf16 %v2398, %v2398
        %v2407 = vpack.c.bf16 %v2399, %v2399
        %v2408 = vpack.c.bf16 %v2400, %v2400
        %v2409 = vpack.c.bf16 %v2401, %v2401
        %v2410 = vpack.c.bf16 %v2402, %v2402
        %v2411 = vpack.c.bf16 %v2403, %v2403
        %v2412 = vpack.c.bf16 %v2404, %v2404
        %v2413 = vpack.c.bf16 %v2405, %v2405
        %v2415 = vsel %vm2317, %v2406, 0
        %vm2417 = vcmask 1043456
        %v2419 = vsel %vm2417, %v1884, 0
        %2421 = vmatprep.subr.bf16.mxu0 0
        %2422 = vmatpush1.bf16.msra.mxu0 0
        %2423 = vmatprep.subr.bf16.mxu0 0
        %2424 = vmatpush1.bf16.msra.mxu0 0
        %2425 = vmatprep.subr.bf16.mxu0 0
        %2426 = vmatpush1.bf16.msra.mxu0 0
        %2427 = vmatprep.subr.bf16.mxu0 0
        %2428 = vmatpush1.bf16.msra.mxu0 0
        %2429 = vmatprep.subr.bf16.mxu0 0
        %2430 = vmatpush1.bf16.msra.mxu0 0
        %2431 = vmatprep.subr.bf16.mxu0 0
        %2432 = vmatpush1.bf16.msra.mxu0 0
        %2433 = vmatprep.subr.bf16.mxu0 0
        %2434 = vmatpush1.bf16.msra.mxu0 0
        %2435 = vmatprep.subr.bf16.mxu0 0
        %2436 = vmatpush1.bf16.msra.mxu0 %v2419
        %2437 = vmatprep.subr.bf16.mxu0 0
        %2438 = vmatpush2.bf16.msra.mxu0 0
        %2439 = vmatprep.subr.bf16.mxu0 0
        %2440 = vmatpush2.bf16.msra.mxu0 0
        %2441 = vmatprep.subr.bf16.mxu0 0
        %2442 = vmatpush2.bf16.msra.mxu0 0
        %2443 = vmatprep.subr.bf16.mxu0 0
        %2444 = vmatpush2.bf16.msra.mxu0 0
        %2445 = vmatprep.subr.bf16.mxu0 0
        %2446 = vmatpush2.bf16.msra.mxu0 0
        %2447 = vmatprep.subr.bf16.mxu0 0
        %2448 = vmatpush2.bf16.msra.mxu0 0
        %2449 = vmatprep.subr.bf16.mxu0 0
        %2450 = vmatpush2.bf16.msra.mxu0 0
        %2451 = vmatprep.subr.bf16.mxu0 0
        %2452 = vmatpush2.bf16.msra.mxu0 0
        %2453 = vmatprep.mubr.bf16.mxu0 0
        %2454 = vmatmul.mubr.bf16.gmra.mxu0 %v2415
        %v2455 = vpop.f32.mrf.mxu0
        %v2456 = vadd.f32 0.0, %v2455
        %v2457 = vpop.f32.mrf.mxu0
        %v2458 = vpop.f32.mrf.mxu0
        %v2459 = vpop.f32.mrf.mxu0
        %2460 = vdwg.mxu0
        %v2462 = vsel %vm2317, %v2407, 0
        %v2465 = vsel %vm2417, %v1885, 0
        %2467 = vmatprep.subr.bf16.mxu0 0
        %2468 = vmatpush1.bf16.msra.mxu0 0
        %2469 = vmatprep.subr.bf16.mxu0 0
        %2470 = vmatpush1.bf16.msra.mxu0 0
        %2471 = vmatprep.subr.bf16.mxu0 0
        %2472 = vmatpush1.bf16.msra.mxu0 0
        %2473 = vmatprep.subr.bf16.mxu0 0
        %2474 = vmatpush1.bf16.msra.mxu0 0
        %2475 = vmatprep.subr.bf16.mxu0 0
        %2476 = vmatpush1.bf16.msra.mxu0 0
        %2477 = vmatprep.subr.bf16.mxu0 0
        %2478 = vmatpush1.bf16.msra.mxu0 0
        %2479 = vmatprep.subr.bf16.mxu0 0
        %2480 = vmatpush1.bf16.msra.mxu0 0
        %2481 = vmatprep.subr.bf16.mxu0 0
        %2482 = vmatpush1.bf16.msra.mxu0 %v2465
        %2483 = vmatprep.subr.bf16.mxu0 0
        %2484 = vmatpush2.bf16.msra.mxu0 0
        %2485 = vmatprep.subr.bf16.mxu0 0
        %2486 = vmatpush2.bf16.msra.mxu0 0
        %2487 = vmatprep.subr.bf16.mxu0 0
        %2488 = vmatpush2.bf16.msra.mxu0 0
        %2489 = vmatprep.subr.bf16.mxu0 0
        %2490 = vmatpush2.bf16.msra.mxu0 0
        %2491 = vmatprep.subr.bf16.mxu0 0
        %2492 = vmatpush2.bf16.msra.mxu0 0
        %2493 = vmatprep.subr.bf16.mxu0 0
        %2494 = vmatpush2.bf16.msra.mxu0 0
        %2495 = vmatprep.subr.bf16.mxu0 0
        %2496 = vmatpush2.bf16.msra.mxu0 0
        %2497 = vmatprep.subr.bf16.mxu0 0
        %2498 = vmatpush2.bf16.msra.mxu0 0
        %2499 = vmatprep.mubr.bf16.mxu0 0
        %2500 = vmatmul.mubr.bf16.gmra.mxu0 %v2462
        %v2501 = vpop.f32.mrf.mxu0
        %v2502 = vadd.f32 0.0, %v2501
        %v2503 = vpop.f32.mrf.mxu0
        %v2504 = vpop.f32.mrf.mxu0
        %v2505 = vpop.f32.mrf.mxu0
        %2506 = vdwg.mxu0
        %v2508 = vsel %vm2317, %v2408, 0
        %v2511 = vsel %vm2417, %v1886, 0
        %2513 = vmatprep.subr.bf16.mxu0 0
        %2514 = vmatpush1.bf16.msra.mxu0 0
        %2515 = vmatprep.subr.bf16.mxu0 0
        %2516 = vmatpush1.bf16.msra.mxu0 0
        %2517 = vmatprep.subr.bf16.mxu0 0
        %2518 = vmatpush1.bf16.msra.mxu0 0
        %2519 = vmatprep.subr.bf16.mxu0 0
        %2520 = vmatpush1.bf16.msra.mxu0 0
        %2521 = vmatprep.subr.bf16.mxu0 0
        %2522 = vmatpush1.bf16.msra.mxu0 0
        %2523 = vmatprep.subr.bf16.mxu0 0
        %2524 = vmatpush1.bf16.msra.mxu0 0
        %2525 = vmatprep.subr.bf16.mxu0 0
        %2526 = vmatpush1.bf16.msra.mxu0 0
        %2527 = vmatprep.subr.bf16.mxu0 0
        %2528 = vmatpush1.bf16.msra.mxu0 %v2511
        %2529 = vmatprep.subr.bf16.mxu0 0
        %2530 = vmatpush2.bf16.msra.mxu0 0
        %2531 = vmatprep.subr.bf16.mxu0 0
        %2532 = vmatpush2.bf16.msra.mxu0 0
        %2533 = vmatprep.subr.bf16.mxu0 0
        %2534 = vmatpush2.bf16.msra.mxu0 0
        %2535 = vmatprep.subr.bf16.mxu0 0
        %2536 = vmatpush2.bf16.msra.mxu0 0
        %2537 = vmatprep.subr.bf16.mxu0 0
        %2538 = vmatpush2.bf16.msra.mxu0 0
        %2539 = vmatprep.subr.bf16.mxu0 0
        %2540 = vmatpush2.bf16.msra.mxu0 0
        %2541 = vmatprep.subr.bf16.mxu0 0
        %2542 = vmatpush2.bf16.msra.mxu0 0
        %2543 = vmatprep.subr.bf16.mxu0 0
        %2544 = vmatpush2.bf16.msra.mxu0 0
        %2545 = vmatprep.mubr.bf16.mxu0 0
        %2546 = vmatmul.mubr.bf16.gmra.mxu0 %v2508
        %v2547 = vpop.f32.mrf.mxu0
        %v2548 = vadd.f32 0.0, %v2547
        %v2549 = vpop.f32.mrf.mxu0
        %v2550 = vpop.f32.mrf.mxu0
        %v2551 = vpop.f32.mrf.mxu0
        %2552 = vdwg.mxu0
        %v2554 = vsel %vm2317, %v2409, 0
        %v2557 = vsel %vm2417, %v1887, 0
        %2559 = vmatprep.subr.bf16.mxu0 0
        %2560 = vmatpush1.bf16.msra.mxu0 0
        %2561 = vmatprep.subr.bf16.mxu0 0
        %2562 = vmatpush1.bf16.msra.mxu0 0
        %2563 = vmatprep.subr.bf16.mxu0 0
        %2564 = vmatpush1.bf16.msra.mxu0 0
        %2565 = vmatprep.subr.bf16.mxu0 0
        %2566 = vmatpush1.bf16.msra.mxu0 0
        %2567 = vmatprep.subr.bf16.mxu0 0
        %2568 = vmatpush1.bf16.msra.mxu0 0
        %2569 = vmatprep.subr.bf16.mxu0 0
        %2570 = vmatpush1.bf16.msra.mxu0 0
        %2571 = vmatprep.subr.bf16.mxu0 0
        %2572 = vmatpush1.bf16.msra.mxu0 0
        %2573 = vmatprep.subr.bf16.mxu0 0
        %2574 = vmatpush1.bf16.msra.mxu0 %v2557
        %2575 = vmatprep.subr.bf16.mxu0 0
        %2576 = vmatpush2.bf16.msra.mxu0 0
        %2577 = vmatprep.subr.bf16.mxu0 0
        %2578 = vmatpush2.bf16.msra.mxu0 0
        %2579 = vmatprep.subr.bf16.mxu0 0
        %2580 = vmatpush2.bf16.msra.mxu0 0
        %2581 = vmatprep.subr.bf16.mxu0 0
        %2582 = vmatpush2.bf16.msra.mxu0 0
        %2583 = vmatprep.subr.bf16.mxu0 0
        %2584 = vmatpush2.bf16.msra.mxu0 0
        %2585 = vmatprep.subr.bf16.mxu0 0
        %2586 = vmatpush2.bf16.msra.mxu0 0
        %2587 = vmatprep.subr.bf16.mxu0 0
        %2588 = vmatpush2.bf16.msra.mxu0 0
        %2589 = vmatprep.subr.bf16.mxu0 0
        %2590 = vmatpush2.bf16.msra.mxu0 0
        %2591 = vmatprep.mubr.bf16.mxu0 0
        %2592 = vmatmul.mubr.bf16.gmra.mxu0 %v2554
        %v2593 = vpop.f32.mrf.mxu0
        %v2594 = vadd.f32 0.0, %v2593
        %v2595 = vpop.f32.mrf.mxu0
        %v2596 = vpop.f32.mrf.mxu0
        %v2597 = vpop.f32.mrf.mxu0
        %2598 = vdwg.mxu0
        %v2600 = vsel %vm2317, %v2410, 0
        %v2603 = vsel %vm2417, %v1888, 0
        %2605 = vmatprep.subr.bf16.mxu0 0
        %2606 = vmatpush1.bf16.msra.mxu0 0
        %2607 = vmatprep.subr.bf16.mxu0 0
        %2608 = vmatpush1.bf16.msra.mxu0 0
        %2609 = vmatprep.subr.bf16.mxu0 0
        %2610 = vmatpush1.bf16.msra.mxu0 0
        %2611 = vmatprep.subr.bf16.mxu0 0
        %2612 = vmatpush1.bf16.msra.mxu0 0
        %2613 = vmatprep.subr.bf16.mxu0 0
        %2614 = vmatpush1.bf16.msra.mxu0 0
        %2615 = vmatprep.subr.bf16.mxu0 0
        %2616 = vmatpush1.bf16.msra.mxu0 0
        %2617 = vmatprep.subr.bf16.mxu0 0
        %2618 = vmatpush1.bf16.msra.mxu0 0
        %2619 = vmatprep.subr.bf16.mxu0 0
        %2620 = vmatpush1.bf16.msra.mxu0 %v2603
        %2621 = vmatprep.subr.bf16.mxu0 0
        %2622 = vmatpush2.bf16.msra.mxu0 0
        %2623 = vmatprep.subr.bf16.mxu0 0
        %2624 = vmatpush2.bf16.msra.mxu0 0
        %2625 = vmatprep.subr.bf16.mxu0 0
        %2626 = vmatpush2.bf16.msra.mxu0 0
        %2627 = vmatprep.subr.bf16.mxu0 0
        %2628 = vmatpush2.bf16.msra.mxu0 0
        %2629 = vmatprep.subr.bf16.mxu0 0
        %2630 = vmatpush2.bf16.msra.mxu0 0
        %2631 = vmatprep.subr.bf16.mxu0 0
        %2632 = vmatpush2.bf16.msra.mxu0 0
        %2633 = vmatprep.subr.bf16.mxu0 0
        %2634 = vmatpush2.bf16.msra.mxu0 0
        %2635 = vmatprep.subr.bf16.mxu0 0
        %2636 = vmatpush2.bf16.msra.mxu0 0
        %2637 = vmatprep.mubr.bf16.mxu0 0
        %2638 = vmatmul.mubr.bf16.gmra.mxu0 %v2600
        %v2639 = vpop.f32.mrf.mxu0
        %v2640 = vadd.f32 0.0, %v2639
        %v2641 = vpop.f32.mrf.mxu0
        %v2642 = vpop.f32.mrf.mxu0
        %v2643 = vpop.f32.mrf.mxu0
        %2644 = vdwg.mxu0
        %v2646 = vsel %vm2317, %v2411, 0
        %v2649 = vsel %vm2417, %v1889, 0
        %2651 = vmatprep.subr.bf16.mxu0 0
        %2652 = vmatpush1.bf16.msra.mxu0 0
        %2653 = vmatprep.subr.bf16.mxu0 0
        %2654 = vmatpush1.bf16.msra.mxu0 0
        %2655 = vmatprep.subr.bf16.mxu0 0
        %2656 = vmatpush1.bf16.msra.mxu0 0
        %2657 = vmatprep.subr.bf16.mxu0 0
        %2658 = vmatpush1.bf16.msra.mxu0 0
        %2659 = vmatprep.subr.bf16.mxu0 0
        %2660 = vmatpush1.bf16.msra.mxu0 0
        %2661 = vmatprep.subr.bf16.mxu0 0
        %2662 = vmatpush1.bf16.msra.mxu0 0
        %2663 = vmatprep.subr.bf16.mxu0 0
        %2664 = vmatpush1.bf16.msra.mxu0 0
        %2665 = vmatprep.subr.bf16.mxu0 0
        %2666 = vmatpush1.bf16.msra.mxu0 %v2649
        %2667 = vmatprep.subr.bf16.mxu0 0
        %2668 = vmatpush2.bf16.msra.mxu0 0
        %2669 = vmatprep.subr.bf16.mxu0 0
        %2670 = vmatpush2.bf16.msra.mxu0 0
        %2671 = vmatprep.subr.bf16.mxu0 0
        %2672 = vmatpush2.bf16.msra.mxu0 0
        %2673 = vmatprep.subr.bf16.mxu0 0
        %2674 = vmatpush2.bf16.msra.mxu0 0
        %2675 = vmatprep.subr.bf16.mxu0 0
        %2676 = vmatpush2.bf16.msra.mxu0 0
        %2677 = vmatprep.subr.bf16.mxu0 0
        %2678 = vmatpush2.bf16.msra.mxu0 0
        %2679 = vmatprep.subr.bf16.mxu0 0
        %2680 = vmatpush2.bf16.msra.mxu0 0
        %2681 = vmatprep.subr.bf16.mxu0 0
        %2682 = vmatpush2.bf16.msra.mxu0 0
        %2683 = vmatprep.mubr.bf16.mxu0 0
        %2684 = vmatmul.mubr.bf16.gmra.mxu0 %v2646
        %v2685 = vpop.f32.mrf.mxu0
        %v2686 = vadd.f32 0.0, %v2685
        %v2687 = vpop.f32.mrf.mxu0
        %v2688 = vpop.f32.mrf.mxu0
        %v2689 = vpop.f32.mrf.mxu0
        %2690 = vdwg.mxu0
        %v2692 = vsel %vm2317, %v2412, 0
        %v2695 = vsel %vm2417, %v1890, 0
        %2697 = vmatprep.subr.bf16.mxu0 0
        %2698 = vmatpush1.bf16.msra.mxu0 0
        %2699 = vmatprep.subr.bf16.mxu0 0
        %2700 = vmatpush1.bf16.msra.mxu0 0
        %2701 = vmatprep.subr.bf16.mxu0 0
        %2702 = vmatpush1.bf16.msra.mxu0 0
        %2703 = vmatprep.subr.bf16.mxu0 0
        %2704 = vmatpush1.bf16.msra.mxu0 0
        %2705 = vmatprep.subr.bf16.mxu0 0
        %2706 = vmatpush1.bf16.msra.mxu0 0
        %2707 = vmatprep.subr.bf16.mxu0 0
        %2708 = vmatpush1.bf16.msra.mxu0 0
        %2709 = vmatprep.subr.bf16.mxu0 0
        %2710 = vmatpush1.bf16.msra.mxu0 0
        %2711 = vmatprep.subr.bf16.mxu0 0
        %2712 = vmatpush1.bf16.msra.mxu0 %v2695
        %2713 = vmatprep.subr.bf16.mxu0 0
        %2714 = vmatpush2.bf16.msra.mxu0 0
        %2715 = vmatprep.subr.bf16.mxu0 0
        %2716 = vmatpush2.bf16.msra.mxu0 0
        %2717 = vmatprep.subr.bf16.mxu0 0
        %2718 = vmatpush2.bf16.msra.mxu0 0
        %2719 = vmatprep.subr.bf16.mxu0 0
        %2720 = vmatpush2.bf16.msra.mxu0 0
        %2721 = vmatprep.subr.bf16.mxu0 0
        %2722 = vmatpush2.bf16.msra.mxu0 0
        %2723 = vmatprep.subr.bf16.mxu0 0
        %2724 = vmatpush2.bf16.msra.mxu0 0
        %2725 = vmatprep.subr.bf16.mxu0 0
        %2726 = vmatpush2.bf16.msra.mxu0 0
        %2727 = vmatprep.subr.bf16.mxu0 0
        %2728 = vmatpush2.bf16.msra.mxu0 0
        %2729 = vmatprep.mubr.bf16.mxu0 0
        %2730 = vmatmul.mubr.bf16.gmra.mxu0 %v2692
        %v2731 = vpop.f32.mrf.mxu0
        %v2732 = vadd.f32 0.0, %v2731
        %v2733 = vpop.f32.mrf.mxu0
        %v2734 = vpop.f32.mrf.mxu0
        %v2735 = vpop.f32.mrf.mxu0
        %2736 = vdwg.mxu0
        %v2738 = vsel %vm2317, %v2413, 0
        %v2741 = vsel %vm2417, %v1891, 0
        %2743 = vmatprep.subr.bf16.mxu0 0
        %2744 = vmatpush1.bf16.msra.mxu0 0
        %2745 = vmatprep.subr.bf16.mxu0 0
        %2746 = vmatpush1.bf16.msra.mxu0 0
        %2747 = vmatprep.subr.bf16.mxu0 0
        %2748 = vmatpush1.bf16.msra.mxu0 0
        %2749 = vmatprep.subr.bf16.mxu0 0
        %2750 = vmatpush1.bf16.msra.mxu0 0
        %2751 = vmatprep.subr.bf16.mxu0 0
        %2752 = vmatpush1.bf16.msra.mxu0 0
        %2753 = vmatprep.subr.bf16.mxu0 0
        %2754 = vmatpush1.bf16.msra.mxu0 0
        %2755 = vmatprep.subr.bf16.mxu0 0
        %2756 = vmatpush1.bf16.msra.mxu0 0
        %2757 = vmatprep.subr.bf16.mxu0 0
        %2758 = vmatpush1.bf16.msra.mxu0 %v2741
        %2759 = vmatprep.subr.bf16.mxu0 0
        %2760 = vmatpush2.bf16.msra.mxu0 0
        %2761 = vmatprep.subr.bf16.mxu0 0
        %2762 = vmatpush2.bf16.msra.mxu0 0
        %2763 = vmatprep.subr.bf16.mxu0 0
        %2764 = vmatpush2.bf16.msra.mxu0 0
        %2765 = vmatprep.subr.bf16.mxu0 0
        %2766 = vmatpush2.bf16.msra.mxu0 0
        %2767 = vmatprep.subr.bf16.mxu0 0
        %2768 = vmatpush2.bf16.msra.mxu0 0
        %2769 = vmatprep.subr.bf16.mxu0 0
        %2770 = vmatpush2.bf16.msra.mxu0 0
        %2771 = vmatprep.subr.bf16.mxu0 0
        %2772 = vmatpush2.bf16.msra.mxu0 0
        %2773 = vmatprep.subr.bf16.mxu0 0
        %2774 = vmatpush2.bf16.msra.mxu0 0
        %2775 = vmatprep.mubr.bf16.mxu0 0
        %2776 = vmatmul.mubr.bf16.gmra.mxu0 %v2738
        %v2777 = vpop.f32.mrf.mxu0
        %v2778 = vadd.f32 0.0, %v2777
        %v2779 = vpop.f32.mrf.mxu0
        %v2780 = vpop.f32.mrf.mxu0
        %v2781 = vpop.f32.mrf.mxu0
        %2782 = vdwg.mxu0
        %2785 = vrot.lane.b32.xlu0 %v2548, 32
        %v2786 = vpop.permute.xlu0 %2785
        %2787 = vrot.lane.b32.xlu0 %v2594, 32
        %v2788 = vpop.permute.xlu0 %2787
        %2793 = vrot.lane.b32.xlu0 %v2640, 64
        %v2794 = vpop.permute.xlu0 %2793
        %2795 = vrot.lane.b32.xlu0 %v2686, 64
        %v2796 = vpop.permute.xlu0 %2795
        %2801 = vrot.lane.b32.xlu0 %v2732, 96
        %v2802 = vpop.permute.xlu0 %2801
        %2803 = vrot.lane.b32.xlu0 %v2778, 96
        %v2804 = vpop.permute.xlu0 %2803
        %v2807 = vsel %vm1940, %v2456, %v2786
        %v2808 = vsel %vm1940, %v2502, %v2788
        %vm2809 = vcmask 523264
        %v2810 = vsel %vm2809, %v2807, %v2794
        %v2811 = vsel %vm2809, %v2808, %v2796
        %vm2812 = vcmask 785408
        %v2813 = vsel %vm2812, %v2810, %v2802
        %v2814 = vsel %vm2812, %v2811, %v2804
        %v2815 = vpack.c.bf16 %v2814, %v2813
        %v2816 = vld [vmem:[%s1298] sm:$0xf]
        %v2817 = vld [vmem:[%s1298 + $0x4] sm:$0xf]
        %v2818 = vld [vmem:[%s1298 + $0x8] sm:$0xf]
        %v2819 = vld [vmem:[%s1298 + $0xc] sm:$0xf]
        %v2820 = vld [vmem:[%s1298 + $0x10] sm:$0xf]
        %v2821 = vld [vmem:[%s1298 + $0x14] sm:$0xf]
        %v2822 = vld [vmem:[%s1298 + $0x18] sm:$0xf]
        %v2823 = vld [vmem:[%s1298 + $0x1c] sm:$0xf]
        %v2824 = vld [vmem:[%s1298 + $0x20] sm:$0xf]
        %v2825 = vld [vmem:[%s1298 + $0x24] sm:$0xf]
        %v2826 = vld [vmem:[%s1298 + $0x28] sm:$0xf]
        %v2827 = vld [vmem:[%s1298 + $0x2c] sm:$0xf]
        %v2828 = vld [vmem:[%s1298 + $0x30] sm:$0xf]
        %v2829 = vld [vmem:[%s1298 + $0x34] sm:$0xf]
        %v2830 = vld [vmem:[%s1298 + $0x38] sm:$0xf]
        %v2831 = vld [vmem:[%s1298 + $0x3c] sm:$0xf]
        %v2832 = vld [vmem:[%s1310] sm:$0x1]
        %v2834 = vlaneseq
        %v2835 = vshrl.u32 %v2834, 7
        %v2836 = vsub.s32 0, %v2835
        %v2837 = vrot.slane %v2832, %v2836
        %v2855 = vunpack.c.l.b16 %v2816
        %v2856 = vunpack.c.l.b16 %v2817
        %v2857 = vunpack.c.l.b16 %v2818
        %v2858 = vunpack.c.l.b16 %v2819
        %v2859 = vunpack.c.l.b16 %v2820
        %v2860 = vunpack.c.l.b16 %v2821
        %v2861 = vunpack.c.l.b16 %v2822
        %v2862 = vunpack.c.l.b16 %v2823
        %v2863 = vunpack.c.l.b16 %v2824
        %v2864 = vunpack.c.l.b16 %v2825
        %v2865 = vunpack.c.l.b16 %v2826
        %v2866 = vunpack.c.l.b16 %v2827
        %v2867 = vunpack.c.l.b16 %v2828
        %v2868 = vunpack.c.l.b16 %v2829
        %v2869 = vunpack.c.l.b16 %v2830
        %v2870 = vunpack.c.l.b16 %v2831
        %v2871 = vpack.c.b16 %v2856, %v2855
        %v2872 = vpack.c.b16 %v2858, %v2857
        %v2873 = vpack.c.b16 %v2860, %v2859
        %v2874 = vpack.c.b16 %v2862, %v2861
        %v2875 = vpack.c.b16 %v2864, %v2863
        %v2876 = vpack.c.b16 %v2866, %v2865
        %v2877 = vpack.c.b16 %v2868, %v2867
        %v2878 = vpack.c.b16 %v2870, %v2869
        %2887 = vmatprep.subr.bf16.mxu0 0
        %2888 = vmatpush1.bf16.msra.mxu0 %v2878
        %2889 = vmatprep.subr.bf16.mxu0 0
        %2890 = vmatpush1.bf16.msra.mxu0 %v2877
        %2891 = vmatprep.subr.bf16.mxu0 0
        %2892 = vmatpush1.bf16.msra.mxu0 %v2876
        %2893 = vmatprep.subr.bf16.mxu0 0
        %2894 = vmatpush1.bf16.msra.mxu0 %v2875
        %2895 = vmatprep.subr.bf16.mxu0 0
        %2896 = vmatpush1.bf16.msra.mxu0 %v2874
        %2897 = vmatprep.subr.bf16.mxu0 0
        %2898 = vmatpush1.bf16.msra.mxu0 %v2873
        %2899 = vmatprep.subr.bf16.mxu0 0
        %2900 = vmatpush1.bf16.msra.mxu0 %v2872
        %2901 = vmatprep.subr.bf16.mxu0 0
        %2902 = vmatpush1.bf16.msra.mxu0 %v2871
        %2903 = vmatprep.subr.bf16.mxu0 0
        %2904 = vmatpush2.bf16.msra.mxu0 0
        %2905 = vmatprep.subr.bf16.mxu0 0
        %2906 = vmatpush2.bf16.msra.mxu0 0
        %2907 = vmatprep.subr.bf16.mxu0 0
        %2908 = vmatpush2.bf16.msra.mxu0 0
        %2909 = vmatprep.subr.bf16.mxu0 0
        %2910 = vmatpush2.bf16.msra.mxu0 0
        %2911 = vmatprep.subr.bf16.mxu0 0
        %2912 = vmatpush2.bf16.msra.mxu0 0
        %2913 = vmatprep.subr.bf16.mxu0 0
        %2914 = vmatpush2.bf16.msra.mxu0 0
        %2915 = vmatprep.subr.bf16.mxu0 0
        %2916 = vmatpush2.bf16.msra.mxu0 0
        %2917 = vmatprep.subr.bf16.mxu0 0
        %2918 = vmatpush2.bf16.msra.mxu0 0
        %2919 = vmatprep.mubr.bf16.mxu0 0
        %2920 = vmatmul.mubr.bf16.gmra.mxu0 %v2815
        %v2921 = vpop.f32.mrf.mxu0
        %v2922 = vadd.f32 %v2837, %v2921
        %v2923 = vpop.f32.mrf.mxu0
        %v2924 = vpop.f32.mrf.mxu0
        %v2925 = vadd.f32 %v2837, %v2924
        %v2926 = vpop.f32.mrf.mxu0
        %2927 = vdwg.mxu0
        %v2928 = vadd.f32 %v1375, %v2922
        %v2929 = vadd.f32 %v1376, %v2925
        %v2930 = vmul.f32 %v2928, %v2928
        %v2931 = vmul.f32 %v2929, %v2929
        %2932 = vadd.xlane.f32.xlu0 %v2930
        %v2933 = vpop.xlane.xlu0 %2932
        %2934 = vadd.xlane.f32.xlu0 %v2931
        %v2935 = vpop.xlane.xlu0 %2934
        %v2936 = vmul.f32 %v2933, %v1417
        %v2937 = vmul.f32 %v2935, %v1417
        %v2938 = vadd.f32 %v2936, 1e-06
        %v2939 = vadd.f32 %v2937, 1e-06
        %v2940 = vrsqrt.pop %v2938
        %v2941 = vrsqrt.pop %v2939
        %v2942 = vmul.f32 %v2928, %v2940
        %v2943 = vmul.f32 %v2929, %v2941
        %v2944 = vld [vmem:[%s1313] sm:$0x1]
        %v2946 = vlaneseq
        %v2947 = vshrl.u32 %v2946, 7
        %v2948 = vsub.s32 0, %v2947
        %v2949 = vrot.slane %v2944, %v2948
        %v2951 = vmul.f32 %v2942, %v2949
        %v2952 = vmul.f32 %v2943, %v2949
        %v2953 = vpack.c.bf16 %v2952, %v2951
        %v2954 = vld [vmem:[%s1318] sm:$0xf]
        %v2955 = vld [vmem:[%s1318 + $0x4] sm:$0xf]
        %v2956 = vld [vmem:[%s1318 + $0x8] sm:$0xf]
        %v2957 = vld [vmem:[%s1318 + $0xc] sm:$0xf]
        %v2958 = vld [vmem:[%s1318 + $0x10] sm:$0xf]
        %v2959 = vld [vmem:[%s1318 + $0x14] sm:$0xf]
        %v2960 = vld [vmem:[%s1318 + $0x18] sm:$0xf]
        %v2961 = vld [vmem:[%s1318 + $0x1c] sm:$0xf]
        %v2962 = vld [vmem:[%s1318 + $0x20] sm:$0xf]
        %v2963 = vld [vmem:[%s1318 + $0x24] sm:$0xf]
        %v2964 = vld [vmem:[%s1318 + $0x28] sm:$0xf]
        %v2965 = vld [vmem:[%s1318 + $0x2c] sm:$0xf]
        %v2966 = vld [vmem:[%s1318 + $0x30] sm:$0xf]
        %v2967 = vld [vmem:[%s1318 + $0x34] sm:$0xf]
        %v2968 = vld [vmem:[%s1318 + $0x38] sm:$0xf]
        %v2969 = vld [vmem:[%s1318 + $0x3c] sm:$0xf]
        %v2970 = vld [vmem:[%s1336] sm:$0x1]
        %v2972 = vlaneseq
        %v2973 = vshrl.u32 %v2972, 7
        %v2974 = vsub.s32 0, %v2973
        %v2975 = vrot.slane %v2970, %v2974
        %v2993 = vunpack.c.l.b16 %v2954
        %v2994 = vunpack.c.l.b16 %v2955
        %v2995 = vunpack.c.l.b16 %v2956
        %v2996 = vunpack.c.l.b16 %v2957
        %v2997 = vunpack.c.l.b16 %v2958
        %v2998 = vunpack.c.l.b16 %v2959
        %v2999 = vunpack.c.l.b16 %v2960
        %v3000 = vunpack.c.l.b16 %v2961
        %v3001 = vunpack.c.l.b16 %v2962
        %v3002 = vunpack.c.l.b16 %v2963
        %v3003 = vunpack.c.l.b16 %v2964
        %v3004 = vunpack.c.l.b16 %v2965
        %v3005 = vunpack.c.l.b16 %v2966
        %v3006 = vunpack.c.l.b16 %v2967
        %v3007 = vunpack.c.l.b16 %v2968
        %v3008 = vunpack.c.l.b16 %v2969
        %v3009 = vpack.c.b16 %v2994, %v2993
        %v3010 = vpack.c.b16 %v2996, %v2995
        %v3011 = vpack.c.b16 %v2998, %v2997
        %v3012 = vpack.c.b16 %v3000, %v2999
        %v3013 = vpack.c.b16 %v3002, %v3001
        %v3014 = vpack.c.b16 %v3004, %v3003
        %v3015 = vpack.c.b16 %v3006, %v3005
        %v3016 = vpack.c.b16 %v3008, %v3007
        %3025 = vmatprep.subr.bf16.mxu0 0
        %3026 = vmatpush1.bf16.msra.mxu0 %v3016
        %3027 = vmatprep.subr.bf16.mxu0 0
        %3028 = vmatpush1.bf16.msra.mxu0 %v3015
        %3029 = vmatprep.subr.bf16.mxu0 0
        %3030 = vmatpush1.bf16.msra.mxu0 %v3014
        %3031 = vmatprep.subr.bf16.mxu0 0
        %3032 = vmatpush1.bf16.msra.mxu0 %v3013
        %3033 = vmatprep.subr.bf16.mxu0 0
        %3034 = vmatpush1.bf16.msra.mxu0 %v3012
        %3035 = vmatprep.subr.bf16.mxu0 0
        %3036 = vmatpush1.bf16.msra.mxu0 %v3011
        %3037 = vmatprep.subr.bf16.mxu0 0
        %3038 = vmatpush1.bf16.msra.mxu0 %v3010
        %3039 = vmatprep.subr.bf16.mxu0 0
        %3040 = vmatpush1.bf16.msra.mxu0 %v3009
        %3041 = vmatprep.subr.bf16.mxu0 0
        %3042 = vmatpush2.bf16.msra.mxu0 0
        %3043 = vmatprep.subr.bf16.mxu0 0
        %3044 = vmatpush2.bf16.msra.mxu0 0
        %3045 = vmatprep.subr.bf16.mxu0 0
        %3046 = vmatpush2.bf16.msra.mxu0 0
        %3047 = vmatprep.subr.bf16.mxu0 0
        %3048 = vmatpush2.bf16.msra.mxu0 0
        %3049 = vmatprep.subr.bf16.mxu0 0
        %3050 = vmatpush2.bf16.msra.mxu0 0
        %3051 = vmatprep.subr.bf16.mxu0 0
        %3052 = vmatpush2.bf16.msra.mxu0 0
        %3053 = vmatprep.subr.bf16.mxu0 0
        %3054 = vmatpush2.bf16.msra.mxu0 0
        %3055 = vmatprep.subr.bf16.mxu0 0
        %3056 = vmatpush2.bf16.msra.mxu0 0
        %3057 = vmatprep.mubr.bf16.mxu0 0
        %3058 = vmatmul.mubr.bf16.gmra.mxu0 %v2953
        %v3059 = vpop.f32.mrf.mxu0
        %v3060 = vadd.f32 %v2975, %v3059
        %v3061 = vpop.f32.mrf.mxu0
        %v3062 = vpop.f32.mrf.mxu0
        %v3063 = vadd.f32 %v2975, %v3062
        %v3064 = vpop.f32.mrf.mxu0
        %3065 = vdwg.mxu0
        %3066 = vrot.lane.b32.xlu0 %v3060, 127
        %v3067 = vpop.permute.xlu0 %3066
        %3068 = vrot.lane.b32.xlu0 %v3063, 127
        %v3069 = vpop.permute.xlu0 %3068
        %3070 = vrot.lane.b32.xlu0 %v3060, 1
        %v3071 = vpop.permute.xlu0 %3070
        %3072 = vrot.lane.b32.xlu0 %v3063, 1
        %v3073 = vpop.permute.xlu0 %3072
        %v3074 = vmul.f32 %v3060, %v1396
        %v3075 = vmul.f32 %v3063, %v1396
        %v3076 = vmul.f32 %v3067, %v1397
        %v3077 = vmul.f32 %v3069, %v1397
        %v3078 = vadd.f32 %v3074, %v3076
        %v3079 = vadd.f32 %v3075, %v3077
        %v3080 = vmul.f32 %v3071, %v1398
        %v3081 = vmul.f32 %v3073, %v1398
        %v3082 = vadd.f32 %v3078, %v3080
        %v3083 = vadd.f32 %v3079, %v3081
        %v3084 = vld [vmem:[%s1323] sm:$0xf]
        %v3085 = vld [vmem:[%s1323 + $0x4] sm:$0xf]
        %v3086 = vld [vmem:[%s1323 + $0x8] sm:$0xf]
        %v3087 = vld [vmem:[%s1323 + $0xc] sm:$0xf]
        %v3088 = vld [vmem:[%s1323 + $0x10] sm:$0xf]
        %v3089 = vld [vmem:[%s1323 + $0x14] sm:$0xf]
        %v3090 = vld [vmem:[%s1323 + $0x18] sm:$0xf]
        %v3091 = vld [vmem:[%s1323 + $0x1c] sm:$0xf]
        %v3092 = vld [vmem:[%s1323 + $0x20] sm:$0xf]
        %v3093 = vld [vmem:[%s1323 + $0x24] sm:$0xf]
        %v3094 = vld [vmem:[%s1323 + $0x28] sm:$0xf]
        %v3095 = vld [vmem:[%s1323 + $0x2c] sm:$0xf]
        %v3096 = vld [vmem:[%s1323 + $0x30] sm:$0xf]
        %v3097 = vld [vmem:[%s1323 + $0x34] sm:$0xf]
        %v3098 = vld [vmem:[%s1323 + $0x38] sm:$0xf]
        %v3099 = vld [vmem:[%s1323 + $0x3c] sm:$0xf]
        %v3100 = vld [vmem:[%s1339] sm:$0x1]
        %v3102 = vlaneseq
        %v3103 = vshrl.u32 %v3102, 7
        %v3104 = vsub.s32 0, %v3103
        %v3105 = vrot.slane %v3100, %v3104
        %v3110 = vunpack.c.l.b16 %v1377
        %v3111 = vunpack.c.l.b16 %v1378
        %v3112 = vunpack.c.l.b16 %v1379
        %v3113 = vpack.c.b16 %v3111, %v3110
        %v3114 = vpack.c.b16 %v3112, %v3112
        %v3133 = vunpack.c.l.b16 %v3084
        %v3134 = vunpack.c.l.b16 %v3085
        %v3135 = vunpack.c.l.b16 %v3086
        %v3136 = vunpack.c.l.b16 %v3087
        %v3137 = vunpack.c.l.b16 %v3088
        %v3138 = vunpack.c.l.b16 %v3089
        %v3139 = vunpack.c.l.b16 %v3090
        %v3140 = vunpack.c.l.b16 %v3091
        %v3141 = vunpack.c.l.b16 %v3092
        %v3142 = vunpack.c.l.b16 %v3093
        %v3143 = vunpack.c.l.b16 %v3094
        %v3144 = vunpack.c.l.b16 %v3095
        %v3145 = vunpack.c.l.b16 %v3096
        %v3146 = vunpack.c.l.b16 %v3097
        %v3147 = vunpack.c.l.b16 %v3098
        %v3148 = vunpack.c.l.b16 %v3099
        %v3149 = vpack.c.b16 %v3134, %v3133
        %v3150 = vpack.c.b16 %v3136, %v3135
        %v3151 = vpack.c.b16 %v3138, %v3137
        %v3152 = vpack.c.b16 %v3140, %v3139
        %v3153 = vpack.c.b16 %v3142, %v3141
        %v3154 = vpack.c.b16 %v3144, %v3143
        %v3155 = vpack.c.b16 %v3146, %v3145
        %v3156 = vpack.c.b16 %v3148, %v3147
        %3165 = vmatprep.subr.bf16.mxu0 0
        %3166 = vmatpush1.bf16.msra.mxu0 %v3156
        %3167 = vmatprep.subr.bf16.mxu0 0
        %3168 = vmatpush1.bf16.msra.mxu0 %v3155
        %3169 = vmatprep.subr.bf16.mxu0 0
        %3170 = vmatpush1.bf16.msra.mxu0 %v3154
        %3171 = vmatprep.subr.bf16.mxu0 0
        %3172 = vmatpush1.bf16.msra.mxu0 %v3153
        %3173 = vmatprep.subr.bf16.mxu0 0
        %3174 = vmatpush1.bf16.msra.mxu0 %v3152
        %3175 = vmatprep.subr.bf16.mxu0 0
        %3176 = vmatpush1.bf16.msra.mxu0 %v3151
        %3177 = vmatprep.subr.bf16.mxu0 0
        %3178 = vmatpush1.bf16.msra.mxu0 %v3150
        %3179 = vmatprep.subr.bf16.mxu0 0
        %3180 = vmatpush1.bf16.msra.mxu0 %v3149
        %3181 = vmatprep.subr.bf16.mxu0 0
        %3182 = vmatpush2.bf16.msra.mxu0 0
        %3183 = vmatprep.subr.bf16.mxu0 0
        %3184 = vmatpush2.bf16.msra.mxu0 0
        %3185 = vmatprep.subr.bf16.mxu0 0
        %3186 = vmatpush2.bf16.msra.mxu0 0
        %3187 = vmatprep.subr.bf16.mxu0 0
        %3188 = vmatpush2.bf16.msra.mxu0 0
        %3189 = vmatprep.subr.bf16.mxu0 0
        %3190 = vmatpush2.bf16.msra.mxu0 0
        %3191 = vmatprep.subr.bf16.mxu0 0
        %3192 = vmatpush2.bf16.msra.mxu0 0
        %3193 = vmatprep.subr.bf16.mxu0 0
        %3194 = vmatpush2.bf16.msra.mxu0 0
        %3195 = vmatprep.subr.bf16.mxu0 0
        %3196 = vmatpush2.bf16.msra.mxu0 0
        %3197 = vmatprep.mubr.bf16.mxu0 0
        %3198 = vmatmul.mubr.bf16.gmra.mxu0 %v3113
        %v3199 = vpop.f32.mrf.mxu0
        %v3200 = vadd.f32 %v3105, %v3199
        %v3201 = vpop.f32.mrf.mxu0
        %v3202 = vpop.f32.mrf.mxu0
        %v3203 = vadd.f32 %v3105, %v3202
        %v3204 = vpop.f32.mrf.mxu0
        %3205 = vmatprep.mubr.bf16.mxu0 0
        %3206 = vmatmul.mubr.bf16.gmra.mxu0 %v3114
        %v3207 = vpop.f32.mrf.mxu0
        %v3208 = vadd.f32 %v3105, %v3207
        %v3209 = vpop.f32.mrf.mxu0
        %v3210 = vpop.f32.mrf.mxu0
        %v3211 = vpop.f32.mrf.mxu0
        %3212 = vdwg.mxu0
        %3213 = vrot.lane.b32.xlu0 %v3200, 127
        %v3214 = vpop.permute.xlu0 %3213
        %3215 = vrot.lane.b32.xlu0 %v3203, 127
        %v3216 = vpop.permute.xlu0 %3215
        %3217 = vrot.lane.b32.xlu0 %v3208, 127
        %v3218 = vpop.permute.xlu0 %3217
        %3219 = vrot.lane.b32.xlu0 %v3200, 1
        %v3220 = vpop.permute.xlu0 %3219
        %3221 = vrot.lane.b32.xlu0 %v3203, 1
        %v3222 = vpop.permute.xlu0 %3221
        %3223 = vrot.lane.b32.xlu0 %v3208, 1
        %v3224 = vpop.permute.xlu0 %3223
        %v3228 = vcombine.high %v3200, %v3200
        %v3229 = vcombine.high %v3203, %v3203
        %v3230 = vcombine.high %v3208, %v3208
        %v3235 = vcombine.high %v1399, %v1399
        %v3237 = vmul.f32 %v3200, %v1399
        %v3238 = vmul.f32 %v3228, %v3235
        %v3239 = vmul.f32 %v3203, %v1400
        %v3240 = vmul.f32 %v3229, %v1399
        %v3241 = vmul.f32 %v3208, %v3235
        %v3242 = vmul.f32 %v3230, %v1400
        %v3246 = vcombine.high %v3214, %v3214
        %v3247 = vcombine.high %v3216, %v3216
        %v3248 = vcombine.high %v3218, %v3218
        %v3253 = vcombine.high %v1401, %v1401
        %v3255 = vmul.f32 %v3214, %v1401
        %v3256 = vmul.f32 %v3246, %v3253
        %v3257 = vmul.f32 %v3216, %v1402
        %v3258 = vmul.f32 %v3247, %v1401
        %v3259 = vmul.f32 %v3218, %v3253
        %v3260 = vmul.f32 %v3248, %v1402
        %v3261 = vadd.f32 %v3237, %v3255
        %v3262 = vadd.f32 %v3238, %v3256
        %v3263 = vadd.f32 %v3239, %v3257
        %v3264 = vadd.f32 %v3240, %v3258
        %v3265 = vadd.f32 %v3241, %v3259
        %v3266 = vadd.f32 %v3242, %v3260
        %v3270 = vcombine.high %v3220, %v3220
        %v3271 = vcombine.high %v3222, %v3222
        %v3272 = vcombine.high %v3224, %v3224
        %v3277 = vcombine.high %v1403, %v1403
        %v3279 = vmul.f32 %v3220, %v1403
        %v3280 = vmul.f32 %v3270, %v3277
        %v3281 = vmul.f32 %v3222, %v1404
        %v3282 = vmul.f32 %v3271, %v1403
        %v3283 = vmul.f32 %v3224, %v3277
        %v3284 = vmul.f32 %v3272, %v1404
        %v3285 = vadd.f32 %v3261, %v3279
        %v3286 = vadd.f32 %v3262, %v3280
        %v3287 = vadd.f32 %v3263, %v3281
        %v3288 = vadd.f32 %v3264, %v3282
        %v3289 = vadd.f32 %v3265, %v3283
        %v3290 = vadd.f32 %v3266, %v3284
        %v3291 = vld [vmem:[%s1328] sm:$0xf]
        %v3292 = vld [vmem:[%s1328 + $0x4] sm:$0xf]
        %v3293 = vld [vmem:[%s1328 + $0x8] sm:$0xf]
        %v3294 = vld [vmem:[%s1328 + $0xc] sm:$0xf]
        %v3295 = vld [vmem:[%s1328 + $0x10] sm:$0xf]
        %v3296 = vld [vmem:[%s1328 + $0x14] sm:$0xf]
        %v3297 = vld [vmem:[%s1328 + $0x18] sm:$0xf]
        %v3298 = vld [vmem:[%s1328 + $0x1c] sm:$0xf]
        %v3299 = vld [vmem:[%s1328 + $0x20] sm:$0xf]
        %v3300 = vld [vmem:[%s1328 + $0x24] sm:$0xf]
        %v3301 = vld [vmem:[%s1328 + $0x28] sm:$0xf]
        %v3302 = vld [vmem:[%s1328 + $0x2c] sm:$0xf]
        %v3303 = vld [vmem:[%s1328 + $0x30] sm:$0xf]
        %v3304 = vld [vmem:[%s1328 + $0x34] sm:$0xf]
        %v3305 = vld [vmem:[%s1328 + $0x38] sm:$0xf]
        %v3306 = vld [vmem:[%s1328 + $0x3c] sm:$0xf]
        %v3307 = vld [vmem:[%s1342] sm:$0x1]
        %v3309 = vlaneseq
        %v3310 = vshrl.u32 %v3309, 7
        %v3311 = vsub.s32 0, %v3310
        %v3312 = vrot.slane %v3307, %v3311
        %v3330 = vunpack.c.l.b16 %v3291
        %v3331 = vunpack.c.l.b16 %v3292
        %v3332 = vunpack.c.l.b16 %v3293
        %v3333 = vunpack.c.l.b16 %v3294
        %v3334 = vunpack.c.l.b16 %v3295
        %v3335 = vunpack.c.l.b16 %v3296
        %v3336 = vunpack.c.l.b16 %v3297
        %v3337 = vunpack.c.l.b16 %v3298
        %v3338 = vunpack.c.l.b16 %v3299
        %v3339 = vunpack.c.l.b16 %v3300
        %v3340 = vunpack.c.l.b16 %v3301
        %v3341 = vunpack.c.l.b16 %v3302
        %v3342 = vunpack.c.l.b16 %v3303
        %v3343 = vunpack.c.l.b16 %v3304
        %v3344 = vunpack.c.l.b16 %v3305
        %v3345 = vunpack.c.l.b16 %v3306
        %v3346 = vpack.c.b16 %v3331, %v3330
        %v3347 = vpack.c.b16 %v3333, %v3332
        %v3348 = vpack.c.b16 %v3335, %v3334
        %v3349 = vpack.c.b16 %v3337, %v3336
        %v3350 = vpack.c.b16 %v3339, %v3338
        %v3351 = vpack.c.b16 %v3341, %v3340
        %v3352 = vpack.c.b16 %v3343, %v3342
        %v3353 = vpack.c.b16 %v3345, %v3344
        %3362 = vmatprep.subr.bf16.mxu0 0
        %3363 = vmatpush1.bf16.msra.mxu0 %v3353
        %3364 = vmatprep.subr.bf16.mxu0 0
        %3365 = vmatpush1.bf16.msra.mxu0 %v3352
        %3366 = vmatprep.subr.bf16.mxu0 0
        %3367 = vmatpush1.bf16.msra.mxu0 %v3351
        %3368 = vmatprep.subr.bf16.mxu0 0
        %3369 = vmatpush1.bf16.msra.mxu0 %v3350
        %3370 = vmatprep.subr.bf16.mxu0 0
        %3371 = vmatpush1.bf16.msra.mxu0 %v3349
        %3372 = vmatprep.subr.bf16.mxu0 0
        %3373 = vmatpush1.bf16.msra.mxu0 %v3348
        %3374 = vmatprep.subr.bf16.mxu0 0
        %3375 = vmatpush1.bf16.msra.mxu0 %v3347
        %3376 = vmatprep.subr.bf16.mxu0 0
        %3377 = vmatpush1.bf16.msra.mxu0 %v3346
        %3378 = vmatprep.subr.bf16.mxu0 0
        %3379 = vmatpush2.bf16.msra.mxu0 0
        %3380 = vmatprep.subr.bf16.mxu0 0
        %3381 = vmatpush2.bf16.msra.mxu0 0
        %3382 = vmatprep.subr.bf16.mxu0 0
        %3383 = vmatpush2.bf16.msra.mxu0 0
        %3384 = vmatprep.subr.bf16.mxu0 0
        %3385 = vmatpush2.bf16.msra.mxu0 0
        %3386 = vmatprep.subr.bf16.mxu0 0
        %3387 = vmatpush2.bf16.msra.mxu0 0
        %3388 = vmatprep.subr.bf16.mxu0 0
        %3389 = vmatpush2.bf16.msra.mxu0 0
        %3390 = vmatprep.subr.bf16.mxu0 0
        %3391 = vmatpush2.bf16.msra.mxu0 0
        %3392 = vmatprep.subr.bf16.mxu0 0
        %3393 = vmatpush2.bf16.msra.mxu0 0
        %3394 = vmatprep.mubr.bf16.mxu0 0
        %3395 = vmatmul.mubr.bf16.gmra.mxu0 %v3113
        %v3396 = vpop.f32.mrf.mxu0
        %v3397 = vadd.f32 %v3312, %v3396
        %v3398 = vpop.f32.mrf.mxu0
        %v3399 = vpop.f32.mrf.mxu0
        %v3400 = vadd.f32 %v3312, %v3399
        %v3401 = vpop.f32.mrf.mxu0
        %3402 = vmatprep.mubr.bf16.mxu0 0
        %3403 = vmatmul.mubr.bf16.gmra.mxu0 %v3114
        %v3404 = vpop.f32.mrf.mxu0
        %v3405 = vadd.f32 %v3312, %v3404
        %v3406 = vpop.f32.mrf.mxu0
        %v3407 = vpop.f32.mrf.mxu0
        %v3408 = vpop.f32.mrf.mxu0
        %3409 = vdwg.mxu0
        %v3413 = vcombine.high %v3397, %v3397
        %v3414 = vcombine.high %v3400, %v3400
        %v3415 = vcombine.high %v3405, %v3405
        %3419 = vrot.lane.b32.xlu0 %v3082, 96
        %v3420 = vpop.permute.xlu0 %3419
        %3421 = vrot.lane.b32.xlu0 %v3083, 96
        %v3422 = vpop.permute.xlu0 %3421
        %3425 = vrot.lane.b32.xlu0 %v3082, 64
        %v3426 = vpop.permute.xlu0 %3425
        %3427 = vrot.lane.b32.xlu0 %v3083, 64
        %v3428 = vpop.permute.xlu0 %3427
        %3431 = vrot.lane.b32.xlu0 %v3082, 32
        %v3432 = vpop.permute.xlu0 %3431
        %3433 = vrot.lane.b32.xlu0 %v3083, 32
        %v3434 = vpop.permute.xlu0 %3433
        %v3437 = vpack.c.bf16 %v3082, %v3082
        %v3438 = vpack.c.bf16 %v3083, %v3083
        %v3439 = vpack.c.bf16 %v3420, %v3420
        %v3440 = vpack.c.bf16 %v3422, %v3422
        %v3441 = vpack.c.bf16 %v3426, %v3426
        %v3442 = vpack.c.bf16 %v3428, %v3428
        %v3443 = vpack.c.bf16 %v3432, %v3432
        %v3444 = vpack.c.bf16 %v3434, %v3434
        %3451 = vrot.lane.b32.xlu0 %v3285, 96
        %v3452 = vpop.permute.xlu0 %3451
        %3453 = vrot.lane.b32.xlu0 %v3286, 96
        %v3454 = vpop.permute.xlu0 %3453
        %3455 = vrot.lane.b32.xlu0 %v3287, 96
        %v3456 = vpop.permute.xlu0 %3455
        %3457 = vrot.lane.b32.xlu0 %v3288, 96
        %v3458 = vpop.permute.xlu0 %3457
        %3459 = vrot.lane.b32.xlu0 %v3289, 96
        %v3460 = vpop.permute.xlu0 %3459
        %3461 = vrot.lane.b32.xlu0 %v3290, 96
        %v3462 = vpop.permute.xlu0 %3461
        %3465 = vrot.lane.b32.xlu0 %v3285, 64
        %v3466 = vpop.permute.xlu0 %3465
        %3467 = vrot.lane.b32.xlu0 %v3286, 64
        %v3468 = vpop.permute.xlu0 %3467
        %3469 = vrot.lane.b32.xlu0 %v3287, 64
        %v3470 = vpop.permute.xlu0 %3469
        %3471 = vrot.lane.b32.xlu0 %v3288, 64
        %v3472 = vpop.permute.xlu0 %3471
        %3473 = vrot.lane.b32.xlu0 %v3289, 64
        %v3474 = vpop.permute.xlu0 %3473
        %3475 = vrot.lane.b32.xlu0 %v3290, 64
        %v3476 = vpop.permute.xlu0 %3475
        %3479 = vrot.lane.b32.xlu0 %v3285, 32
        %v3480 = vpop.permute.xlu0 %3479
        %3481 = vrot.lane.b32.xlu0 %v3286, 32
        %v3482 = vpop.permute.xlu0 %3481
        %3483 = vrot.lane.b32.xlu0 %v3287, 32
        %v3484 = vpop.permute.xlu0 %3483
        %3485 = vrot.lane.b32.xlu0 %v3288, 32
        %v3486 = vpop.permute.xlu0 %3485
        %3487 = vrot.lane.b32.xlu0 %v3289, 32
        %v3488 = vpop.permute.xlu0 %3487
        %3489 = vrot.lane.b32.xlu0 %v3290, 32
        %v3490 = vpop.permute.xlu0 %3489
        %v3493 = vcombine.low %v3285, %v3286
        %v3494 = vcombine.low %v3288, %v3289
        %v3495 = vcombine.low %v3452, %v3454
        %v3496 = vcombine.low %v3458, %v3460
        %v3497 = vcombine.low %v3466, %v3468
        %v3498 = vcombine.low %v3472, %v3474
        %v3499 = vcombine.low %v3480, %v3482
        %v3500 = vcombine.low %v3486, %v3488
        %v3509 = vpack.c.bf16 %v3287, %v3493
        %v3510 = vpack.c.bf16 %v3290, %v3494
        %v3511 = vpack.c.bf16 %v3456, %v3495
        %v3512 = vpack.c.bf16 %v3462, %v3496
        %v3513 = vpack.c.bf16 %v3470, %v3497
        %v3514 = vpack.c.bf16 %v3476, %v3498
        %v3515 = vpack.c.bf16 %v3484, %v3499
        %v3516 = vpack.c.bf16 %v3490, %v3500
        %3517 = vrot.lane.b32.xlu0 %v3397, 96
        %v3518 = vpop.permute.xlu0 %3517
        %3519 = vrot.lane.b32.xlu0 %v3413, 96
        %v3520 = vpop.permute.xlu0 %3519
        %3521 = vrot.lane.b32.xlu0 %v3400, 96
        %v3522 = vpop.permute.xlu0 %3521
        %3523 = vrot.lane.b32.xlu0 %v3414, 96
        %v3524 = vpop.permute.xlu0 %3523
        %3525 = vrot.lane.b32.xlu0 %v3405, 96
        %v3526 = vpop.permute.xlu0 %3525
        %3527 = vrot.lane.b32.xlu0 %v3415, 96
        %v3528 = vpop.permute.xlu0 %3527
        %3531 = vrot.lane.b32.xlu0 %v3397, 64
        %v3532 = vpop.permute.xlu0 %3531
        %3533 = vrot.lane.b32.xlu0 %v3413, 64
        %v3534 = vpop.permute.xlu0 %3533
        %3535 = vrot.lane.b32.xlu0 %v3400, 64
        %v3536 = vpop.permute.xlu0 %3535
        %3537 = vrot.lane.b32.xlu0 %v3414, 64
        %v3538 = vpop.permute.xlu0 %3537
        %3539 = vrot.lane.b32.xlu0 %v3405, 64
        %v3540 = vpop.permute.xlu0 %3539
        %3541 = vrot.lane.b32.xlu0 %v3415, 64
        %v3542 = vpop.permute.xlu0 %3541
        %3545 = vrot.lane.b32.xlu0 %v3397, 32
        %v3546 = vpop.permute.xlu0 %3545
        %3547 = vrot.lane.b32.xlu0 %v3413, 32
        %v3548 = vpop.permute.xlu0 %3547
        %3549 = vrot.lane.b32.xlu0 %v3400, 32
        %v3550 = vpop.permute.xlu0 %3549
        %3551 = vrot.lane.b32.xlu0 %v3414, 32
        %v3552 = vpop.permute.xlu0 %3551
        %3553 = vrot.lane.b32.xlu0 %v3405, 32
        %v3554 = vpop.permute.xlu0 %3553
        %3555 = vrot.lane.b32.xlu0 %v3415, 32
        %v3556 = vpop.permute.xlu0 %3555
        %v3559 = vcombine.low %v3397, %v3413
        %v3560 = vcombine.low %v3414, %v3405
        %v3561 = vcombine.low %v3518, %v3520
        %v3562 = vcombine.low %v3524, %v3526
        %v3563 = vcombine.low %v3532, %v3534
        %v3564 = vcombine.low %v3538, %v3540
        %v3565 = vcombine.low %v3546, %v3548
        %v3566 = vcombine.low %v3552, %v3554
        %v3575 = vpack.c.bf16 %v3400, %v3559
        %v3576 = vpack.c.bf16 %v3415, %v3560
        %v3577 = vpack.c.bf16 %v3522, %v3561
        %v3578 = vpack.c.bf16 %v3528, %v3562
        %v3579 = vpack.c.bf16 %v3536, %v3563
        %v3580 = vpack.c.bf16 %v3542, %v3564
        %v3581 = vpack.c.bf16 %v3550, %v3565
        %v3582 = vpack.c.bf16 %v3556, %v3566
        %v3591 = vlaneseq
        %v3592 = vshrl.u32 %v3591, 7
        %v3593 = vsub.s32 0, %v3592
        %v3594 = vrot.slane %v1388, %v3593
        %v3595 = vlaneseq
        %v3596 = vshrl.u32 %v3595, 7
        %v3597 = vsub.s32 0, %v3596
        %v3598 = vrot.slane %v1389, %v3597
        %v3599 = vlaneseq
        %v3600 = vshrl.u32 %v3599, 7
        %v3601 = vsub.s32 0, %v3600
        %v3602 = vrot.slane %v1390, %v3601
        %v3603 = vlaneseq
        %v3604 = vshrl.u32 %v3603, 7
        %v3605 = vsub.s32 0, %v3604
        %v3606 = vrot.slane %v1391, %v3605
        %v3607 = vlaneseq
        %v3608 = vshrl.u32 %v3607, 7
        %v3609 = vsub.s32 0, %v3608
        %v3610 = vrot.slane %v1392, %v3609
        %v3611 = vlaneseq
        %v3612 = vshrl.u32 %v3611, 7
        %v3613 = vsub.s32 0, %v3612
        %v3614 = vrot.slane %v1393, %v3613
        %v3615 = vlaneseq
        %v3616 = vshrl.u32 %v3615, 7
        %v3617 = vsub.s32 0, %v3616
        %v3618 = vrot.slane %v1394, %v3617
        %v3619 = vlaneseq
        %v3620 = vshrl.u32 %v3619, 7
        %v3621 = vsub.s32 0, %v3620
        %v3622 = vrot.slane %v1395, %v3621
        %v3632 = vsel %vm1940, %v3437, 0
        %v3635 = vsel %vm1940, %v3509, 0
        %3637 = vmatprep.subr.bf16.mxu0 0
        %3638 = vmatpush1.bf16.xpose.msra.mxu0 0
        %3639 = vmatprep.subr.bf16.mxu0 0
        %3640 = vmatpush1.bf16.xpose.msra.mxu0 0
        %3641 = vmatprep.subr.bf16.mxu0 0
        %3642 = vmatpush1.bf16.xpose.msra.mxu0 0
        %3643 = vmatprep.subr.bf16.mxu0 0
        %3644 = vmatpush1.bf16.xpose.msra.mxu0 0
        %3645 = vmatprep.subr.bf16.mxu0 0
        %3646 = vmatpush1.bf16.xpose.msra.mxu0 0
        %3647 = vmatprep.subr.bf16.mxu0 0
        %3648 = vmatpush1.bf16.xpose.msra.mxu0 0
        %3649 = vmatprep.subr.bf16.mxu0 0
        %3650 = vmatpush1.bf16.xpose.msra.mxu0 0
        %3651 = vmatprep.subr.bf16.mxu0 0
        %3652 = vmatpush1.bf16.xpose.msra.mxu0 %v3635
        %3653 = vmatprep.subr.bf16.mxu0 0
        %3654 = vmatpush2.bf16.xpose.msra.mxu0 0
        %3655 = vmatprep.subr.bf16.mxu0 0
        %3656 = vmatpush2.bf16.xpose.msra.mxu0 0
        %3657 = vmatprep.subr.bf16.mxu0 0
        %3658 = vmatpush2.bf16.xpose.msra.mxu0 0
        %3659 = vmatprep.subr.bf16.mxu0 0
        %3660 = vmatpush2.bf16.xpose.msra.mxu0 0
        %3661 = vmatprep.subr.bf16.mxu0 0
        %3662 = vmatpush2.bf16.xpose.msra.mxu0 0
        %3663 = vmatprep.subr.bf16.mxu0 0
        %3664 = vmatpush2.bf16.xpose.msra.mxu0 0
        %3665 = vmatprep.subr.bf16.mxu0 0
        %3666 = vmatpush2.bf16.xpose.msra.mxu0 0
        %3667 = vmatprep.subr.bf16.mxu0 0
        %3668 = vmatpush2.bf16.xpose.msra.mxu0 0
        %3669 = vmatprep.mubr.bf16.mxu0 0
        %3670 = vmatmul.mubr.bf16.gmra.mxu0 %v3632
        %v3671 = vpop.f32.mrf.mxu0
        %v3672 = vadd.f32 %v3594, %v3671
        %v3673 = vpop.f32.mrf.mxu0
        %v3674 = vpop.f32.mrf.mxu0
        %v3675 = vpop.f32.mrf.mxu0
        %3676 = vdwg.mxu0
        %v3678 = vsel %vm1940, %v3438, 0
        %v3681 = vsel %vm1940, %v3510, 0
        %3683 = vmatprep.subr.bf16.mxu0 0
        %3684 = vmatpush1.bf16.xpose.msra.mxu0 0
        %3685 = vmatprep.subr.bf16.mxu0 0
        %3686 = vmatpush1.bf16.xpose.msra.mxu0 0
        %3687 = vmatprep.subr.bf16.mxu0 0
        %3688 = vmatpush1.bf16.xpose.msra.mxu0 0
        %3689 = vmatprep.subr.bf16.mxu0 0
        %3690 = vmatpush1.bf16.xpose.msra.mxu0 0
        %3691 = vmatprep.subr.bf16.mxu0 0
        %3692 = vmatpush1.bf16.xpose.msra.mxu0 0
        %3693 = vmatprep.subr.bf16.mxu0 0
        %3694 = vmatpush1.bf16.xpose.msra.mxu0 0
        %3695 = vmatprep.subr.bf16.mxu0 0
        %3696 = vmatpush1.bf16.xpose.msra.mxu0 0
        %3697 = vmatprep.subr.bf16.mxu0 0
        %3698 = vmatpush1.bf16.xpose.msra.mxu0 %v3681
        %3699 = vmatprep.subr.bf16.mxu0 0
        %3700 = vmatpush2.bf16.xpose.msra.mxu0 0
        %3701 = vmatprep.subr.bf16.mxu0 0
        %3702 = vmatpush2.bf16.xpose.msra.mxu0 0
        %3703 = vmatprep.subr.bf16.mxu0 0
        %3704 = vmatpush2.bf16.xpose.msra.mxu0 0
        %3705 = vmatprep.subr.bf16.mxu0 0
        %3706 = vmatpush2.bf16.xpose.msra.mxu0 0
        %3707 = vmatprep.subr.bf16.mxu0 0
        %3708 = vmatpush2.bf16.xpose.msra.mxu0 0
        %3709 = vmatprep.subr.bf16.mxu0 0
        %3710 = vmatpush2.bf16.xpose.msra.mxu0 0
        %3711 = vmatprep.subr.bf16.mxu0 0
        %3712 = vmatpush2.bf16.xpose.msra.mxu0 0
        %3713 = vmatprep.subr.bf16.mxu0 0
        %3714 = vmatpush2.bf16.xpose.msra.mxu0 0
        %3715 = vmatprep.mubr.bf16.mxu0 0
        %3716 = vmatmul.mubr.bf16.gmra.mxu0 %v3678
        %v3717 = vpop.f32.mrf.mxu0
        %v3718 = vadd.f32 %v3598, %v3717
        %v3719 = vpop.f32.mrf.mxu0
        %v3720 = vpop.f32.mrf.mxu0
        %v3721 = vpop.f32.mrf.mxu0
        %3722 = vdwg.mxu0
        %v3724 = vsel %vm1940, %v3439, 0
        %v3727 = vsel %vm1940, %v3511, 0
        %3729 = vmatprep.subr.bf16.mxu0 0
        %3730 = vmatpush1.bf16.xpose.msra.mxu0 0
        %3731 = vmatprep.subr.bf16.mxu0 0
        %3732 = vmatpush1.bf16.xpose.msra.mxu0 0
        %3733 = vmatprep.subr.bf16.mxu0 0
        %3734 = vmatpush1.bf16.xpose.msra.mxu0 0
        %3735 = vmatprep.subr.bf16.mxu0 0
        %3736 = vmatpush1.bf16.xpose.msra.mxu0 0
        %3737 = vmatprep.subr.bf16.mxu0 0
        %3738 = vmatpush1.bf16.xpose.msra.mxu0 0
        %3739 = vmatprep.subr.bf16.mxu0 0
        %3740 = vmatpush1.bf16.xpose.msra.mxu0 0
        %3741 = vmatprep.subr.bf16.mxu0 0
        %3742 = vmatpush1.bf16.xpose.msra.mxu0 0
        %3743 = vmatprep.subr.bf16.mxu0 0
        %3744 = vmatpush1.bf16.xpose.msra.mxu0 %v3727
        %3745 = vmatprep.subr.bf16.mxu0 0
        %3746 = vmatpush2.bf16.xpose.msra.mxu0 0
        %3747 = vmatprep.subr.bf16.mxu0 0
        %3748 = vmatpush2.bf16.xpose.msra.mxu0 0
        %3749 = vmatprep.subr.bf16.mxu0 0
        %3750 = vmatpush2.bf16.xpose.msra.mxu0 0
        %3751 = vmatprep.subr.bf16.mxu0 0
        %3752 = vmatpush2.bf16.xpose.msra.mxu0 0
        %3753 = vmatprep.subr.bf16.mxu0 0
        %3754 = vmatpush2.bf16.xpose.msra.mxu0 0
        %3755 = vmatprep.subr.bf16.mxu0 0
        %3756 = vmatpush2.bf16.xpose.msra.mxu0 0
        %3757 = vmatprep.subr.bf16.mxu0 0
        %3758 = vmatpush2.bf16.xpose.msra.mxu0 0
        %3759 = vmatprep.subr.bf16.mxu0 0
        %3760 = vmatpush2.bf16.xpose.msra.mxu0 0
        %3761 = vmatprep.mubr.bf16.mxu0 0
        %3762 = vmatmul.mubr.bf16.gmra.mxu0 %v3724
        %v3763 = vpop.f32.mrf.mxu0
        %v3764 = vadd.f32 %v3602, %v3763
        %v3765 = vpop.f32.mrf.mxu0
        %v3766 = vpop.f32.mrf.mxu0
        %v3767 = vpop.f32.mrf.mxu0
        %3768 = vdwg.mxu0
        %v3770 = vsel %vm1940, %v3440, 0
        %v3773 = vsel %vm1940, %v3512, 0
        %3775 = vmatprep.subr.bf16.mxu0 0
        %3776 = vmatpush1.bf16.xpose.msra.mxu0 0
        %3777 = vmatprep.subr.bf16.mxu0 0
        %3778 = vmatpush1.bf16.xpose.msra.mxu0 0
        %3779 = vmatprep.subr.bf16.mxu0 0
        %3780 = vmatpush1.bf16.xpose.msra.mxu0 0
        %3781 = vmatprep.subr.bf16.mxu0 0
        %3782 = vmatpush1.bf16.xpose.msra.mxu0 0
        %3783 = vmatprep.subr.bf16.mxu0 0
        %3784 = vmatpush1.bf16.xpose.msra.mxu0 0
        %3785 = vmatprep.subr.bf16.mxu0 0
        %3786 = vmatpush1.bf16.xpose.msra.mxu0 0
        %3787 = vmatprep.subr.bf16.mxu0 0
        %3788 = vmatpush1.bf16.xpose.msra.mxu0 0
        %3789 = vmatprep.subr.bf16.mxu0 0
        %3790 = vmatpush1.bf16.xpose.msra.mxu0 %v3773
        %3791 = vmatprep.subr.bf16.mxu0 0
        %3792 = vmatpush2.bf16.xpose.msra.mxu0 0
        %3793 = vmatprep.subr.bf16.mxu0 0
        %3794 = vmatpush2.bf16.xpose.msra.mxu0 0
        %3795 = vmatprep.subr.bf16.mxu0 0
        %3796 = vmatpush2.bf16.xpose.msra.mxu0 0
        %3797 = vmatprep.subr.bf16.mxu0 0
        %3798 = vmatpush2.bf16.xpose.msra.mxu0 0
        %3799 = vmatprep.subr.bf16.mxu0 0
        %3800 = vmatpush2.bf16.xpose.msra.mxu0 0
        %3801 = vmatprep.subr.bf16.mxu0 0
        %3802 = vmatpush2.bf16.xpose.msra.mxu0 0
        %3803 = vmatprep.subr.bf16.mxu0 0
        %3804 = vmatpush2.bf16.xpose.msra.mxu0 0
        %3805 = vmatprep.subr.bf16.mxu0 0
        %3806 = vmatpush2.bf16.xpose.msra.mxu0 0
        %3807 = vmatprep.mubr.bf16.mxu0 0
        %3808 = vmatmul.mubr.bf16.gmra.mxu0 %v3770
        %v3809 = vpop.f32.mrf.mxu0
        %v3810 = vadd.f32 %v3606, %v3809
        %v3811 = vpop.f32.mrf.mxu0
        %v3812 = vpop.f32.mrf.mxu0
        %v3813 = vpop.f32.mrf.mxu0
        %3814 = vdwg.mxu0
        %v3816 = vsel %vm1940, %v3441, 0
        %v3819 = vsel %vm1940, %v3513, 0
        %3821 = vmatprep.subr.bf16.mxu0 0
        %3822 = vmatpush1.bf16.xpose.msra.mxu0 0
        %3823 = vmatprep.subr.bf16.mxu0 0
        %3824 = vmatpush1.bf16.xpose.msra.mxu0 0
        %3825 = vmatprep.subr.bf16.mxu0 0
        %3826 = vmatpush1.bf16.xpose.msra.mxu0 0
        %3827 = vmatprep.subr.bf16.mxu0 0
        %3828 = vmatpush1.bf16.xpose.msra.mxu0 0
        %3829 = vmatprep.subr.bf16.mxu0 0
        %3830 = vmatpush1.bf16.xpose.msra.mxu0 0
        %3831 = vmatprep.subr.bf16.mxu0 0
        %3832 = vmatpush1.bf16.xpose.msra.mxu0 0
        %3833 = vmatprep.subr.bf16.mxu0 0
        %3834 = vmatpush1.bf16.xpose.msra.mxu0 0
        %3835 = vmatprep.subr.bf16.mxu0 0
        %3836 = vmatpush1.bf16.xpose.msra.mxu0 %v3819
        %3837 = vmatprep.subr.bf16.mxu0 0
        %3838 = vmatpush2.bf16.xpose.msra.mxu0 0
        %3839 = vmatprep.subr.bf16.mxu0 0
        %3840 = vmatpush2.bf16.xpose.msra.mxu0 0
        %3841 = vmatprep.subr.bf16.mxu0 0
        %3842 = vmatpush2.bf16.xpose.msra.mxu0 0
        %3843 = vmatprep.subr.bf16.mxu0 0
        %3844 = vmatpush2.bf16.xpose.msra.mxu0 0
        %3845 = vmatprep.subr.bf16.mxu0 0
        %3846 = vmatpush2.bf16.xpose.msra.mxu0 0
        %3847 = vmatprep.subr.bf16.mxu0 0
        %3848 = vmatpush2.bf16.xpose.msra.mxu0 0
        %3849 = vmatprep.subr.bf16.mxu0 0
        %3850 = vmatpush2.bf16.xpose.msra.mxu0 0
        %3851 = vmatprep.subr.bf16.mxu0 0
        %3852 = vmatpush2.bf16.xpose.msra.mxu0 0
        %3853 = vmatprep.mubr.bf16.mxu0 0
        %3854 = vmatmul.mubr.bf16.gmra.mxu0 %v3816
        %v3855 = vpop.f32.mrf.mxu0
        %v3856 = vadd.f32 %v3610, %v3855
        %v3857 = vpop.f32.mrf.mxu0
        %v3858 = vpop.f32.mrf.mxu0
        %v3859 = vpop.f32.mrf.mxu0
        %3860 = vdwg.mxu0
        %v3862 = vsel %vm1940, %v3442, 0
        %v3865 = vsel %vm1940, %v3514, 0
        %3867 = vmatprep.subr.bf16.mxu0 0
        %3868 = vmatpush1.bf16.xpose.msra.mxu0 0
        %3869 = vmatprep.subr.bf16.mxu0 0
        %3870 = vmatpush1.bf16.xpose.msra.mxu0 0
        %3871 = vmatprep.subr.bf16.mxu0 0
        %3872 = vmatpush1.bf16.xpose.msra.mxu0 0
        %3873 = vmatprep.subr.bf16.mxu0 0
        %3874 = vmatpush1.bf16.xpose.msra.mxu0 0
        %3875 = vmatprep.subr.bf16.mxu0 0
        %3876 = vmatpush1.bf16.xpose.msra.mxu0 0
        %3877 = vmatprep.subr.bf16.mxu0 0
        %3878 = vmatpush1.bf16.xpose.msra.mxu0 0
        %3879 = vmatprep.subr.bf16.mxu0 0
        %3880 = vmatpush1.bf16.xpose.msra.mxu0 0
        %3881 = vmatprep.subr.bf16.mxu0 0
        %3882 = vmatpush1.bf16.xpose.msra.mxu0 %v3865
        %3883 = vmatprep.subr.bf16.mxu0 0
        %3884 = vmatpush2.bf16.xpose.msra.mxu0 0
        %3885 = vmatprep.subr.bf16.mxu0 0
        %3886 = vmatpush2.bf16.xpose.msra.mxu0 0
        %3887 = vmatprep.subr.bf16.mxu0 0
        %3888 = vmatpush2.bf16.xpose.msra.mxu0 0
        %3889 = vmatprep.subr.bf16.mxu0 0
        %3890 = vmatpush2.bf16.xpose.msra.mxu0 0
        %3891 = vmatprep.subr.bf16.mxu0 0
        %3892 = vmatpush2.bf16.xpose.msra.mxu0 0
        %3893 = vmatprep.subr.bf16.mxu0 0
        %3894 = vmatpush2.bf16.xpose.msra.mxu0 0
        %3895 = vmatprep.subr.bf16.mxu0 0
        %3896 = vmatpush2.bf16.xpose.msra.mxu0 0
        %3897 = vmatprep.subr.bf16.mxu0 0
        %3898 = vmatpush2.bf16.xpose.msra.mxu0 0
        %3899 = vmatprep.mubr.bf16.mxu0 0
        %3900 = vmatmul.mubr.bf16.gmra.mxu0 %v3862
        %v3901 = vpop.f32.mrf.mxu0
        %v3902 = vadd.f32 %v3614, %v3901
        %v3903 = vpop.f32.mrf.mxu0
        %v3904 = vpop.f32.mrf.mxu0
        %v3905 = vpop.f32.mrf.mxu0
        %3906 = vdwg.mxu0
        %v3908 = vsel %vm1940, %v3443, 0
        %v3911 = vsel %vm1940, %v3515, 0
        %3913 = vmatprep.subr.bf16.mxu0 0
        %3914 = vmatpush1.bf16.xpose.msra.mxu0 0
        %3915 = vmatprep.subr.bf16.mxu0 0
        %3916 = vmatpush1.bf16.xpose.msra.mxu0 0
        %3917 = vmatprep.subr.bf16.mxu0 0
        %3918 = vmatpush1.bf16.xpose.msra.mxu0 0
        %3919 = vmatprep.subr.bf16.mxu0 0
        %3920 = vmatpush1.bf16.xpose.msra.mxu0 0
        %3921 = vmatprep.subr.bf16.mxu0 0
        %3922 = vmatpush1.bf16.xpose.msra.mxu0 0
        %3923 = vmatprep.subr.bf16.mxu0 0
        %3924 = vmatpush1.bf16.xpose.msra.mxu0 0
        %3925 = vmatprep.subr.bf16.mxu0 0
        %3926 = vmatpush1.bf16.xpose.msra.mxu0 0
        %3927 = vmatprep.subr.bf16.mxu0 0
        %3928 = vmatpush1.bf16.xpose.msra.mxu0 %v3911
        %3929 = vmatprep.subr.bf16.mxu0 0
        %3930 = vmatpush2.bf16.xpose.msra.mxu0 0
        %3931 = vmatprep.subr.bf16.mxu0 0
        %3932 = vmatpush2.bf16.xpose.msra.mxu0 0
        %3933 = vmatprep.subr.bf16.mxu0 0
        %3934 = vmatpush2.bf16.xpose.msra.mxu0 0
        %3935 = vmatprep.subr.bf16.mxu0 0
        %3936 = vmatpush2.bf16.xpose.msra.mxu0 0
        %3937 = vmatprep.subr.bf16.mxu0 0
        %3938 = vmatpush2.bf16.xpose.msra.mxu0 0
        %3939 = vmatprep.subr.bf16.mxu0 0
        %3940 = vmatpush2.bf16.xpose.msra.mxu0 0
        %3941 = vmatprep.subr.bf16.mxu0 0
        %3942 = vmatpush2.bf16.xpose.msra.mxu0 0
        %3943 = vmatprep.subr.bf16.mxu0 0
        %3944 = vmatpush2.bf16.xpose.msra.mxu0 0
        %3945 = vmatprep.mubr.bf16.mxu0 0
        %3946 = vmatmul.mubr.bf16.gmra.mxu0 %v3908
        %v3947 = vpop.f32.mrf.mxu0
        %v3948 = vadd.f32 %v3618, %v3947
        %v3949 = vpop.f32.mrf.mxu0
        %v3950 = vpop.f32.mrf.mxu0
        %v3951 = vpop.f32.mrf.mxu0
        %3952 = vdwg.mxu0
        %v3954 = vsel %vm1940, %v3444, 0
        %v3957 = vsel %vm1940, %v3516, 0
        %3959 = vmatprep.subr.bf16.mxu0 0
        %3960 = vmatpush1.bf16.xpose.msra.mxu0 0
        %3961 = vmatprep.subr.bf16.mxu0 0
        %3962 = vmatpush1.bf16.xpose.msra.mxu0 0
        %3963 = vmatprep.subr.bf16.mxu0 0
        %3964 = vmatpush1.bf16.xpose.msra.mxu0 0
        %3965 = vmatprep.subr.bf16.mxu0 0
        %3966 = vmatpush1.bf16.xpose.msra.mxu0 0
        %3967 = vmatprep.subr.bf16.mxu0 0
        %3968 = vmatpush1.bf16.xpose.msra.mxu0 0
        %3969 = vmatprep.subr.bf16.mxu0 0
        %3970 = vmatpush1.bf16.xpose.msra.mxu0 0
        %3971 = vmatprep.subr.bf16.mxu0 0
        %3972 = vmatpush1.bf16.xpose.msra.mxu0 0
        %3973 = vmatprep.subr.bf16.mxu0 0
        %3974 = vmatpush1.bf16.xpose.msra.mxu0 %v3957
        %3975 = vmatprep.subr.bf16.mxu0 0
        %3976 = vmatpush2.bf16.xpose.msra.mxu0 0
        %3977 = vmatprep.subr.bf16.mxu0 0
        %3978 = vmatpush2.bf16.xpose.msra.mxu0 0
        %3979 = vmatprep.subr.bf16.mxu0 0
        %3980 = vmatpush2.bf16.xpose.msra.mxu0 0
        %3981 = vmatprep.subr.bf16.mxu0 0
        %3982 = vmatpush2.bf16.xpose.msra.mxu0 0
        %3983 = vmatprep.subr.bf16.mxu0 0
        %3984 = vmatpush2.bf16.xpose.msra.mxu0 0
        %3985 = vmatprep.subr.bf16.mxu0 0
        %3986 = vmatpush2.bf16.xpose.msra.mxu0 0
        %3987 = vmatprep.subr.bf16.mxu0 0
        %3988 = vmatpush2.bf16.xpose.msra.mxu0 0
        %3989 = vmatprep.subr.bf16.mxu0 0
        %3990 = vmatpush2.bf16.xpose.msra.mxu0 0
        %3991 = vmatprep.mubr.bf16.mxu0 0
        %3992 = vmatmul.mubr.bf16.gmra.mxu0 %v3954
        %v3993 = vpop.f32.mrf.mxu0
        %v3994 = vadd.f32 %v3622, %v3993
        %v3995 = vpop.f32.mrf.mxu0
        %v3996 = vpop.f32.mrf.mxu0
        %v3997 = vpop.f32.mrf.mxu0
        %3998 = vdwg.mxu0
        %vm3999 = vcmask 97280
        %v4000 = vsel %vm3999, %v3672, -inf
        %4001 = vmax.xlane.f32.xlu0 %v4000
        %v4002 = vpop.xlane.xlu0 %4001
        %v4003 = vsel %vm3999, %v3718, -inf
        %4004 = vmax.xlane.f32.xlu0 %v4003
        %v4005 = vpop.xlane.xlu0 %4004
        %v4006 = vsel %vm3999, %v3764, -inf
        %4007 = vmax.xlane.f32.xlu0 %v4006
        %v4008 = vpop.xlane.xlu0 %4007
        %v4009 = vsel %vm3999, %v3810, -inf
        %4010 = vmax.xlane.f32.xlu0 %v4009
        %v4011 = vpop.xlane.xlu0 %4010
        %v4012 = vsel %vm3999, %v3856, -inf
        %4013 = vmax.xlane.f32.xlu0 %v4012
        %v4014 = vpop.xlane.xlu0 %4013
        %v4015 = vsel %vm3999, %v3902, -inf
        %4016 = vmax.xlane.f32.xlu0 %v4015
        %v4017 = vpop.xlane.xlu0 %4016
        %v4018 = vsel %vm3999, %v3948, -inf
        %4019 = vmax.xlane.f32.xlu0 %v4018
        %v4020 = vpop.xlane.xlu0 %4019
        %v4021 = vsel %vm3999, %v3994, -inf
        %4022 = vmax.xlane.f32.xlu0 %v4021
        %v4023 = vpop.xlane.xlu0 %4022
        %v4024 = vsub.f32 %v3672, %v4002
        %v4025 = vsub.f32 %v3718, %v4005
        %v4026 = vsub.f32 %v3764, %v4008
        %v4027 = vsub.f32 %v3810, %v4011
        %v4028 = vsub.f32 %v3856, %v4014
        %v4029 = vsub.f32 %v3902, %v4017
        %v4030 = vsub.f32 %v3948, %v4020
        %v4031 = vsub.f32 %v3994, %v4023
        %v4032 = vmul.f32 %v4024, 1.442695
        %v4033 = vpow.pop %v4032
        %v4034 = vmul.f32 %v4025, 1.442695
        %v4035 = vpow.pop %v4034
        %v4036 = vmul.f32 %v4026, 1.442695
        %v4037 = vpow.pop %v4036
        %v4038 = vmul.f32 %v4027, 1.442695
        %v4039 = vpow.pop %v4038
        %v4040 = vmul.f32 %v4028, 1.442695
        %v4041 = vpow.pop %v4040
        %v4042 = vmul.f32 %v4029, 1.442695
        %v4043 = vpow.pop %v4042
        %v4044 = vmul.f32 %v4030, 1.442695
        %v4045 = vpow.pop %v4044
        %v4046 = vmul.f32 %v4031, 1.442695
        %v4047 = vpow.pop %v4046
        %v4048 = vsel %vm3999, %v4033, 0.0
        %4049 = vadd.xlane.f32.xlu0 %v4048
        %v4050 = vpop.xlane.xlu0 %4049
        %v4051 = vsel %vm3999, %v4035, 0.0
        %4052 = vadd.xlane.f32.xlu0 %v4051
        %v4053 = vpop.xlane.xlu0 %4052
        %v4054 = vsel %vm3999, %v4037, 0.0
        %4055 = vadd.xlane.f32.xlu0 %v4054
        %v4056 = vpop.xlane.xlu0 %4055
        %v4057 = vsel %vm3999, %v4039, 0.0
        %4058 = vadd.xlane.f32.xlu0 %v4057
        %v4059 = vpop.xlane.xlu0 %4058
        %v4060 = vsel %vm3999, %v4041, 0.0
        %4061 = vadd.xlane.f32.xlu0 %v4060
        %v4062 = vpop.xlane.xlu0 %4061
        %v4063 = vsel %vm3999, %v4043, 0.0
        %4064 = vadd.xlane.f32.xlu0 %v4063
        %v4065 = vpop.xlane.xlu0 %4064
        %v4066 = vsel %vm3999, %v4045, 0.0
        %4067 = vadd.xlane.f32.xlu0 %v4066
        %v4068 = vpop.xlane.xlu0 %4067
        %v4069 = vsel %vm3999, %v4047, 0.0
        %4070 = vadd.xlane.f32.xlu0 %v4069
        %v4071 = vpop.xlane.xlu0 %4070
        %v4072 = vrcp.pop %v4050
        %v4073 = vrcp.pop %v4053
        %v4074 = vrcp.pop %v4056
        %v4075 = vrcp.pop %v4059
        %v4076 = vrcp.pop %v4062
        %v4077 = vrcp.pop %v4065
        %v4078 = vrcp.pop %v4068
        %v4079 = vrcp.pop %v4071
        %v4080 = vmul.f32 %v4033, %v4072
        %v4081 = vmul.f32 %v4035, %v4073
        %v4082 = vmul.f32 %v4037, %v4074
        %v4083 = vmul.f32 %v4039, %v4075
        %v4084 = vmul.f32 %v4041, %v4076
        %v4085 = vmul.f32 %v4043, %v4077
        %v4086 = vmul.f32 %v4045, %v4078
        %v4087 = vmul.f32 %v4047, %v4079
        %v4088 = vpack.c.bf16 %v4080, %v4080
        %v4089 = vpack.c.bf16 %v4081, %v4081
        %v4090 = vpack.c.bf16 %v4082, %v4082
        %v4091 = vpack.c.bf16 %v4083, %v4083
        %v4092 = vpack.c.bf16 %v4084, %v4084
        %v4093 = vpack.c.bf16 %v4085, %v4085
        %v4094 = vpack.c.bf16 %v4086, %v4086
        %v4095 = vpack.c.bf16 %v4087, %v4087
        %v4097 = vsel %vm3999, %v4088, 0
        %vm4099 = vcmask 1045504
        %v4101 = vsel %vm4099, %v3575, 0
        %4103 = vmatprep.subr.bf16.mxu0 0
        %4104 = vmatpush1.bf16.msra.mxu0 0
        %4105 = vmatprep.subr.bf16.mxu0 0
        %4106 = vmatpush1.bf16.msra.mxu0 0
        %4107 = vmatprep.subr.bf16.mxu0 0
        %4108 = vmatpush1.bf16.msra.mxu0 0
        %4109 = vmatprep.subr.bf16.mxu0 0
        %4110 = vmatpush1.bf16.msra.mxu0 0
        %4111 = vmatprep.subr.bf16.mxu0 0
        %4112 = vmatpush1.bf16.msra.mxu0 0
        %4113 = vmatprep.subr.bf16.mxu0 0
        %4114 = vmatpush1.bf16.msra.mxu0 0
        %4115 = vmatprep.subr.bf16.mxu0 0
        %4116 = vmatpush1.bf16.msra.mxu0 0
        %4117 = vmatprep.subr.bf16.mxu0 0
        %4118 = vmatpush1.bf16.msra.mxu0 %v4101
        %4119 = vmatprep.subr.bf16.mxu0 0
        %4120 = vmatpush2.bf16.msra.mxu0 0
        %4121 = vmatprep.subr.bf16.mxu0 0
        %4122 = vmatpush2.bf16.msra.mxu0 0
        %4123 = vmatprep.subr.bf16.mxu0 0
        %4124 = vmatpush2.bf16.msra.mxu0 0
        %4125 = vmatprep.subr.bf16.mxu0 0
        %4126 = vmatpush2.bf16.msra.mxu0 0
        %4127 = vmatprep.subr.bf16.mxu0 0
        %4128 = vmatpush2.bf16.msra.mxu0 0
        %4129 = vmatprep.subr.bf16.mxu0 0
        %4130 = vmatpush2.bf16.msra.mxu0 0
        %4131 = vmatprep.subr.bf16.mxu0 0
        %4132 = vmatpush2.bf16.msra.mxu0 0
        %4133 = vmatprep.subr.bf16.mxu0 0
        %4134 = vmatpush2.bf16.msra.mxu0 0
        %4135 = vmatprep.mubr.bf16.mxu0 0
        %4136 = vmatmul.mubr.bf16.gmra.mxu0 %v4097
        %v4137 = vpop.f32.mrf.mxu0
        %v4138 = vadd.f32 0.0, %v4137
        %v4139 = vpop.f32.mrf.mxu0
        %v4140 = vpop.f32.mrf.mxu0
        %v4141 = vpop.f32.mrf.mxu0
        %4142 = vdwg.mxu0
        %v4144 = vsel %vm3999, %v4089, 0
        %v4147 = vsel %vm4099, %v3576, 0
        %4149 = vmatprep.subr.bf16.mxu0 0
        %4150 = vmatpush1.bf16.msra.mxu0 0
        %4151 = vmatprep.subr.bf16.mxu0 0
        %4152 = vmatpush1.bf16.msra.mxu0 0
        %4153 = vmatprep.subr.bf16.mxu0 0
        %4154 = vmatpush1.bf16.msra.mxu0 0
        %4155 = vmatprep.subr.bf16.mxu0 0
        %4156 = vmatpush1.bf16.msra.mxu0 0
        %4157 = vmatprep.subr.bf16.mxu0 0
        %4158 = vmatpush1.bf16.msra.mxu0 0
        %4159 = vmatprep.subr.bf16.mxu0 0
        %4160 = vmatpush1.bf16.msra.mxu0 0
        %4161 = vmatprep.subr.bf16.mxu0 0
        %4162 = vmatpush1.bf16.msra.mxu0 0
        %4163 = vmatprep.subr.bf16.mxu0 0
        %4164 = vmatpush1.bf16.msra.mxu0 %v4147
        %4165 = vmatprep.subr.bf16.mxu0 0
        %4166 = vmatpush2.bf16.msra.mxu0 0
        %4167 = vmatprep.subr.bf16.mxu0 0
        %4168 = vmatpush2.bf16.msra.mxu0 0
        %4169 = vmatprep.subr.bf16.mxu0 0
        %4170 = vmatpush2.bf16.msra.mxu0 0
        %4171 = vmatprep.subr.bf16.mxu0 0
        %4172 = vmatpush2.bf16.msra.mxu0 0
        %4173 = vmatprep.subr.bf16.mxu0 0
        %4174 = vmatpush2.bf16.msra.mxu0 0
        %4175 = vmatprep.subr.bf16.mxu0 0
        %4176 = vmatpush2.bf16.msra.mxu0 0
        %4177 = vmatprep.subr.bf16.mxu0 0
        %4178 = vmatpush2.bf16.msra.mxu0 0
        %4179 = vmatprep.subr.bf16.mxu0 0
        %4180 = vmatpush2.bf16.msra.mxu0 0
        %4181 = vmatprep.mubr.bf16.mxu0 0
        %4182 = vmatmul.mubr.bf16.gmra.mxu0 %v4144
        %v4183 = vpop.f32.mrf.mxu0
        %v4184 = vadd.f32 0.0, %v4183
        %v4185 = vpop.f32.mrf.mxu0
        %v4186 = vpop.f32.mrf.mxu0
        %v4187 = vpop.f32.mrf.mxu0
        %4188 = vdwg.mxu0
        %v4190 = vsel %vm3999, %v4090, 0
        %v4193 = vsel %vm4099, %v3577, 0
        %4195 = vmatprep.subr.bf16.mxu0 0
        %4196 = vmatpush1.bf16.msra.mxu0 0
        %4197 = vmatprep.subr.bf16.mxu0 0
        %4198 = vmatpush1.bf16.msra.mxu0 0
        %4199 = vmatprep.subr.bf16.mxu0 0
        %4200 = vmatpush1.bf16.msra.mxu0 0
        %4201 = vmatprep.subr.bf16.mxu0 0
        %4202 = vmatpush1.bf16.msra.mxu0 0
        %4203 = vmatprep.subr.bf16.mxu0 0
        %4204 = vmatpush1.bf16.msra.mxu0 0
        %4205 = vmatprep.subr.bf16.mxu0 0
        %4206 = vmatpush1.bf16.msra.mxu0 0
        %4207 = vmatprep.subr.bf16.mxu0 0
        %4208 = vmatpush1.bf16.msra.mxu0 0
        %4209 = vmatprep.subr.bf16.mxu0 0
        %4210 = vmatpush1.bf16.msra.mxu0 %v4193
        %4211 = vmatprep.subr.bf16.mxu0 0
        %4212 = vmatpush2.bf16.msra.mxu0 0
        %4213 = vmatprep.subr.bf16.mxu0 0
        %4214 = vmatpush2.bf16.msra.mxu0 0
        %4215 = vmatprep.subr.bf16.mxu0 0
        %4216 = vmatpush2.bf16.msra.mxu0 0
        %4217 = vmatprep.subr.bf16.mxu0 0
        %4218 = vmatpush2.bf16.msra.mxu0 0
        %4219 = vmatprep.subr.bf16.mxu0 0
        %4220 = vmatpush2.bf16.msra.mxu0 0
        %4221 = vmatprep.subr.bf16.mxu0 0
        %4222 = vmatpush2.bf16.msra.mxu0 0
        %4223 = vmatprep.subr.bf16.mxu0 0
        %4224 = vmatpush2.bf16.msra.mxu0 0
        %4225 = vmatprep.subr.bf16.mxu0 0
        %4226 = vmatpush2.bf16.msra.mxu0 0
        %4227 = vmatprep.mubr.bf16.mxu0 0
        %4228 = vmatmul.mubr.bf16.gmra.mxu0 %v4190
        %v4229 = vpop.f32.mrf.mxu0
        %v4230 = vadd.f32 0.0, %v4229
        %v4231 = vpop.f32.mrf.mxu0
        %v4232 = vpop.f32.mrf.mxu0
        %v4233 = vpop.f32.mrf.mxu0
        %4234 = vdwg.mxu0
        %v4236 = vsel %vm3999, %v4091, 0
        %v4239 = vsel %vm4099, %v3578, 0
        %4241 = vmatprep.subr.bf16.mxu0 0
        %4242 = vmatpush1.bf16.msra.mxu0 0
        %4243 = vmatprep.subr.bf16.mxu0 0
        %4244 = vmatpush1.bf16.msra.mxu0 0
        %4245 = vmatprep.subr.bf16.mxu0 0
        %4246 = vmatpush1.bf16.msra.mxu0 0
        %4247 = vmatprep.subr.bf16.mxu0 0
        %4248 = vmatpush1.bf16.msra.mxu0 0
        %4249 = vmatprep.subr.bf16.mxu0 0
        %4250 = vmatpush1.bf16.msra.mxu0 0
        %4251 = vmatprep.subr.bf16.mxu0 0
        %4252 = vmatpush1.bf16.msra.mxu0 0
        %4253 = vmatprep.subr.bf16.mxu0 0
        %4254 = vmatpush1.bf16.msra.mxu0 0
        %4255 = vmatprep.subr.bf16.mxu0 0
        %4256 = vmatpush1.bf16.msra.mxu0 %v4239
        %4257 = vmatprep.subr.bf16.mxu0 0
        %4258 = vmatpush2.bf16.msra.mxu0 0
        %4259 = vmatprep.subr.bf16.mxu0 0
        %4260 = vmatpush2.bf16.msra.mxu0 0
        %4261 = vmatprep.subr.bf16.mxu0 0
        %4262 = vmatpush2.bf16.msra.mxu0 0
        %4263 = vmatprep.subr.bf16.mxu0 0
        %4264 = vmatpush2.bf16.msra.mxu0 0
        %4265 = vmatprep.subr.bf16.mxu0 0
        %4266 = vmatpush2.bf16.msra.mxu0 0
        %4267 = vmatprep.subr.bf16.mxu0 0
        %4268 = vmatpush2.bf16.msra.mxu0 0
        %4269 = vmatprep.subr.bf16.mxu0 0
        %4270 = vmatpush2.bf16.msra.mxu0 0
        %4271 = vmatprep.subr.bf16.mxu0 0
        %4272 = vmatpush2.bf16.msra.mxu0 0
        %4273 = vmatprep.mubr.bf16.mxu0 0
        %4274 = vmatmul.mubr.bf16.gmra.mxu0 %v4236
        %v4275 = vpop.f32.mrf.mxu0
        %v4276 = vadd.f32 0.0, %v4275
        %v4277 = vpop.f32.mrf.mxu0
        %v4278 = vpop.f32.mrf.mxu0
        %v4279 = vpop.f32.mrf.mxu0
        %4280 = vdwg.mxu0
        %v4282 = vsel %vm3999, %v4092, 0
        %v4285 = vsel %vm4099, %v3579, 0
        %4287 = vmatprep.subr.bf16.mxu0 0
        %4288 = vmatpush1.bf16.msra.mxu0 0
        %4289 = vmatprep.subr.bf16.mxu0 0
        %4290 = vmatpush1.bf16.msra.mxu0 0
        %4291 = vmatprep.subr.bf16.mxu0 0
        %4292 = vmatpush1.bf16.msra.mxu0 0
        %4293 = vmatprep.subr.bf16.mxu0 0
        %4294 = vmatpush1.bf16.msra.mxu0 0
        %4295 = vmatprep.subr.bf16.mxu0 0
        %4296 = vmatpush1.bf16.msra.mxu0 0
        %4297 = vmatprep.subr.bf16.mxu0 0
        %4298 = vmatpush1.bf16.msra.mxu0 0
        %4299 = vmatprep.subr.bf16.mxu0 0
        %4300 = vmatpush1.bf16.msra.mxu0 0
        %4301 = vmatprep.subr.bf16.mxu0 0
        %4302 = vmatpush1.bf16.msra.mxu0 %v4285
        %4303 = vmatprep.subr.bf16.mxu0 0
        %4304 = vmatpush2.bf16.msra.mxu0 0
        %4305 = vmatprep.subr.bf16.mxu0 0
        %4306 = vmatpush2.bf16.msra.mxu0 0
        %4307 = vmatprep.subr.bf16.mxu0 0
        %4308 = vmatpush2.bf16.msra.mxu0 0
        %4309 = vmatprep.subr.bf16.mxu0 0
        %4310 = vmatpush2.bf16.msra.mxu0 0
        %4311 = vmatprep.subr.bf16.mxu0 0
        %4312 = vmatpush2.bf16.msra.mxu0 0
        %4313 = vmatprep.subr.bf16.mxu0 0
        %4314 = vmatpush2.bf16.msra.mxu0 0
        %4315 = vmatprep.subr.bf16.mxu0 0
        %4316 = vmatpush2.bf16.msra.mxu0 0
        %4317 = vmatprep.subr.bf16.mxu0 0
        %4318 = vmatpush2.bf16.msra.mxu0 0
        %4319 = vmatprep.mubr.bf16.mxu0 0
        %4320 = vmatmul.mubr.bf16.gmra.mxu0 %v4282
        %v4321 = vpop.f32.mrf.mxu0
        %v4322 = vadd.f32 0.0, %v4321
        %v4323 = vpop.f32.mrf.mxu0
        %v4324 = vpop.f32.mrf.mxu0
        %v4325 = vpop.f32.mrf.mxu0
        %4326 = vdwg.mxu0
        %v4328 = vsel %vm3999, %v4093, 0
        %v4331 = vsel %vm4099, %v3580, 0
        %4333 = vmatprep.subr.bf16.mxu0 0
        %4334 = vmatpush1.bf16.msra.mxu0 0
        %4335 = vmatprep.subr.bf16.mxu0 0
        %4336 = vmatpush1.bf16.msra.mxu0 0
        %4337 = vmatprep.subr.bf16.mxu0 0
        %4338 = vmatpush1.bf16.msra.mxu0 0
        %4339 = vmatprep.subr.bf16.mxu0 0
        %4340 = vmatpush1.bf16.msra.mxu0 0
        %4341 = vmatprep.subr.bf16.mxu0 0
        %4342 = vmatpush1.bf16.msra.mxu0 0
        %4343 = vmatprep.subr.bf16.mxu0 0
        %4344 = vmatpush1.bf16.msra.mxu0 0
        %4345 = vmatprep.subr.bf16.mxu0 0
        %4346 = vmatpush1.bf16.msra.mxu0 0
        %4347 = vmatprep.subr.bf16.mxu0 0
        %4348 = vmatpush1.bf16.msra.mxu0 %v4331
        %4349 = vmatprep.subr.bf16.mxu0 0
        %4350 = vmatpush2.bf16.msra.mxu0 0
        %4351 = vmatprep.subr.bf16.mxu0 0
        %4352 = vmatpush2.bf16.msra.mxu0 0
        %4353 = vmatprep.subr.bf16.mxu0 0
        %4354 = vmatpush2.bf16.msra.mxu0 0
        %4355 = vmatprep.subr.bf16.mxu0 0
        %4356 = vmatpush2.bf16.msra.mxu0 0
        %4357 = vmatprep.subr.bf16.mxu0 0
        %4358 = vmatpush2.bf16.msra.mxu0 0
        %4359 = vmatprep.subr.bf16.mxu0 0
        %4360 = vmatpush2.bf16.msra.mxu0 0
        %4361 = vmatprep.subr.bf16.mxu0 0
        %4362 = vmatpush2.bf16.msra.mxu0 0
        %4363 = vmatprep.subr.bf16.mxu0 0
        %4364 = vmatpush2.bf16.msra.mxu0 0
        %4365 = vmatprep.mubr.bf16.mxu0 0
        %4366 = vmatmul.mubr.bf16.gmra.mxu0 %v4328
        %v4367 = vpop.f32.mrf.mxu0
        %v4368 = vadd.f32 0.0, %v4367
        %v4369 = vpop.f32.mrf.mxu0
        %v4370 = vpop.f32.mrf.mxu0
        %v4371 = vpop.f32.mrf.mxu0
        %4372 = vdwg.mxu0
        %v4374 = vsel %vm3999, %v4094, 0
        %v4377 = vsel %vm4099, %v3581, 0
        %4379 = vmatprep.subr.bf16.mxu0 0
        %4380 = vmatpush1.bf16.msra.mxu0 0
        %4381 = vmatprep.subr.bf16.mxu0 0
        %4382 = vmatpush1.bf16.msra.mxu0 0
        %4383 = vmatprep.subr.bf16.mxu0 0
        %4384 = vmatpush1.bf16.msra.mxu0 0
        %4385 = vmatprep.subr.bf16.mxu0 0
        %4386 = vmatpush1.bf16.msra.mxu0 0
        %4387 = vmatprep.subr.bf16.mxu0 0
        %4388 = vmatpush1.bf16.msra.mxu0 0
        %4389 = vmatprep.subr.bf16.mxu0 0
        %4390 = vmatpush1.bf16.msra.mxu0 0
        %4391 = vmatprep.subr.bf16.mxu0 0
        %4392 = vmatpush1.bf16.msra.mxu0 0
        %4393 = vmatprep.subr.bf16.mxu0 0
        %4394 = vmatpush1.bf16.msra.mxu0 %v4377
        %4395 = vmatprep.subr.bf16.mxu0 0
        %4396 = vmatpush2.bf16.msra.mxu0 0
        %4397 = vmatprep.subr.bf16.mxu0 0
        %4398 = vmatpush2.bf16.msra.mxu0 0
        %4399 = vmatprep.subr.bf16.mxu0 0
        %4400 = vmatpush2.bf16.msra.mxu0 0
        %4401 = vmatprep.subr.bf16.mxu0 0
        %4402 = vmatpush2.bf16.msra.mxu0 0
        %4403 = vmatprep.subr.bf16.mxu0 0
        %4404 = vmatpush2.bf16.msra.mxu0 0
        %4405 = vmatprep.subr.bf16.mxu0 0
        %4406 = vmatpush2.bf16.msra.mxu0 0
        %4407 = vmatprep.subr.bf16.mxu0 0
        %4408 = vmatpush2.bf16.msra.mxu0 0
        %4409 = vmatprep.subr.bf16.mxu0 0
        %4410 = vmatpush2.bf16.msra.mxu0 0
        %4411 = vmatprep.mubr.bf16.mxu0 0
        %4412 = vmatmul.mubr.bf16.gmra.mxu0 %v4374
        %v4413 = vpop.f32.mrf.mxu0
        %v4414 = vadd.f32 0.0, %v4413
        %v4415 = vpop.f32.mrf.mxu0
        %v4416 = vpop.f32.mrf.mxu0
        %v4417 = vpop.f32.mrf.mxu0
        %4418 = vdwg.mxu0
        %v4420 = vsel %vm3999, %v4095, 0
        %v4423 = vsel %vm4099, %v3582, 0
        %4425 = vmatprep.subr.bf16.mxu0 0
        %4426 = vmatpush1.bf16.msra.mxu0 0
        %4427 = vmatprep.subr.bf16.mxu0 0
        %4428 = vmatpush1.bf16.msra.mxu0 0
        %4429 = vmatprep.subr.bf16.mxu0 0
        %4430 = vmatpush1.bf16.msra.mxu0 0
        %4431 = vmatprep.subr.bf16.mxu0 0
        %4432 = vmatpush1.bf16.msra.mxu0 0
        %4433 = vmatprep.subr.bf16.mxu0 0
        %4434 = vmatpush1.bf16.msra.mxu0 0
        %4435 = vmatprep.subr.bf16.mxu0 0
        %4436 = vmatpush1.bf16.msra.mxu0 0
        %4437 = vmatprep.subr.bf16.mxu0 0
        %4438 = vmatpush1.bf16.msra.mxu0 0
        %4439 = vmatprep.subr.bf16.mxu0 0
        %4440 = vmatpush1.bf16.msra.mxu0 %v4423
        %4441 = vmatprep.subr.bf16.mxu0 0
        %4442 = vmatpush2.bf16.msra.mxu0 0
        %4443 = vmatprep.subr.bf16.mxu0 0
        %4444 = vmatpush2.bf16.msra.mxu0 0
        %4445 = vmatprep.subr.bf16.mxu0 0
        %4446 = vmatpush2.bf16.msra.mxu0 0
        %4447 = vmatprep.subr.bf16.mxu0 0
        %4448 = vmatpush2.bf16.msra.mxu0 0
        %4449 = vmatprep.subr.bf16.mxu0 0
        %4450 = vmatpush2.bf16.msra.mxu0 0
        %4451 = vmatprep.subr.bf16.mxu0 0
        %4452 = vmatpush2.bf16.msra.mxu0 0
        %4453 = vmatprep.subr.bf16.mxu0 0
        %4454 = vmatpush2.bf16.msra.mxu0 0
        %4455 = vmatprep.subr.bf16.mxu0 0
        %4456 = vmatpush2.bf16.msra.mxu0 0
        %4457 = vmatprep.mubr.bf16.mxu0 0
        %4458 = vmatmul.mubr.bf16.gmra.mxu0 %v4420
        %v4459 = vpop.f32.mrf.mxu0
        %v4460 = vadd.f32 0.0, %v4459
        %v4461 = vpop.f32.mrf.mxu0
        %v4462 = vpop.f32.mrf.mxu0
        %v4463 = vpop.f32.mrf.mxu0
        %4464 = vdwg.mxu0
        %4467 = vrot.lane.b32.xlu0 %v4230, 32
        %v4468 = vpop.permute.xlu0 %4467
        %4469 = vrot.lane.b32.xlu0 %v4276, 32
        %v4470 = vpop.permute.xlu0 %4469
        %4475 = vrot.lane.b32.xlu0 %v4322, 64
        %v4476 = vpop.permute.xlu0 %4475
        %4477 = vrot.lane.b32.xlu0 %v4368, 64
        %v4478 = vpop.permute.xlu0 %4477
        %4483 = vrot.lane.b32.xlu0 %v4414, 96
        %v4484 = vpop.permute.xlu0 %4483
        %4485 = vrot.lane.b32.xlu0 %v4460, 96
        %v4486 = vpop.permute.xlu0 %4485
        %v4489 = vsel %vm1940, %v4138, %v4468
        %v4490 = vsel %vm1940, %v4184, %v4470
        %v4491 = vsel %vm2809, %v4489, %v4476
        %v4492 = vsel %vm2809, %v4490, %v4478
        %v4493 = vsel %vm2812, %v4491, %v4484
        %v4494 = vsel %vm2812, %v4492, %v4486
        %v4495 = vpack.c.bf16 %v4494, %v4493
        %v4496 = vld [vmem:[%s1333] sm:$0xf]
        %v4497 = vld [vmem:[%s1333 + $0x4] sm:$0xf]
        %v4498 = vld [vmem:[%s1333 + $0x8] sm:$0xf]
        %v4499 = vld [vmem:[%s1333 + $0xc] sm:$0xf]
        %v4500 = vld [vmem:[%s1333 + $0x10] sm:$0xf]
        %v4501 = vld [vmem:[%s1333 + $0x14] sm:$0xf]
        %v4502 = vld [vmem:[%s1333 + $0x18] sm:$0xf]
        %v4503 = vld [vmem:[%s1333 + $0x1c] sm:$0xf]
        %v4504 = vld [vmem:[%s1333 + $0x20] sm:$0xf]
        %v4505 = vld [vmem:[%s1333 + $0x24] sm:$0xf]
        %v4506 = vld [vmem:[%s1333 + $0x28] sm:$0xf]
        %v4507 = vld [vmem:[%s1333 + $0x2c] sm:$0xf]
        %v4508 = vld [vmem:[%s1333 + $0x30] sm:$0xf]
        %v4509 = vld [vmem:[%s1333 + $0x34] sm:$0xf]
        %v4510 = vld [vmem:[%s1333 + $0x38] sm:$0xf]
        %v4511 = vld [vmem:[%s1333 + $0x3c] sm:$0xf]
        %v4512 = vld [vmem:[%s1345] sm:$0x1]
        %v4514 = vlaneseq
        %v4515 = vshrl.u32 %v4514, 7
        %v4516 = vsub.s32 0, %v4515
        %v4517 = vrot.slane %v4512, %v4516
        %v4535 = vunpack.c.l.b16 %v4496
        %v4536 = vunpack.c.l.b16 %v4497
        %v4537 = vunpack.c.l.b16 %v4498
        %v4538 = vunpack.c.l.b16 %v4499
        %v4539 = vunpack.c.l.b16 %v4500
        %v4540 = vunpack.c.l.b16 %v4501
        %v4541 = vunpack.c.l.b16 %v4502
        %v4542 = vunpack.c.l.b16 %v4503
        %v4543 = vunpack.c.l.b16 %v4504
        %v4544 = vunpack.c.l.b16 %v4505
        %v4545 = vunpack.c.l.b16 %v4506
        %v4546 = vunpack.c.l.b16 %v4507
        %v4547 = vunpack.c.l.b16 %v4508
        %v4548 = vunpack.c.l.b16 %v4509
        %v4549 = vunpack.c.l.b16 %v4510
        %v4550 = vunpack.c.l.b16 %v4511
        %v4551 = vpack.c.b16 %v4536, %v4535
        %v4552 = vpack.c.b16 %v4538, %v4537
        %v4553 = vpack.c.b16 %v4540, %v4539
        %v4554 = vpack.c.b16 %v4542, %v4541
        %v4555 = vpack.c.b16 %v4544, %v4543
        %v4556 = vpack.c.b16 %v4546, %v4545
        %v4557 = vpack.c.b16 %v4548, %v4547
        %v4558 = vpack.c.b16 %v4550, %v4549
        %4567 = vmatprep.subr.bf16.mxu0 0
        %4568 = vmatpush1.bf16.msra.mxu0 %v4558
        %4569 = vmatprep.subr.bf16.mxu0 0
        %4570 = vmatpush1.bf16.msra.mxu0 %v4557
        %4571 = vmatprep.subr.bf16.mxu0 0
        %4572 = vmatpush1.bf16.msra.mxu0 %v4556
        %4573 = vmatprep.subr.bf16.mxu0 0
        %4574 = vmatpush1.bf16.msra.mxu0 %v4555
        %4575 = vmatprep.subr.bf16.mxu0 0
        %4576 = vmatpush1.bf16.msra.mxu0 %v4554
        %4577 = vmatprep.subr.bf16.mxu0 0
        %4578 = vmatpush1.bf16.msra.mxu0 %v4553
        %4579 = vmatprep.subr.bf16.mxu0 0
        %4580 = vmatpush1.bf16.msra.mxu0 %v4552
        %4581 = vmatprep.subr.bf16.mxu0 0
        %4582 = vmatpush1.bf16.msra.mxu0 %v4551
        %4583 = vmatprep.subr.bf16.mxu0 0
        %4584 = vmatpush2.bf16.msra.mxu0 0
        %4585 = vmatprep.subr.bf16.mxu0 0
        %4586 = vmatpush2.bf16.msra.mxu0 0
        %4587 = vmatprep.subr.bf16.mxu0 0
        %4588 = vmatpush2.bf16.msra.mxu0 0
        %4589 = vmatprep.subr.bf16.mxu0 0
        %4590 = vmatpush2.bf16.msra.mxu0 0
        %4591 = vmatprep.subr.bf16.mxu0 0
        %4592 = vmatpush2.bf16.msra.mxu0 0
        %4593 = vmatprep.subr.bf16.mxu0 0
        %4594 = vmatpush2.bf16.msra.mxu0 0
        %4595 = vmatprep.subr.bf16.mxu0 0
        %4596 = vmatpush2.bf16.msra.mxu0 0
        %4597 = vmatprep.subr.bf16.mxu0 0
        %4598 = vmatpush2.bf16.msra.mxu0 0
        %4599 = vmatprep.mubr.bf16.mxu0 0
        %4600 = vmatmul.mubr.bf16.gmra.mxu0 %v4495
        %v4601 = vpop.f32.mrf.mxu0
        %v4602 = vadd.f32 %v4517, %v4601
        %v4603 = vpop.f32.mrf.mxu0
        %v4604 = vpop.f32.mrf.mxu0
        %v4605 = vadd.f32 %v4517, %v4604
        %v4606 = vpop.f32.mrf.mxu0
        %4607 = vdwg.mxu0
        %v4608 = vadd.f32 %v2928, %v4602
        %v4609 = vadd.f32 %v2929, %v4605
        %v4610 = vmul.f32 %v4608, %v4608
        %v4611 = vmul.f32 %v4609, %v4609
        %4612 = vadd.xlane.f32.xlu0 %v4610
        %v4613 = vpop.xlane.xlu0 %4612
        %4614 = vadd.xlane.f32.xlu0 %v4611
        %v4615 = vpop.xlane.xlu0 %4614
        %v4616 = vmul.f32 %v4613, %v1417
        %v4617 = vmul.f32 %v4615, %v1417
        %v4618 = vadd.f32 %v4616, 1e-06
        %v4619 = vadd.f32 %v4617, 1e-06
        %v4620 = vrsqrt.pop %v4618
        %v4621 = vrsqrt.pop %v4619
        %v4622 = vmul.f32 %v4608, %v4620
        %v4623 = vmul.f32 %v4609, %v4621
        %v4624 = vld [vmem:[%s1348] sm:$0x1]
        %v4626 = vlaneseq
        %v4627 = vshrl.u32 %v4626, 7
        %v4628 = vsub.s32 0, %v4627
        %v4629 = vrot.slane %v4624, %v4628
        %v4631 = vmul.f32 %v4622, %v4629
        %v4632 = vmul.f32 %v4623, %v4629
        %v4633 = vpack.c.bf16 %v4632, %v4631
        %v4634 = vld [vmem:[%s1353] sm:$0xff]
        %v4635 = vld [vmem:[%s1353 + $0x8] sm:$0xff]
        %v4636 = vld [vmem:[%s1353 + $0x10] sm:$0xff]
        %v4637 = vld [vmem:[%s1353 + $0x18] sm:$0xff]
        %v4638 = vld [vmem:[%s1353 + $0x20] sm:$0xff]
        %v4639 = vld [vmem:[%s1353 + $0x28] sm:$0xff]
        %v4640 = vld [vmem:[%s1353 + $0x30] sm:$0xff]
        %v4641 = vld [vmem:[%s1353 + $0x38] sm:$0xff]
        %v4642 = vld [vmem:[%s1353 + $0x40] sm:$0xff]
        %v4643 = vld [vmem:[%s1353 + $0x48] sm:$0xff]
        %v4644 = vld [vmem:[%s1353 + $0x50] sm:$0xff]
        %v4645 = vld [vmem:[%s1353 + $0x58] sm:$0xff]
        %v4646 = vld [vmem:[%s1353 + $0x60] sm:$0xff]
        %v4647 = vld [vmem:[%s1353 + $0x68] sm:$0xff]
        %v4648 = vld [vmem:[%s1353 + $0x70] sm:$0xff]
        %v4649 = vld [vmem:[%s1353 + $0x78] sm:$0xff]
        %v4650 = vld [vmem:[%s1353 + $0x80] sm:$0xff]
        %v4651 = vld [vmem:[%s1353 + $0x88] sm:$0xff]
        %v4652 = vld [vmem:[%s1353 + $0x90] sm:$0xff]
        %v4653 = vld [vmem:[%s1353 + $0x98] sm:$0xff]
        %v4654 = vld [vmem:[%s1353 + $0xa0] sm:$0xff]
        %v4655 = vld [vmem:[%s1353 + $0xa8] sm:$0xff]
        %v4656 = vld [vmem:[%s1353 + $0xb0] sm:$0xff]
        %v4657 = vld [vmem:[%s1353 + $0xb8] sm:$0xff]
        %v4658 = vld [vmem:[%s1353 + $0xc0] sm:$0xff]
        %v4659 = vld [vmem:[%s1353 + $0xc8] sm:$0xff]
        %v4660 = vld [vmem:[%s1353 + $0xd0] sm:$0xff]
        %v4661 = vld [vmem:[%s1353 + $0xd8] sm:$0xff]
        %v4662 = vld [vmem:[%s1353 + $0xe0] sm:$0xff]
        %v4663 = vld [vmem:[%s1353 + $0xe8] sm:$0xff]
        %v4664 = vld [vmem:[%s1353 + $0xf0] sm:$0xff]
        %v4665 = vld [vmem:[%s1353 + $0xf8] sm:$0xff]
        %v4666 = vld [vmem:[%s1357] sm:$0xf]
        %v4668 = vlaneseq
        %v4669 = vshrl.u32 %v4668, 7
        %v4670 = vsub.s32 0, %v4669
        %v4671 = vrot.slane %v4666, %v4670
        %v4672 = vlaneseq
        %v4673 = vshrl.u32 %v4672, 7
        %v4674 = vsub.s32 1, %v4673
        %v4675 = vrot.slane %v4666, %v4674
        %v4676 = vlaneseq
        %v4677 = vshrl.u32 %v4676, 7
        %v4678 = vsub.s32 2, %v4677
        %v4679 = vrot.slane %v4666, %v4678
        %v4680 = vlaneseq
        %v4681 = vshrl.u32 %v4680, 7
        %v4682 = vsub.s32 3, %v4681
        %v4683 = vrot.slane %v4666, %v4682
        %v4720 = vunpack.c.l.b16 %v4634
        %v4721 = vunpack.c.h.b16 %v4634
        %v4722 = vunpack.c.l.b16 %v4635
        %v4723 = vunpack.c.h.b16 %v4635
        %v4724 = vunpack.c.l.b16 %v4636
        %v4725 = vunpack.c.h.b16 %v4636
        %v4726 = vunpack.c.l.b16 %v4637
        %v4727 = vunpack.c.h.b16 %v4637
        %v4728 = vunpack.c.l.b16 %v4638
        %v4729 = vunpack.c.h.b16 %v4638
        %v4730 = vunpack.c.l.b16 %v4639
        %v4731 = vunpack.c.h.b16 %v4639
        %v4732 = vunpack.c.l.b16 %v4640
        %v4733 = vunpack.c.h.b16 %v4640
        %v4734 = vunpack.c.l.b16 %v4641
        %v4735 = vunpack.c.h.b16 %v4641
        %v4736 = vunpack.c.l.b16 %v4642
        %v4737 = vunpack.c.h.b16 %v4642
        %v4738 = vunpack.c.l.b16 %v4643
        %v4739 = vunpack.c.h.b16 %v4643
        %v4740 = vunpack.c.l.b16 %v4644
        %v4741 = vunpack.c.h.b16 %v4644
        %v4742 = vunpack.c.l.b16 %v4645
        %v4743 = vunpack.c.h.b16 %v4645
        %v4744 = vunpack.c.l.b16 %v4646
        %v4745 = vunpack.c.h.b16 %v4646
        %v4746 = vunpack.c.l.b16 %v4647
        %v4747 = vunpack.c.h.b16 %v4647
        %v4748 = vunpack.c.l.b16 %v4648
        %v4749 = vunpack.c.h.b16 %v4648
        %v4750 = vunpack.c.l.b16 %v4649
        %v4751 = vunpack.c.h.b16 %v4649
        %v4752 = vunpack.c.l.b16 %v4650
        %v4753 = vunpack.c.h.b16 %v4650
        %v4754 = vunpack.c.l.b16 %v4651
        %v4755 = vunpack.c.h.b16 %v4651
        %v4756 = vunpack.c.l.b16 %v4652
        %v4757 = vunpack.c.h.b16 %v4652
        %v4758 = vunpack.c.l.b16 %v4653
        %v4759 = vunpack.c.h.b16 %v4653
        %v4760 = vunpack.c.l.b16 %v4654
        %v4761 = vunpack.c.h.b16 %v4654
        %v4762 = vunpack.c.l.b16 %v4655
        %v4763 = vunpack.c.h.b16 %v4655
        %v4764 = vunpack.c.l.b16 %v4656
        %v4765 = vunpack.c.h.b16 %v4656
        %v4766 = vunpack.c.l.b16 %v4657
        %v4767 = vunpack.c.h.b16 %v4657
        %v4768 = vunpack.c.l.b16 %v4658
        %v4769 = vunpack.c.h.b16 %v4658
        %v4770 = vunpack.c.l.b16 %v4659
        %v4771 = vunpack.c.h.b16 %v4659
        %v4772 = vunpack.c.l.b16 %v4660
        %v4773 = vunpack.c.h.b16 %v4660
        %v4774 = vunpack.c.l.b16 %v4661
        %v4775 = vunpack.c.h.b16 %v4661
        %v4776 = vunpack.c.l.b16 %v4662
        %v4777 = vunpack.c.h.b16 %v4662
        %v4778 = vunpack.c.l.b16 %v4663
        %v4779 = vunpack.c.h.b16 %v4663
        %v4780 = vunpack.c.l.b16 %v4664
        %v4781 = vunpack.c.h.b16 %v4664
        %v4782 = vunpack.c.l.b16 %v4665
        %v4783 = vunpack.c.h.b16 %v4665
        %v4784 = vpack.c.b16 %v4724, %v4720
        %v4785 = vpack.c.b16 %v4725, %v4721
        %v4786 = vpack.c.b16 %v4726, %v4722
        %v4787 = vpack.c.b16 %v4727, %v4723
        %v4788 = vpack.c.b16 %v4732, %v4728
        %v4789 = vpack.c.b16 %v4733, %v4729
        %v4790 = vpack.c.b16 %v4734, %v4730
        %v4791 = vpack.c.b16 %v4735, %v4731
        %v4792 = vpack.c.b16 %v4740, %v4736
        %v4793 = vpack.c.b16 %v4741, %v4737
        %v4794 = vpack.c.b16 %v4742, %v4738
        %v4795 = vpack.c.b16 %v4743, %v4739
        %v4796 = vpack.c.b16 %v4748, %v4744
        %v4797 = vpack.c.b16 %v4749, %v4745
        %v4798 = vpack.c.b16 %v4750, %v4746
        %v4799 = vpack.c.b16 %v4751, %v4747
        %v4800 = vpack.c.b16 %v4756, %v4752
        %v4801 = vpack.c.b16 %v4757, %v4753
        %v4802 = vpack.c.b16 %v4758, %v4754
        %v4803 = vpack.c.b16 %v4759, %v4755
        %v4804 = vpack.c.b16 %v4764, %v4760
        %v4805 = vpack.c.b16 %v4765, %v4761
        %v4806 = vpack.c.b16 %v4766, %v4762
        %v4807 = vpack.c.b16 %v4767, %v4763
        %v4808 = vpack.c.b16 %v4772, %v4768
        %v4809 = vpack.c.b16 %v4773, %v4769
        %v4810 = vpack.c.b16 %v4774, %v4770
        %v4811 = vpack.c.b16 %v4775, %v4771
        %v4812 = vpack.c.b16 %v4780, %v4776
        %v4813 = vpack.c.b16 %v4781, %v4777
        %v4814 = vpack.c.b16 %v4782, %v4778
        %v4815 = vpack.c.b16 %v4783, %v4779
        %4848 = vmatprep.subr.bf16.mxu0 %v4813
        %4849 = vmatpush1.bf16.msra.mxu0 %v4812
        %4850 = vmatprep.subr.bf16.mxu0 %v4809
        %4851 = vmatpush1.bf16.msra.mxu0 %v4808
        %4852 = vmatprep.subr.bf16.mxu0 %v4805
        %4853 = vmatpush1.bf16.msra.mxu0 %v4804
        %4854 = vmatprep.subr.bf16.mxu0 %v4801
        %4855 = vmatpush1.bf16.msra.mxu0 %v4800
        %4856 = vmatprep.subr.bf16.mxu0 %v4797
        %4857 = vmatpush1.bf16.msra.mxu0 %v4796
        %4858 = vmatprep.subr.bf16.mxu0 %v4793
        %4859 = vmatpush1.bf16.msra.mxu0 %v4792
        %4860 = vmatprep.subr.bf16.mxu0 %v4789
        %4861 = vmatpush1.bf16.msra.mxu0 %v4788
        %4862 = vmatprep.subr.bf16.mxu0 %v4785
        %4863 = vmatpush1.bf16.msra.mxu0 %v4784
        %4864 = vmatprep.subr.bf16.mxu0 0
        %4865 = vmatpush2.bf16.msra.mxu0 0
        %4866 = vmatprep.subr.bf16.mxu0 0
        %4867 = vmatpush2.bf16.msra.mxu0 0
        %4868 = vmatprep.subr.bf16.mxu0 0
        %4869 = vmatpush2.bf16.msra.mxu0 0
        %4870 = vmatprep.subr.bf16.mxu0 0
        %4871 = vmatpush2.bf16.msra.mxu0 0
        %4872 = vmatprep.subr.bf16.mxu0 0
        %4873 = vmatpush2.bf16.msra.mxu0 0
        %4874 = vmatprep.subr.bf16.mxu0 0
        %4875 = vmatpush2.bf16.msra.mxu0 0
        %4876 = vmatprep.subr.bf16.mxu0 0
        %4877 = vmatpush2.bf16.msra.mxu0 0
        %4878 = vmatprep.subr.bf16.mxu0 0
        %4879 = vmatpush2.bf16.msra.mxu0 0
        %4880 = vmatprep.mubr.bf16.mxu0 0
        %4881 = vmatmul.mubr.bf16.gmra.mxu0 %v4633
        %v4882 = vpop.f32.mrf.mxu0
        %v4883 = vadd.f32 %v4671, %v4882
        %v4884 = vpop.f32.mrf.mxu0
        %v4885 = vadd.f32 %v4675, %v4884
        %v4886 = vpop.f32.mrf.mxu0
        %v4887 = vadd.f32 %v4671, %v4886
        %v4888 = vpop.f32.mrf.mxu0
        %v4889 = vadd.f32 %v4675, %v4888
        %4890 = vdwg.mxu0
        %4891 = vmatprep.subr.bf16.mxu0 %v4815
        %4892 = vmatpush1.bf16.msra.mxu0 %v4814
        %4893 = vmatprep.subr.bf16.mxu0 %v4811
        %4894 = vmatpush1.bf16.msra.mxu0 %v4810
        %4895 = vmatprep.subr.bf16.mxu0 %v4807
        %4896 = vmatpush1.bf16.msra.mxu0 %v4806
        %4897 = vmatprep.subr.bf16.mxu0 %v4803
        %4898 = vmatpush1.bf16.msra.mxu0 %v4802
        %4899 = vmatprep.subr.bf16.mxu0 %v4799
        %4900 = vmatpush1.bf16.msra.mxu0 %v4798
        %4901 = vmatprep.subr.bf16.mxu0 %v4795
        %4902 = vmatpush1.bf16.msra.mxu0 %v4794
        %4903 = vmatprep.subr.bf16.mxu0 %v4791
        %4904 = vmatpush1.bf16.msra.mxu0 %v4790
        %4905 = vmatprep.subr.bf16.mxu0 %v4787
        %4906 = vmatpush1.bf16.msra.mxu0 %v4786
        %4907 = vmatprep.subr.bf16.mxu0 0
        %4908 = vmatpush2.bf16.msra.mxu0 0
        %4909 = vmatprep.subr.bf16.mxu0 0
        %4910 = vmatpush2.bf16.msra.mxu0 0
        %4911 = vmatprep.subr.bf16.mxu0 0
        %4912 = vmatpush2.bf16.msra.mxu0 0
        %4913 = vmatprep.subr.bf16.mxu0 0
        %4914 = vmatpush2.bf16.msra.mxu0 0
        %4915 = vmatprep.subr.bf16.mxu0 0
        %4916 = vmatpush2.bf16.msra.mxu0 0
        %4917 = vmatprep.subr.bf16.mxu0 0
        %4918 = vmatpush2.bf16.msra.mxu0 0
        %4919 = vmatprep.subr.bf16.mxu0 0
        %4920 = vmatpush2.bf16.msra.mxu0 0
        %4921 = vmatprep.subr.bf16.mxu0 0
        %4922 = vmatpush2.bf16.msra.mxu0 0
        %4923 = vmatprep.mubr.bf16.mxu0 0
        %4924 = vmatmul.mubr.bf16.gmra.mxu0 %v4633
        %v4925 = vpop.f32.mrf.mxu0
        %v4926 = vadd.f32 %v4679, %v4925
        %v4927 = vpop.f32.mrf.mxu0
        %v4928 = vadd.f32 %v4683, %v4927
        %v4929 = vpop.f32.mrf.mxu0
        %v4930 = vadd.f32 %v4679, %v4929
        %v4931 = vpop.f32.mrf.mxu0
        %v4932 = vadd.f32 %v4683, %v4931
        %4933 = vdwg.mxu0
        %v4934 = vmul.f32 %v4883, %v4883
        %v4935 = vmul.f32 %v4885, %v4885
        %v4936 = vmul.f32 %v4926, %v4926
        %v4937 = vmul.f32 %v4928, %v4928
        %v4938 = vmul.f32 %v4887, %v4887
        %v4939 = vmul.f32 %v4889, %v4889
        %v4940 = vmul.f32 %v4930, %v4930
        %v4941 = vmul.f32 %v4932, %v4932
        %v4942 = vmul.f32 %v4883, %v4934
        %v4943 = vmul.f32 %v4885, %v4935
        %v4944 = vmul.f32 %v4926, %v4936
        %v4945 = vmul.f32 %v4928, %v4937
        %v4946 = vmul.f32 %v4887, %v4938
        %v4947 = vmul.f32 %v4889, %v4939
        %v4948 = vmul.f32 %v4930, %v4940
        %v4949 = vmul.f32 %v4932, %v4941
        %v4950 = vmul.f32 %v4942, 0.044715
        %v4951 = vmul.f32 %v4943, 0.044715
        %v4952 = vmul.f32 %v4944, 0.044715
        %v4953 = vmul.f32 %v4945, 0.044715
        %v4954 = vmul.f32 %v4946, 0.044715
        %v4955 = vmul.f32 %v4947, 0.044715
        %v4956 = vmul.f32 %v4948, 0.044715
        %v4957 = vmul.f32 %v4949, 0.044715
        %v4958 = vadd.f32 %v4883, %v4950
        %v4959 = vadd.f32 %v4885, %v4951
        %v4960 = vadd.f32 %v4926, %v4952
        %v4961 = vadd.f32 %v4928, %v4953
        %v4962 = vadd.f32 %v4887, %v4954
        %v4963 = vadd.f32 %v4889, %v4955
        %v4964 = vadd.f32 %v4930, %v4956
        %v4965 = vadd.f32 %v4932, %v4957
        %v4966 = vmul.f32 %v4958, 0.7978846
        %v4967 = vmul.f32 %v4959, 0.7978846
        %v4968 = vmul.f32 %v4960, 0.7978846
        %v4969 = vmul.f32 %v4961, 0.7978846
        %v4970 = vmul.f32 %v4962, 0.7978846
        %v4971 = vmul.f32 %v4963, 0.7978846
        %v4972 = vmul.f32 %v4964, 0.7978846
        %v4973 = vmul.f32 %v4965, 0.7978846
        %v4974 = vtanh.pop %v4966
        %v4975 = vtanh.pop %v4967
        %v4976 = vtanh.pop %v4968
        %v4977 = vtanh.pop %v4969
        %v4978 = vtanh.pop %v4970
        %v4979 = vtanh.pop %v4971
        %v4980 = vtanh.pop %v4972
        %v4981 = vtanh.pop %v4973
        %v4982 = vadd.f32 %v4974, 1.0
        %v4983 = vadd.f32 %v4975, 1.0
        %v4984 = vadd.f32 %v4976, 1.0
        %v4985 = vadd.f32 %v4977, 1.0
        %v4986 = vadd.f32 %v4978, 1.0
        %v4987 = vadd.f32 %v4979, 1.0
        %v4988 = vadd.f32 %v4980, 1.0
        %v4989 = vadd.f32 %v4981, 1.0
        %v4990 = vmul.f32 %v4982, 0.5
        %v4991 = vmul.f32 %v4983, 0.5
        %v4992 = vmul.f32 %v4984, 0.5
        %v4993 = vmul.f32 %v4985, 0.5
        %v4994 = vmul.f32 %v4986, 0.5
        %v4995 = vmul.f32 %v4987, 0.5
        %v4996 = vmul.f32 %v4988, 0.5
        %v4997 = vmul.f32 %v4989, 0.5
        %v4998 = vmul.f32 %v4883, %v4990
        %v4999 = vmul.f32 %v4885, %v4991
        %v5000 = vmul.f32 %v4926, %v4992
        %v5001 = vmul.f32 %v4928, %v4993
        %v5002 = vmul.f32 %v4887, %v4994
        %v5003 = vmul.f32 %v4889, %v4995
        %v5004 = vmul.f32 %v4930, %v4996
        %v5005 = vmul.f32 %v4932, %v4997
        %v5006 = vpack.c.bf16 %v5002, %v4998
        %v5007 = vpack.c.bf16 %v5003, %v4999
        %v5008 = vpack.c.bf16 %v5004, %v5000
        %v5009 = vpack.c.bf16 %v5005, %v5001
        %v5010 = vld [vmem:[%s1362] sm:$0xf]
        %v5011 = vld [vmem:[%s1362 + $0x4] sm:$0xf]
        %v5012 = vld [vmem:[%s1362 + $0x8] sm:$0xf]
        %v5013 = vld [vmem:[%s1362 + $0xc] sm:$0xf]
        %v5014 = vld [vmem:[%s1362 + $0x10] sm:$0xf]
        %v5015 = vld [vmem:[%s1362 + $0x14] sm:$0xf]
        %v5016 = vld [vmem:[%s1362 + $0x18] sm:$0xf]
        %v5017 = vld [vmem:[%s1362 + $0x1c] sm:$0xf]
        %v5018 = vld [vmem:[%s1362 + $0x20] sm:$0xf]
        %v5019 = vld [vmem:[%s1362 + $0x24] sm:$0xf]
        %v5020 = vld [vmem:[%s1362 + $0x28] sm:$0xf]
        %v5021 = vld [vmem:[%s1362 + $0x2c] sm:$0xf]
        %v5022 = vld [vmem:[%s1362 + $0x30] sm:$0xf]
        %v5023 = vld [vmem:[%s1362 + $0x34] sm:$0xf]
        %v5024 = vld [vmem:[%s1362 + $0x38] sm:$0xf]
        %v5025 = vld [vmem:[%s1362 + $0x3c] sm:$0xf]
        %v5026 = vld [vmem:[%s1362 + $0x40] sm:$0xf]
        %v5027 = vld [vmem:[%s1362 + $0x44] sm:$0xf]
        %v5028 = vld [vmem:[%s1362 + $0x48] sm:$0xf]
        %v5029 = vld [vmem:[%s1362 + $0x4c] sm:$0xf]
        %v5030 = vld [vmem:[%s1362 + $0x50] sm:$0xf]
        %v5031 = vld [vmem:[%s1362 + $0x54] sm:$0xf]
        %v5032 = vld [vmem:[%s1362 + $0x58] sm:$0xf]
        %v5033 = vld [vmem:[%s1362 + $0x5c] sm:$0xf]
        %v5034 = vld [vmem:[%s1362 + $0x60] sm:$0xf]
        %v5035 = vld [vmem:[%s1362 + $0x64] sm:$0xf]
        %v5036 = vld [vmem:[%s1362 + $0x68] sm:$0xf]
        %v5037 = vld [vmem:[%s1362 + $0x6c] sm:$0xf]
        %v5038 = vld [vmem:[%s1362 + $0x70] sm:$0xf]
        %v5039 = vld [vmem:[%s1362 + $0x74] sm:$0xf]
        %v5040 = vld [vmem:[%s1362 + $0x78] sm:$0xf]
        %v5041 = vld [vmem:[%s1362 + $0x7c] sm:$0xf]
        %v5042 = vld [vmem:[%s1362 + $0x80] sm:$0xf]
        %v5043 = vld [vmem:[%s1362 + $0x84] sm:$0xf]
        %v5044 = vld [vmem:[%s1362 + $0x88] sm:$0xf]
        %v5045 = vld [vmem:[%s1362 + $0x8c] sm:$0xf]
        %v5046 = vld [vmem:[%s1362 + $0x90] sm:$0xf]
        %v5047 = vld [vmem:[%s1362 + $0x94] sm:$0xf]
        %v5048 = vld [vmem:[%s1362 + $0x98] sm:$0xf]
        %v5049 = vld [vmem:[%s1362 + $0x9c] sm:$0xf]
        %v5050 = vld [vmem:[%s1362 + $0xa0] sm:$0xf]
        %v5051 = vld [vmem:[%s1362 + $0xa4] sm:$0xf]
        %v5052 = vld [vmem:[%s1362 + $0xa8] sm:$0xf]
        %v5053 = vld [vmem:[%s1362 + $0xac] sm:$0xf]
        %v5054 = vld [vmem:[%s1362 + $0xb0] sm:$0xf]
        %v5055 = vld [vmem:[%s1362 + $0xb4] sm:$0xf]
        %v5056 = vld [vmem:[%s1362 + $0xb8] sm:$0xf]
        %v5057 = vld [vmem:[%s1362 + $0xbc] sm:$0xf]
        %v5058 = vld [vmem:[%s1362 + $0xc0] sm:$0xf]
        %v5059 = vld [vmem:[%s1362 + $0xc4] sm:$0xf]
        %v5060 = vld [vmem:[%s1362 + $0xc8] sm:$0xf]
        %v5061 = vld [vmem:[%s1362 + $0xcc] sm:$0xf]
        %v5062 = vld [vmem:[%s1362 + $0xd0] sm:$0xf]
        %v5063 = vld [vmem:[%s1362 + $0xd4] sm:$0xf]
        %v5064 = vld [vmem:[%s1362 + $0xd8] sm:$0xf]
        %v5065 = vld [vmem:[%s1362 + $0xdc] sm:$0xf]
        %v5066 = vld [vmem:[%s1362 + $0xe0] sm:$0xf]
        %v5067 = vld [vmem:[%s1362 + $0xe4] sm:$0xf]
        %v5068 = vld [vmem:[%s1362 + $0xe8] sm:$0xf]
        %v5069 = vld [vmem:[%s1362 + $0xec] sm:$0xf]
        %v5070 = vld [vmem:[%s1362 + $0xf0] sm:$0xf]
        %v5071 = vld [vmem:[%s1362 + $0xf4] sm:$0xf]
        %v5072 = vld [vmem:[%s1362 + $0xf8] sm:$0xf]
        %v5073 = vld [vmem:[%s1362 + $0xfc] sm:$0xf]
        %v5074 = vld [vmem:[%s1365] sm:$0x1]
        %v5076 = vlaneseq
        %v5077 = vshrl.u32 %v5076, 7
        %v5078 = vsub.s32 0, %v5077
        %v5079 = vrot.slane %v5074, %v5078
        %v5145 = vunpack.c.l.b16 %v5010
        %v5146 = vunpack.c.l.b16 %v5011
        %v5147 = vunpack.c.l.b16 %v5012
        %v5148 = vunpack.c.l.b16 %v5013
        %v5149 = vunpack.c.l.b16 %v5014
        %v5150 = vunpack.c.l.b16 %v5015
        %v5151 = vunpack.c.l.b16 %v5016
        %v5152 = vunpack.c.l.b16 %v5017
        %v5153 = vunpack.c.l.b16 %v5018
        %v5154 = vunpack.c.l.b16 %v5019
        %v5155 = vunpack.c.l.b16 %v5020
        %v5156 = vunpack.c.l.b16 %v5021
        %v5157 = vunpack.c.l.b16 %v5022
        %v5158 = vunpack.c.l.b16 %v5023
        %v5159 = vunpack.c.l.b16 %v5024
        %v5160 = vunpack.c.l.b16 %v5025
        %v5161 = vunpack.c.l.b16 %v5026
        %v5162 = vunpack.c.l.b16 %v5027
        %v5163 = vunpack.c.l.b16 %v5028
        %v5164 = vunpack.c.l.b16 %v5029
        %v5165 = vunpack.c.l.b16 %v5030
        %v5166 = vunpack.c.l.b16 %v5031
        %v5167 = vunpack.c.l.b16 %v5032
        %v5168 = vunpack.c.l.b16 %v5033
        %v5169 = vunpack.c.l.b16 %v5034
        %v5170 = vunpack.c.l.b16 %v5035
        %v5171 = vunpack.c.l.b16 %v5036
        %v5172 = vunpack.c.l.b16 %v5037
        %v5173 = vunpack.c.l.b16 %v5038
        %v5174 = vunpack.c.l.b16 %v5039
        %v5175 = vunpack.c.l.b16 %v5040
        %v5176 = vunpack.c.l.b16 %v5041
        %v5177 = vunpack.c.l.b16 %v5042
        %v5178 = vunpack.c.l.b16 %v5043
        %v5179 = vunpack.c.l.b16 %v5044
        %v5180 = vunpack.c.l.b16 %v5045
        %v5181 = vunpack.c.l.b16 %v5046
        %v5182 = vunpack.c.l.b16 %v5047
        %v5183 = vunpack.c.l.b16 %v5048
        %v5184 = vunpack.c.l.b16 %v5049
        %v5185 = vunpack.c.l.b16 %v5050
        %v5186 = vunpack.c.l.b16 %v5051
        %v5187 = vunpack.c.l.b16 %v5052
        %v5188 = vunpack.c.l.b16 %v5053
        %v5189 = vunpack.c.l.b16 %v5054
        %v5190 = vunpack.c.l.b16 %v5055
        %v5191 = vunpack.c.l.b16 %v5056
        %v5192 = vunpack.c.l.b16 %v5057
        %v5193 = vunpack.c.l.b16 %v5058
        %v5194 = vunpack.c.l.b16 %v5059
        %v5195 = vunpack.c.l.b16 %v5060
        %v5196 = vunpack.c.l.b16 %v5061
        %v5197 = vunpack.c.l.b16 %v5062
        %v5198 = vunpack.c.l.b16 %v5063
        %v5199 = vunpack.c.l.b16 %v5064
        %v5200 = vunpack.c.l.b16 %v5065
        %v5201 = vunpack.c.l.b16 %v5066
        %v5202 = vunpack.c.l.b16 %v5067
        %v5203 = vunpack.c.l.b16 %v5068
        %v5204 = vunpack.c.l.b16 %v5069
        %v5205 = vunpack.c.l.b16 %v5070
        %v5206 = vunpack.c.l.b16 %v5071
        %v5207 = vunpack.c.l.b16 %v5072
        %v5208 = vunpack.c.l.b16 %v5073
        %v5209 = vpack.c.b16 %v5146, %v5145
        %v5210 = vpack.c.b16 %v5148, %v5147
        %v5211 = vpack.c.b16 %v5150, %v5149
        %v5212 = vpack.c.b16 %v5152, %v5151
        %v5213 = vpack.c.b16 %v5154, %v5153
        %v5214 = vpack.c.b16 %v5156, %v5155
        %v5215 = vpack.c.b16 %v5158, %v5157
        %v5216 = vpack.c.b16 %v5160, %v5159
        %v5217 = vpack.c.b16 %v5162, %v5161
        %v5218 = vpack.c.b16 %v5164, %v5163
        %v5219 = vpack.c.b16 %v5166, %v5165
        %v5220 = vpack.c.b16 %v5168, %v5167
        %v5221 = vpack.c.b16 %v5170, %v5169
        %v5222 = vpack.c.b16 %v5172, %v5171
        %v5223 = vpack.c.b16 %v5174, %v5173
        %v5224 = vpack.c.b16 %v5176, %v5175
        %v5225 = vpack.c.b16 %v5178, %v5177
        %v5226 = vpack.c.b16 %v5180, %v5179
        %v5227 = vpack.c.b16 %v5182, %v5181
        %v5228 = vpack.c.b16 %v5184, %v5183
        %v5229 = vpack.c.b16 %v5186, %v5185
        %v5230 = vpack.c.b16 %v5188, %v5187
        %v5231 = vpack.c.b16 %v5190, %v5189
        %v5232 = vpack.c.b16 %v5192, %v5191
        %v5233 = vpack.c.b16 %v5194, %v5193
        %v5234 = vpack.c.b16 %v5196, %v5195
        %v5235 = vpack.c.b16 %v5198, %v5197
        %v5236 = vpack.c.b16 %v5200, %v5199
        %v5237 = vpack.c.b16 %v5202, %v5201
        %v5238 = vpack.c.b16 %v5204, %v5203
        %v5239 = vpack.c.b16 %v5206, %v5205
        %v5240 = vpack.c.b16 %v5208, %v5207
        %5273 = vmatprep.subr.bf16.mxu0 0
        %5274 = vmatpush1.bf16.msra.mxu0 %v5216
        %5275 = vmatprep.subr.bf16.mxu0 0
        %5276 = vmatpush1.bf16.msra.mxu0 %v5215
        %5277 = vmatprep.subr.bf16.mxu0 0
        %5278 = vmatpush1.bf16.msra.mxu0 %v5214
        %5279 = vmatprep.subr.bf16.mxu0 0
        %5280 = vmatpush1.bf16.msra.mxu0 %v5213
        %5281 = vmatprep.subr.bf16.mxu0 0
        %5282 = vmatpush1.bf16.msra.mxu0 %v5212
        %5283 = vmatprep.subr.bf16.mxu0 0
        %5284 = vmatpush1.bf16.msra.mxu0 %v5211
        %5285 = vmatprep.subr.bf16.mxu0 0
        %5286 = vmatpush1.bf16.msra.mxu0 %v5210
        %5287 = vmatprep.subr.bf16.mxu0 0
        %5288 = vmatpush1.bf16.msra.mxu0 %v5209
        %5289 = vmatprep.subr.bf16.mxu0 0
        %5290 = vmatpush2.bf16.msra.mxu0 %v5224
        %5291 = vmatprep.subr.bf16.mxu0 0
        %5292 = vmatpush2.bf16.msra.mxu0 %v5223
        %5293 = vmatprep.subr.bf16.mxu0 0
        %5294 = vmatpush2.bf16.msra.mxu0 %v5222
        %5295 = vmatprep.subr.bf16.mxu0 0
        %5296 = vmatpush2.bf16.msra.mxu0 %v5221
        %5297 = vmatprep.subr.bf16.mxu0 0
        %5298 = vmatpush2.bf16.msra.mxu0 %v5220
        %5299 = vmatprep.subr.bf16.mxu0 0
        %5300 = vmatpush2.bf16.msra.mxu0 %v5219
        %5301 = vmatprep.subr.bf16.mxu0 0
        %5302 = vmatpush2.bf16.msra.mxu0 %v5218
        %5303 = vmatprep.subr.bf16.mxu0 0
        %5304 = vmatpush2.bf16.msra.mxu0 %v5217
        %5305 = vmatprep.mubr.bf16.mxu0 %v5007
        %5306 = vmatmul.mubr.bf16.gmra.mxu0 %v5006
        %v5307 = vpop.f32.mrf.mxu0
        %v5308 = vadd.f32 %v5079, %v5307
        %v5309 = vpop.f32.mrf.mxu0
        %v5310 = vpop.f32.mrf.mxu0
        %v5311 = vadd.f32 %v5079, %v5310
        %v5312 = vpop.f32.mrf.mxu0
        %5313 = vdwg.mxu0
        %5314 = vmatprep.subr.bf16.mxu0 0
        %5315 = vmatpush1.bf16.msra.mxu0 %v5232
        %5316 = vmatprep.subr.bf16.mxu0 0
        %5317 = vmatpush1.bf16.msra.mxu0 %v5231
        %5318 = vmatprep.subr.bf16.mxu0 0
        %5319 = vmatpush1.bf16.msra.mxu0 %v5230
        %5320 = vmatprep.subr.bf16.mxu0 0
        %5321 = vmatpush1.bf16.msra.mxu0 %v5229
        %5322 = vmatprep.subr.bf16.mxu0 0
        %5323 = vmatpush1.bf16.msra.mxu0 %v5228
        %5324 = vmatprep.subr.bf16.mxu0 0
        %5325 = vmatpush1.bf16.msra.mxu0 %v5227
        %5326 = vmatprep.subr.bf16.mxu0 0
        %5327 = vmatpush1.bf16.msra.mxu0 %v5226
        %5328 = vmatprep.subr.bf16.mxu0 0
        %5329 = vmatpush1.bf16.msra.mxu0 %v5225
        %5330 = vmatprep.subr.bf16.mxu0 0
        %5331 = vmatpush2.bf16.msra.mxu0 %v5240
        %5332 = vmatprep.subr.bf16.mxu0 0
        %5333 = vmatpush2.bf16.msra.mxu0 %v5239
        %5334 = vmatprep.subr.bf16.mxu0 0
        %5335 = vmatpush2.bf16.msra.mxu0 %v5238
        %5336 = vmatprep.subr.bf16.mxu0 0
        %5337 = vmatpush2.bf16.msra.mxu0 %v5237
        %5338 = vmatprep.subr.bf16.mxu0 0
        %5339 = vmatpush2.bf16.msra.mxu0 %v5236
        %5340 = vmatprep.subr.bf16.mxu0 0
        %5341 = vmatpush2.bf16.msra.mxu0 %v5235
        %5342 = vmatprep.subr.bf16.mxu0 0
        %5343 = vmatpush2.bf16.msra.mxu0 %v5234
        %5344 = vmatprep.subr.bf16.mxu0 0
        %5345 = vmatpush2.bf16.msra.mxu0 %v5233
        %5346 = vmatprep.mubr.bf16.mxu0 %v5009
        %5347 = vmatmul.mubr.bf16.gmra.mxu0 %v5008
        %v5348 = vpop.f32.mrf.mxu0
        %v5349 = vadd.f32 %v5308, %v5348
        %v5350 = vpop.f32.mrf.mxu0
        %v5351 = vpop.f32.mrf.mxu0
        %v5352 = vadd.f32 %v5311, %v5351
        %v5353 = vpop.f32.mrf.mxu0
        %5354 = vdwg.mxu0
        %v5355 = vadd.f32 %v4608, %v5349
        %v5356 = vadd.f32 %v4609, %v5352
        %5357 = vst [vmem:[#allocation2] sm:$0xff] %v5355
        %5358 = vst [vmem:[#allocation2 + $0x8] sm:$0xff] %v5356
        // Predicated region
        $region157: #{t5_decoder_forward.1} parent=151 // pred_check
          %p5359 = pneg %p900
        $region158: #{t5_decoder_forward.1} parent=151 // pred_check_branch
          %5361 = sbr.rel (%p5359) target = $region160
        $region159: #{t5_decoder_forward.1} parent=151 // pred_region
          %s5363 = ssub.s32 256, 256
          %5364 = vsyncadd [#allocation3], %s5363
          %s5365 = sshll.u32 [#allocation2], 4
          %s5366 = int_to_ptr.vmem [resolvable:$true] %s5365
          %5371 = dma.vmem_to_hbm [thread:$0]  %s5366, 256, %s67, [#allocation3], 128, 128, 8
        $region160: #{t5_decoder_forward.1} parent=151 // pred_fallthru
          _
        // Predicated region
        $region161: #{t5_decoder_forward.1} parent=151 // pred_check
          %p5372 = pneg %p900
        $region162: #{t5_decoder_forward.1} parent=151 // pred_check_branch
          %5374 = sbr.rel (%p5372) target = $region164
        $region163: #{t5_decoder_forward.1} parent=151 // pred_region
          %5375 = dma.done [#allocation3], 256
        $region164: #{t5_decoder_forward.1} parent=151 // pred_fallthru
          _
      $region152: #{t5_decoder_forward.1} parent=5 // pred_fallthru
        _
      %p5376 = scmp.le.s32.totalorder 2, %s74
      // Predicated region
      $region165: #{t5_decoder_forward.1} parent=5 // pred_check
        %p5377 = pneg %p5376
      $region166: #{t5_decoder_forward.1} parent=5 // pred_check_branch
        %5379 = sbr.rel (%p5377) target = $region168
      $region167: #{t5_decoder_forward.1} parent=5 // pred_region
        %s5380 = ssub.s32 %s74, 2
      $region168: #{t5_decoder_forward.1} parent=5 // pred_fallthru
        _
    $region6: #{t5_decoder_forward.1} parent=1 // loop_footer
      %s78 = sadd.s32 1, %s74
    $region7: #{t5_decoder_forward.1} parent=1 // loop_footer_branch
      %73 = sbr.rel target = $region3
    $region8: #{t5_decoder_forward.1} parent=1 // loop_exit
      _
    %5381 = vsyncpa [#allocation3], 1
    %s5382 = scalar_lea.sflag [#allocation3], 1
    %5383 = vsyncpa %s5382, 1

</llo_original>
